<compile_context>
chip_gen: v5e
topology: v5e:2x2
jax: 0.10.0
libtpu: 0.0.40
codegen_flags: <defaults>
</compile_context>

<pallas_src>
import math

import jax
import jax.numpy as jnp
from jax.experimental import pallas as pl
from jax.experimental.pallas import tpu as pltpu

PATCH = 16
EMBED = 128             # lane-dense synthetic hidden size (real model: 768)
HEADS = 2
HEAD_DIM = EMBED // HEADS
MLP_HIDDEN = 4 * EMBED  # 512, multiple of 128
DEPTH = 2
EPS = 1e-6
MAX_BLOCK_B = 8         # images folded into one grid step (M >= 128 rows)

_CONST_KEYS = ("patch_w", "patch_b", "pos_spatial", "tail_init", "final_ln")
_LAYER_KEYS = ("ln_params", "qkv_w", "qkv_b", "proj_w", "proj_b",
               "fc1_w", "fc1_b", "fc2_w", "fc2_b")


def _layernorm(x, w, b):
    mu = jnp.mean(x, axis=-1, keepdims=True)
    var = jnp.mean(jnp.square(x - mu), axis=-1, keepdims=True)
    return (x - mu) * jax.lax.rsqrt(var + EPS) * w + b


# ----------------------------------------------------------------------------
# Fused ViT kernel.  grid = (batch_blocks, DEPTH): one transformer block per
# step, tokens stay resident in VMEM scratch across the DEPTH axis.
# ----------------------------------------------------------------------------
def _make_kernel(BB, N, T_pad, CPP):
    T = N + 1                 # spatial tokens + CLS
    TAIL = T_pad - N          # CLS row + zero pad rows
    scale = 1.0 / math.sqrt(HEAD_DIM)

    def kernel(x_ref, pw_ref, pb_ref, pos_ref, tail_ref, fln_ref,
               ln_ref, qkvw_ref, qkvb_ref, projw_ref, projb_ref,
               fc1w_ref, fc1b_ref, fc2w_ref, fc2b_ref,
               o_ref, tok_ref):
        d = pl.program_id(1)

        # ---- prologue (d == 0): patch-embed + CLS/pos, tokens into scratch ----
        @pl.when(d == 0)
        def _init():
            patches = x_ref[...].reshape(BB * N, CPP)                    # bf16
            emb = jnp.dot(patches, pw_ref[...],
                          preferred_element_type=jnp.float32) + pb_ref[...]
            emb = emb.reshape(BB, N, EMBED) + pos_ref[...][None, :, :]
            tok_ref[:, 0:N, :] = emb                                     # spatial rows 0..N-1
            tok_ref[:, N:T_pad, :] = jnp.broadcast_to(                   # CLS row N, zero pad
                tail_ref[...][None, :, :], (BB, TAIL, EMBED))

        # ---- one transformer block (weights for layer d streamed per step) ----
        x = tok_ref[...]                                                 # (BB, T_pad, D) f32
        x_flat = x.reshape(BB * T_pad, EMBED)

        ln = ln_ref[0]                                                   # (4, D)
        xn = _layernorm(x_flat, ln[0:1, :], ln[1:2, :]).astype(jnp.bfloat16)
        qkv = jnp.dot(xn, qkvw_ref[0],
                      preferred_element_type=jnp.float32) + qkvb_ref[0]  # (BB*T_pad, 3D)
        qkv = qkv.reshape(BB, T_pad, 3 * EMBED)

        # mask padded key columns (rows >= T are padding)
        key_idx = jax.lax.broadcasted_iota(jnp.int32, (1, 1, T_pad), 2)
        kmask = jnp.where(key_idx < T, 0.0, -1e30).astype(jnp.float32)

        pw_full = projw_ref[0]                                           # (D, D) bf16
        attn_acc = jnp.zeros((BB * T_pad, EMBED), jnp.float32)
        for h in range(HEADS):
            q = qkv[:, :, h * HEAD_DIM:(h + 1) * HEAD_DIM].astype(jnp.bfloat16)
            k = qkv[:, :, EMBED + h * HEAD_DIM:EMBED + (h + 1) * HEAD_DIM].astype(jnp.bfloat16)
            v = qkv[:, :, 2 * EMBED + h * HEAD_DIM:2 * EMBED + (h + 1) * HEAD_DIM].astype(jnp.bfloat16)
            s = jax.lax.dot_general(q, k, (((2,), (2,)), ((0,), (0,))),
                                    preferred_element_type=jnp.float32) * scale
            s = s + kmask
            s = s - jnp.max(s, axis=-1, keepdims=True)
            p = jnp.exp(s)                                               # EUP
            p = p * pl.reciprocal(jnp.sum(p, axis=-1, keepdims=True), approx=True)
            ho = jax.lax.dot_general(p.astype(jnp.bfloat16), v,
                                     (((2,), (1,)), ((0,), (0,))),
                                     preferred_element_type=jnp.float32)  # (BB,T_pad,HD)
            # per-head output projection (no lane-dim concat of heads)
            attn_acc = attn_acc + jnp.dot(
                ho.reshape(BB * T_pad, HEAD_DIM).astype(jnp.bfloat16),
                pw_full[h * HEAD_DIM:(h + 1) * HEAD_DIM, :],
                preferred_element_type=jnp.float32)
        x_flat = x_flat + attn_acc + projb_ref[0]

        xn2 = _layernorm(x_flat, ln[2:3, :], ln[3:4, :]).astype(jnp.bfloat16)
        h1 = jnp.dot(xn2, fc1w_ref[0],
                     preferred_element_type=jnp.float32) + fc1b_ref[0]
        # TODO(synk): torch nn.GELU defaults to exact (erf) GELU; tanh approx is
        # kept here to guarantee Mosaic lowering (small numerical difference).
        h1 = jax.nn.gelu(h1, approximate=True).astype(jnp.bfloat16)
        x_flat = x_flat + jnp.dot(h1, fc2w_ref[0],
                                  preferred_element_type=jnp.float32) + fc2b_ref[0]

        tok_ref[...] = x_flat.reshape(BB, T_pad, EMBED)

        # ---- epilogue (d == last): final LN on spatial rows only (aligned) ----
        @pl.when(d == DEPTH - 1)
        def _final():
            xs = tok_ref[:, 0:N, :].reshape(BB * N, EMBED)
            y = _layernorm(xs, fln_ref[0:1, :], fln_ref[1:2, :])
            o_ref[...] = y.reshape(BB, N, EMBED)

    return kernel


# ----------------------------------------------------------------------------
# Wrapper
# ----------------------------------------------------------------------------
def radio_vit(x_patches, params, *, block_b=MAX_BLOCK_B):
    """x_patches: (B, N, C*P*P) bf16 -> spatial tokens (B, N, EMBED) f32."""
    B, N, CPP = x_patches.shape
    T = N + 1
    T_pad = -(-T // 8) * 8
    BB = max(1, min(block_b, B))
    B_pad = -(-B // BB) * BB
    if B_pad != B:
        x_patches = jnp.pad(x_patches, ((0, B_pad - B), (0, 0), (0, 0)))

    const_w = [params[k] for k in _CONST_KEYS]
    layer_w = [params[k] for k in _LAYER_KEYS]

    def const_spec(p):
        nd = p.ndim
        return pl.BlockSpec(p.shape, lambda b, d, _nd=nd: (0,) * _nd)

    def layer_spec(p):          # leading DEPTH axis streamed by grid axis d
        rest = p.shape[1:]
        nrest = len(rest)
        return pl.BlockSpec((1,) + rest, lambda b, d, _n=nrest: (d,) + (0,) * _n)

    in_specs = [pl.BlockSpec((BB, N, CPP), lambda b, d: (b, 0, 0))]
    in_specs += [const_spec(p) for p in const_w]
    in_specs += [layer_spec(p) for p in layer_w]

    # advisory cost estimate for XLA scheduling
    rows = B_pad * T_pad
    mm_flops = DEPTH * rows * (2 * EMBED * 3 * EMBED + 2 * EMBED * EMBED
                               + 4 * EMBED * MLP_HIDDEN + 4 * T_pad * EMBED)
    mm_flops += B_pad * N * 2 * CPP * EMBED
    transc = DEPTH * B_pad * (HEADS * T_pad * T_pad + T_pad * MLP_HIDDEN)
    bytes_acc = (int(x_patches.size) * 2 + B_pad * N * EMBED * 4
                 + sum(int(w.size) * w.dtype.itemsize for w in const_w + layer_w))
    ce = pl.CostEstimate(flops=int(mm_flops), transcendentals=int(transc),
                         bytes_accessed=int(bytes_acc))

    out = pl.pallas_call(
        _make_kernel(BB, N, T_pad, CPP),
        grid=(B_pad // BB, DEPTH),
        out_shape=jax.ShapeDtypeStruct((B_pad, N, EMBED), jnp.float32),
        in_specs=in_specs,
        out_specs=pl.BlockSpec((BB, N, EMBED), lambda b, d: (b, 0, 0)),
        scratch_shapes=[pltpu.VMEM((BB, T_pad, EMBED), jnp.float32)],
        compiler_params=pltpu.CompilerParams(
            dimension_semantics=("parallel", "arbitrary"),
            vmem_limit_bytes=32 * 1024 * 1024),
        cost_estimate=ce,
    )(x_patches, *const_w, *layer_w)
    return out[:B]


# ----------------------------------------------------------------------------
# Parameter init (deterministic synthetic weights — no checkpoint download).
# Token order everywhere is [spatial tokens (N), CLS]; CLS pos-embed is folded
# into `tail_init` so the kernel never does a token concat.
# ----------------------------------------------------------------------------
def init_params(key, in_chans, n_spatial):
    T = n_spatial + 1
    T_pad = -(-T // 8) * 8
    K = in_chans * PATCH * PATCH
    ks = jax.random.split(key, 7)
    std = 0.02

    def nrm(k, shape, dtype=jnp.float32):
        return (jax.random.normal(k, shape, jnp.float32) * std).astype(dtype)

    cls = nrm(ks[1], (1, EMBED))
    pos = nrm(ks[2], (T, EMBED))                        # rows: spatial..., CLS
    tail = jnp.concatenate(
        [cls + pos[n_spatial:n_spatial + 1],
         jnp.zeros((T_pad - n_spatial - 1, EMBED), jnp.float32)], axis=0)

    ln_row = jnp.stack([jnp.ones(EMBED), jnp.zeros(EMBED),
                        jnp.ones(EMBED), jnp.zeros(EMBED)]).astype(jnp.float32)

    return {
        "patch_w": nrm(ks[0], (K, EMBED), jnp.bfloat16),
        "patch_b": jnp.zeros((1, EMBED), jnp.float32),
        "pos_spatial": pos[:n_spatial],
        "tail_init": tail,                               # (T_pad - N, EMBED)
        "final_ln": jnp.stack([jnp.ones(EMBED), jnp.zeros(EMBED)]).astype(jnp.float32),
        "ln_params": jnp.tile(ln_row[None], (DEPTH, 1, 1)),  # [ln1_w, ln1_b, ln2_w, ln2_b]
        "qkv_w": nrm(ks[3], (DEPTH, EMBED, 3 * EMBED), jnp.bfloat16),
        "qkv_b": jnp.zeros((DEPTH, 1, 3 * EMBED), jnp.float32),
        "proj_w": nrm(ks[4], (DEPTH, EMBED, EMBED), jnp.bfloat16),
        "proj_b": jnp.zeros((DEPTH, 1, EMBED), jnp.float32),
        "fc1_w": nrm(ks[5], (DEPTH, EMBED, MLP_HIDDEN), jnp.bfloat16),
        "fc1_b": jnp.zeros((DEPTH, 1, MLP_HIDDEN), jnp.float32),
        "fc2_w": nrm(ks[6], (DEPTH, MLP_HIDDEN, EMBED), jnp.bfloat16),
        "fc2_b": jnp.zeros((DEPTH, 1, EMBED), jnp.float32),
    }


# ----------------------------------------------------------------------------
# Forward (== RADIOFeaturizer.forward -> spatial_features, NCHW)
# ----------------------------------------------------------------------------
def radio_featurizer_forward(img, params):
    B, C, H, W = img.shape
    Hp, Wp = H // PATCH, W // PATCH
    N = Hp * Wp

    # patchify glue: NCHW -> (B, N, C*P*P) bf16  (pure layout, handled by XLA)
    x = img.reshape(B, C, Hp, PATCH, Wp, PATCH)
    x = x.transpose(0, 2, 4, 1, 3, 5).reshape(B, N, C * PATCH * PATCH)
    x = x.astype(jnp.bfloat16)

    # fused Pallas kernel: patch-embed + CLS/pos + DEPTH blocks + final LN
    spatial_tok = radio_vit(x, params)                   # (B, N, D)

    # spatial tokens -> NCHW (B, D, Hp, Wp)
    return spatial_tok.reshape(B, Hp, Wp, EMBED).transpose(0, 3, 1, 2)


# ----------------------------------------------------------------------------
# Pure-JAX reference (f32 math) for a tolerance check
# ----------------------------------------------------------------------------
def radio_vit_reference(x_patches, params):
    B, N, _ = x_patches.shape
    f32 = jnp.float32
    xp = x_patches.astype(f32)

    def LN(x, w, b):
        mu = jnp.mean(x, -1, keepdims=True)
        var = jnp.mean(jnp.square(x - mu), -1, keepdims=True)
        return (x - mu) * jax.lax.rsqrt(var + EPS) * w + b

    emb = xp @ params["patch_w"].astype(f32) + params["patch_b"]
    emb = emb + params["pos_spatial"][None]
    cls_row = params["tail_init"][0:1]
    tok = jnp.concatenate([emb, jnp.broadcast_to(cls_row[None], (B, 1, EMBED))], axis=1)
    T = N + 1
    for d in range(DEPTH):
        ln = params["ln_params"][d]
        xn = LN(tok, ln[0], ln[1])
        qkv = xn @ params["qkv_w"][d].astype(f32) + params["qkv_b"][d]
        q, k, v = jnp.split(qkv, 3, axis=-1)
        q = q.reshape(B, T, HEADS, HEAD_DIM)
        k = k.reshape(B, T, HEADS, HEAD_DIM)
        v = v.reshape(B, T, HEADS, HEAD_DIM)
        s = jnp.einsum('bqhd,bkhd->bhqk', q, k) / math.sqrt(HEAD_DIM)
        p = jax.nn.softmax(s, axis=-1)
        attn = jnp.einsum('bhqk,bkhd->bqhd', p, v).reshape(B, T, EMBED)
        tok = tok + attn @ params["proj_w"][d].astype(f32) + params["proj_b"][d]
        xn2 = LN(tok, ln[2], ln[3])
        h1 = jax.nn.gelu(xn2 @ params["fc1_w"][d].astype(f32) + params["fc1_b"][d],
                         approximate=True)
        tok = tok + h1 @ params["fc2_w"][d].astype(f32) + params["fc2_b"][d]
    fln = params["final_ln"]
    return LN(tok[:, :N, :], fln[0], fln[1])


if __name__ == "__main__":
    key = jax.random.PRNGKey(0)
    k_img, k_par = jax.random.split(key)

    B, C, H, W = 2, 3, 64, 64          # 4x4 = 16 patches per image, T = 17
    img = jax.random.normal(k_img, (B, C, H, W), jnp.float32)

    N = (H // PATCH) * (W // PATCH)
    params = init_params(k_par, C, N)

    fwd = jax.jit(radio_featurizer_forward)
    out = fwd(img, params)
    jax.block_until_ready(out)

    assert out.shape == (B, EMBED, H // PATCH, W // PATCH), out.shape
    assert bool(jnp.all(jnp.isfinite(out))), "non-finite output"

    # pure-JAX reference check (loose tolerance: bf16 matmuls + approx reciprocal)
    x = img.reshape(B, C, H // PATCH, PATCH, W // PATCH, PATCH)
    x = x.transpose(0, 2, 4, 1, 3, 5).reshape(B, N, C * PATCH * PATCH).astype(jnp.bfloat16)
    ref = radio_vit_reference(x, params)
    ref = ref.reshape(B, H // PATCH, W // PATCH, EMBED).transpose(0, 3, 1, 2)
    err = float(jnp.max(jnp.abs(out - ref)))
    assert err < 0.1, f"kernel/reference mismatch: max|err|={err}"

    print("KERNEL_OK")
</pallas_src>

<mosaic_0001>
module attributes {stable_mosaic.version = 11 : i64} {
  func.func @kernel(%arg0: i32, %arg1: i32, %arg2: memref<2x16x768xbf16, #tpu.memory_space<vmem>>, %arg3: memref<768x128xbf16, #tpu.memory_space<vmem>>, %arg4: memref<1x128xf32, #tpu.memory_space<vmem>>, %arg5: memref<16x128xf32, #tpu.memory_space<vmem>>, %arg6: memref<8x128xf32, #tpu.memory_space<vmem>>, %arg7: memref<2x128xf32, #tpu.memory_space<vmem>>, %arg8: memref<1x4x128xf32, #tpu.memory_space<vmem>>, %arg9: memref<1x128x384xbf16, #tpu.memory_space<vmem>>, %arg10: memref<1x1x384xf32, #tpu.memory_space<vmem>>, %arg11: memref<1x128x128xbf16, #tpu.memory_space<vmem>>, %arg12: memref<1x1x128xf32, #tpu.memory_space<vmem>>, %arg13: memref<1x128x512xbf16, #tpu.memory_space<vmem>>, %arg14: memref<1x1x512xf32, #tpu.memory_space<vmem>>, %arg15: memref<1x512x128xbf16, #tpu.memory_space<vmem>>, %arg16: memref<1x1x128xf32, #tpu.memory_space<vmem>>, %arg17: memref<2x16x128xf32, #tpu.memory_space<vmem>>, %arg18: memref<2x24x128xf32, #tpu.memory_space<vmem>>) attributes {dimension_semantics = [#tpu.dimension_semantics<parallel>, #tpu.dimension_semantics<arbitrary>], iteration_bounds = array<i64: 1, 2>, scalar_prefetch = 0 : i64, scratch_operands = 1 : i64, tpu.core_type = #tpu.core_type<tc>, window_params = [{transform_indices = @transform_0, window_bounds = array<i64: 2, 16, 768>}, {pipeline_mode = #tpu.pipeline_mode<synchronous>, transform_indices = @transform_1, window_bounds = array<i64: 768, 128>}, {pipeline_mode = #tpu.pipeline_mode<synchronous>, transform_indices = @transform_2, window_bounds = array<i64: 1, 128>}, {pipeline_mode = #tpu.pipeline_mode<synchronous>, transform_indices = @transform_3, window_bounds = array<i64: 16, 128>}, {pipeline_mode = #tpu.pipeline_mode<synchronous>, transform_indices = @transform_4, window_bounds = array<i64: 8, 128>}, {pipeline_mode = #tpu.pipeline_mode<synchronous>, transform_indices = @transform_5, window_bounds = array<i64: 2, 128>}, {transform_indices = @transform_6, window_bounds = array<i64: 1, 4, 128>}, {transform_indices = @transform_7, window_bounds = array<i64: 1, 128, 384>}, {transform_indices = @transform_8, window_bounds = array<i64: 1, 1, 384>}, {transform_indices = @transform_9, window_bounds = array<i64: 1, 128, 128>}, {transform_indices = @transform_10, window_bounds = array<i64: 1, 1, 128>}, {transform_indices = @transform_11, window_bounds = array<i64: 1, 128, 512>}, {transform_indices = @transform_12, window_bounds = array<i64: 1, 1, 512>}, {transform_indices = @transform_13, window_bounds = array<i64: 1, 512, 128>}, {transform_indices = @transform_14, window_bounds = array<i64: 1, 1, 128>}, {transform_indices = @transform_15, window_bounds = array<i64: 2, 16, 128>}]} {
    %c0_i32 = arith.constant 0 : i32
    %0 = arith.cmpi eq, %arg1, %c0_i32 : i32
    %1 = arith.extui %0 : i1 to i32
    %c0_i32_0 = arith.constant 0 : i32
    %2 = arith.cmpi ne, %1, %c0_i32_0 : i32
    scf.if %2 {
      %c0_65 = arith.constant 0 : index
      %c0_66 = arith.constant 0 : index
      %c0_67 = arith.constant 0 : index
      %169 = vector.load %arg2[%c0_65, %c0_66, %c0_67] : memref<2x16x768xbf16, #tpu.memory_space<vmem>>, vector<2x16x768xbf16>
      %170 = vector.shape_cast %169 : vector<2x16x768xbf16> to vector<32x768xbf16>
      %c0_68 = arith.constant 0 : index
      %c0_69 = arith.constant 0 : index
      %171 = vector.load %arg3[%c0_68, %c0_69] : memref<768x128xbf16, #tpu.memory_space<vmem>>, vector<768x128xbf16>
      %cst_70 = arith.constant dense<0.000000e+00> : vector<32x128xf32>
      %172 = tpu.matmul %170, %171, %cst_70 {dimension_numbers = #tpu.dot_dimension_numbers<[1], [0], [0], [1], [0, 0, 1, 1], [], []>} : vector<32x768xbf16>, vector<768x128xbf16>, vector<32x128xf32> -> vector<32x128xf32>
      %c0_71 = arith.constant 0 : index
      %c0_72 = arith.constant 0 : index
      %173 = vector.load %arg4[%c0_71, %c0_72] : memref<1x128xf32, #tpu.memory_space<vmem>>, vector<1x128xf32>
      %174 = vector.broadcast %173 : vector<1x128xf32> to vector<32x128xf32>
      %175 = arith.addf %172, %174 : vector<32x128xf32>
      %176 = vector.shape_cast %175 : vector<32x128xf32> to vector<2x16x128xf32>
      %c0_73 = arith.constant 0 : index
      %c0_74 = arith.constant 0 : index
      %177 = vector.load %arg5[%c0_73, %c0_74] : memref<16x128xf32, #tpu.memory_space<vmem>>, vector<16x128xf32>
      %178 = vector.shape_cast %177 : vector<16x128xf32> to vector<1x16x128xf32>
      %179 = vector.broadcast %178 : vector<1x16x128xf32> to vector<2x16x128xf32>
      %180 = arith.addf %176, %179 : vector<2x16x128xf32>
      %c0_75 = arith.constant 0 : index
      %c0_76 = arith.constant 0 : index
      %c0_77 = arith.constant 0 : index
      %181 = vector.load %arg18[%c0_75, %c0_76, %c0_77] : memref<2x24x128xf32, #tpu.memory_space<vmem>>, vector<2x16x128xf32>
      tpu.vector_store %arg18[%c0_75, %c0_76, %c0_77], %180 {strides = array<i32>} : memref<2x24x128xf32, #tpu.memory_space<vmem>>, vector<2x16x128xf32>,
      %c0_78 = arith.constant 0 : index
      %c0_79 = arith.constant 0 : index
      %182 = vector.load %arg6[%c0_78, %c0_79] : memref<8x128xf32, #tpu.memory_space<vmem>>, vector<8x128xf32>
      %183 = vector.shape_cast %182 : vector<8x128xf32> to vector<1x8x128xf32>
      %184 = vector.shape_cast %183 : vector<1x8x128xf32> to vector<1x8x128xf32>
      %185 = vector.broadcast %184 : vector<1x8x128xf32> to vector<2x8x128xf32>
      %c0_80 = arith.constant 0 : index
      %c16 = arith.constant 16 : index
      %c0_81 = arith.constant 0 : index
      %186 = vector.load %arg18[%c0_80, %c16, %c0_81] : memref<2x24x128xf32, #tpu.memory_space<vmem>>, vector<2x8x128xf32>
      tpu.vector_store %arg18[%c0_80, %c16, %c0_81], %185 {strides = array<i32>} : memref<2x24x128xf32, #tpu.memory_space<vmem>>, vector<2x8x128xf32>,
    } else {
    }
    %c0 = arith.constant 0 : index
    %c0_1 = arith.constant 0 : index
    %c0_2 = arith.constant 0 : index
    %3 = vector.load %arg18[%c0, %c0_1, %c0_2] : memref<2x24x128xf32, #tpu.memory_space<vmem>>, vector<2x24x128xf32>
    %4 = vector.shape_cast %3 : vector<2x24x128xf32> to vector<48x128xf32>
    %c0_3 = arith.constant 0 : index
    %c0_4 = arith.constant 0 : index
    %c0_5 = arith.constant 0 : index
    %5 = vector.load %arg8[%c0_3, %c0_4, %c0_5] : memref<1x4x128xf32, #tpu.memory_space<vmem>>, vector<1x4x128xf32>
    %6 = vector.shape_cast %5 : vector<1x4x128xf32> to vector<4x128xf32>
    %7 = vector.extract_strided_slice %6 {offsets = [0, 0], sizes = [1, 128], strides = [1, 1]} : vector<4x128xf32> to vector<1x128xf32>
    %8 = vector.extract_strided_slice %6 {offsets = [1, 0], sizes = [1, 128], strides = [1, 1]} : vector<4x128xf32> to vector<1x128xf32>
    %cst = arith.constant dense<0.000000e+00> : vector<48xf32>
    %9 = vector.multi_reduction <add>, %4, %cst [1] : vector<48x128xf32> to vector<48xf32>
    %10 = vector.shape_cast %9 : vector<48xf32> to vector<48x1xf32>
    %cst_6 = arith.constant 1.280000e+02 : f32
    %11 = vector.broadcast %cst_6 : f32 to vector<48x1xf32>
    %12 = arith.divf %10, %11 : vector<48x1xf32>
    %13 = vector.broadcast %12 : vector<48x1xf32> to vector<48x128xf32>
    %14 = arith.subf %4, %13 : vector<48x128xf32>
    %15 = arith.mulf %14, %14 : vector<48x128xf32>
    %cst_7 = arith.constant dense<0.000000e+00> : vector<48xf32>
    %16 = vector.multi_reduction <add>, %15, %cst_7 [1] : vector<48x128xf32> to vector<48xf32>
    %17 = vector.shape_cast %16 : vector<48xf32> to vector<48x1xf32>
    %cst_8 = arith.constant 1.280000e+02 : f32
    %18 = vector.broadcast %cst_8 : f32 to vector<48x1xf32>
    %19 = arith.divf %17, %18 : vector<48x1xf32>
    %20 = vector.broadcast %12 : vector<48x1xf32> to vector<48x128xf32>
    %21 = arith.subf %4, %20 : vector<48x128xf32>
    %cst_9 = arith.constant 9.99999997E-7 : f32
    %22 = vector.broadcast %cst_9 : f32 to vector<48x1xf32>
    %23 = arith.addf %19, %22 : vector<48x1xf32>
    %24 = math.rsqrt %23 : vector<48x1xf32>
    %25 = vector.broadcast %24 : vector<48x1xf32> to vector<48x128xf32>
    %26 = arith.mulf %21, %25 : vector<48x128xf32>
    %27 = vector.broadcast %7 : vector<1x128xf32> to vector<48x128xf32>
    %28 = arith.mulf %26, %27 : vector<48x128xf32>
    %29 = vector.broadcast %8 : vector<1x128xf32> to vector<48x128xf32>
    %30 = arith.addf %28, %29 : vector<48x128xf32>
    %31 = arith.truncf %30 : vector<48x128xf32> to vector<48x128xbf16>
    %c0_10 = arith.constant 0 : index
    %c0_11 = arith.constant 0 : index
    %c0_12 = arith.constant 0 : index
    %32 = vector.load %arg9[%c0_10, %c0_11, %c0_12] : memref<1x128x384xbf16, #tpu.memory_space<vmem>>, vector<1x128x384xbf16>
    %33 = vector.shape_cast %32 : vector<1x128x384xbf16> to vector<128x384xbf16>
    %cst_13 = arith.constant dense<0.000000e+00> : vector<48x384xf32>
    %34 = tpu.matmul %31, %33, %cst_13 {dimension_numbers = #tpu.dot_dimension_numbers<[1], [0], [0], [1], [0, 0, 1, 1], [], []>} : vector<48x128xbf16>, vector<128x384xbf16>, vector<48x384xf32> -> vector<48x384xf32>
    %c0_14 = arith.constant 0 : index
    %c0_15 = arith.constant 0 : index
    %c0_16 = arith.constant 0 : index
    %35 = vector.load %arg10[%c0_14, %c0_15, %c0_16] : memref<1x1x384xf32, #tpu.memory_space<vmem>>, vector<1x1x384xf32>
    %36 = vector.shape_cast %35 : vector<1x1x384xf32> to vector<1x384xf32>
    %37 = vector.broadcast %36 : vector<1x384xf32> to vector<48x384xf32>
    %38 = arith.addf %34, %37 : vector<48x384xf32>
    %39 = vector.shape_cast %38 : vector<48x384xf32> to vector<2x24x384xf32>
    %40 = tpu.iota {dimensions = array<i32: 2>} : vector<1x1x24xi32>
    %c17_i32 = arith.constant 17 : i32
    %41 = vector.broadcast %c17_i32 : i32 to vector<1x1x24xi32>
    %42 = arith.cmpi slt, %40, %41 : vector<1x1x24xi32>
    %cst_17 = arith.constant 0.000000e+00 : f32
    %cst_18 = arith.constant -1.000000e+30 : f32
    %43 = vector.broadcast %cst_17 : f32 to vector<1x1x24xf32>
    %44 = vector.broadcast %cst_18 : f32 to vector<1x1x24xf32>
    %45 = arith.select %42, %43, %44 : vector<1x1x24xi1>, vector<1x1x24xf32>
    %c0_19 = arith.constant 0 : index
    %c0_20 = arith.constant 0 : index
    %c0_21 = arith.constant 0 : index
    %46 = vector.load %arg11[%c0_19, %c0_20, %c0_21] : memref<1x128x128xbf16, #tpu.memory_space<vmem>>, vector<1x128x128xbf16>
    %47 = vector.shape_cast %46 : vector<1x128x128xbf16> to vector<128x128xbf16>
    %cst_22 = arith.constant 0.000000e+00 : f32
    %48 = vector.broadcast %cst_22 : f32 to vector<48x128xf32>
    %49 = vector.extract_strided_slice %39 {offsets = [0, 0, 0], sizes = [2, 24, 64], strides = [1, 1, 1]} : vector<2x24x384xf32> to vector<2x24x64xf32>
    %50 = arith.truncf %49 : vector<2x24x64xf32> to vector<2x24x64xbf16>
    %51 = vector.extract_strided_slice %39 {offsets = [0, 0, 128], sizes = [2, 24, 64], strides = [1, 1, 1]} : vector<2x24x384xf32> to vector<2x24x64xf32>
    %52 = arith.truncf %51 : vector<2x24x64xf32> to vector<2x24x64xbf16>
    %53 = vector.extract_strided_slice %39 {offsets = [0, 0, 256], sizes = [2, 24, 64], strides = [1, 1, 1]} : vector<2x24x384xf32> to vector<2x24x64xf32>
    %54 = arith.truncf %53 : vector<2x24x64xf32> to vector<2x24x64xbf16>
    %cst_23 = arith.constant dense<0.000000e+00> : vector<2x24x24xf32>
    %55 = tpu.matmul %50, %52, %cst_23 {dimension_numbers = #tpu.dot_dimension_numbers<[2], [2], [1], [1], [0, 0, 0, 1, 1, 1], [0], [0]>} : vector<2x24x64xbf16>, vector<2x24x64xbf16>, vector<2x24x24xf32> -> vector<2x24x24xf32>
    %cst_24 = arith.constant 1.250000e-01 : f32
    %56 = vector.broadcast %cst_24 : f32 to vector<2x24x24xf32>
    %57 = arith.mulf %55, %56 : vector<2x24x24xf32>
    %58 = vector.broadcast %45 : vector<1x1x24xf32> to vector<2x24x24xf32>
    %59 = arith.addf %57, %58 : vector<2x24x24xf32>
    %cst_25 = arith.constant dense<0xFF800000> : vector<2x24xf32>
    %60 = vector.multi_reduction <maximumf>, %59, %cst_25 [2] : vector<2x24x24xf32> to vector<2x24xf32>
    %61 = vector.shape_cast %60 : vector<2x24xf32> to vector<2x24x1xf32>
    %62 = vector.broadcast %61 : vector<2x24x1xf32> to vector<2x24x24xf32>
    %63 = arith.subf %59, %62 : vector<2x24x24xf32>
    %64 = math.exp %63 : vector<2x24x24xf32>
    %cst_26 = arith.constant dense<0.000000e+00> : vector<2x24xf32>
    %65 = vector.multi_reduction <add>, %64, %cst_26 [2] : vector<2x24x24xf32> to vector<2x24xf32>
    %66 = vector.shape_cast %65 : vector<2x24xf32> to vector<2x24x1xf32>
    %67 = tpu.reciprocal %66 {approx = true} : vector<2x24x1xf32> -> vector<2x24x1xf32>
    %68 = vector.broadcast %67 : vector<2x24x1xf32> to vector<2x24x24xf32>
    %69 = arith.mulf %64, %68 : vector<2x24x24xf32>
    %70 = arith.truncf %69 : vector<2x24x24xf32> to vector<2x24x24xbf16>
    %cst_27 = arith.constant dense<0.000000e+00> : vector<2x24x64xf32>
    %71 = tpu.matmul %70, %54, %cst_27 {dimension_numbers = #tpu.dot_dimension_numbers<[2], [1], [1], [2], [0, 0, 0, 1, 1, 2], [0], [0]>} : vector<2x24x24xbf16>, vector<2x24x64xbf16>, vector<2x24x64xf32> -> vector<2x24x64xf32>
    %72 = vector.shape_cast %71 : vector<2x24x64xf32> to vector<48x64xf32>
    %73 = arith.truncf %72 : vector<48x64xf32> to vector<48x64xbf16>
    %74 = vector.extract_strided_slice %47 {offsets = [0, 0], sizes = [64, 128], strides = [1, 1]} : vector<128x128xbf16> to vector<64x128xbf16>
    %cst_28 = arith.constant dense<0.000000e+00> : vector<48x128xf32>
    %75 = tpu.matmul %73, %74, %cst_28 {dimension_numbers = #tpu.dot_dimension_numbers<[1], [0], [0], [1], [0, 0, 1, 1], [], []>} : vector<48x64xbf16>, vector<64x128xbf16>, vector<48x128xf32> -> vector<48x128xf32>
    %76 = arith.addf %48, %75 : vector<48x128xf32>
    %77 = vector.extract_strided_slice %39 {offsets = [0, 0, 64], sizes = [2, 24, 64], strides = [1, 1, 1]} : vector<2x24x384xf32> to vector<2x24x64xf32>
    %78 = arith.truncf %77 : vector<2x24x64xf32> to vector<2x24x64xbf16>
    %79 = vector.extract_strided_slice %39 {offsets = [0, 0, 192], sizes = [2, 24, 64], strides = [1, 1, 1]} : vector<2x24x384xf32> to vector<2x24x64xf32>
    %80 = arith.truncf %79 : vector<2x24x64xf32> to vector<2x24x64xbf16>
    %81 = vector.extract_strided_slice %39 {offsets = [0, 0, 320], sizes = [2, 24, 64], strides = [1, 1, 1]} : vector<2x24x384xf32> to vector<2x24x64xf32>
    %82 = arith.truncf %81 : vector<2x24x64xf32> to vector<2x24x64xbf16>
    %cst_29 = arith.constant dense<0.000000e+00> : vector<2x24x24xf32>
    %83 = tpu.matmul %78, %80, %cst_29 {dimension_numbers = #tpu.dot_dimension_numbers<[2], [2], [1], [1], [0, 0, 0, 1, 1, 1], [0], [0]>} : vector<2x24x64xbf16>, vector<2x24x64xbf16>, vector<2x24x24xf32> -> vector<2x24x24xf32>
    %cst_30 = arith.constant 1.250000e-01 : f32
    %84 = vector.broadcast %cst_30 : f32 to vector<2x24x24xf32>
    %85 = arith.mulf %83, %84 : vector<2x24x24xf32>
    %86 = vector.broadcast %45 : vector<1x1x24xf32> to vector<2x24x24xf32>
    %87 = arith.addf %85, %86 : vector<2x24x24xf32>
    %cst_31 = arith.constant dense<0xFF800000> : vector<2x24xf32>
    %88 = vector.multi_reduction <maximumf>, %87, %cst_31 [2] : vector<2x24x24xf32> to vector<2x24xf32>
    %89 = vector.shape_cast %88 : vector<2x24xf32> to vector<2x24x1xf32>
    %90 = vector.broadcast %89 : vector<2x24x1xf32> to vector<2x24x24xf32>
    %91 = arith.subf %87, %90 : vector<2x24x24xf32>
    %92 = math.exp %91 : vector<2x24x24xf32>
    %cst_32 = arith.constant dense<0.000000e+00> : vector<2x24xf32>
    %93 = vector.multi_reduction <add>, %92, %cst_32 [2] : vector<2x24x24xf32> to vector<2x24xf32>
    %94 = vector.shape_cast %93 : vector<2x24xf32> to vector<2x24x1xf32>
    %95 = tpu.reciprocal %94 {approx = true} : vector<2x24x1xf32> -> vector<2x24x1xf32>
    %96 = vector.broadcast %95 : vector<2x24x1xf32> to vector<2x24x24xf32>
    %97 = arith.mulf %92, %96 : vector<2x24x24xf32>
    %98 = arith.truncf %97 : vector<2x24x24xf32> to vector<2x24x24xbf16>
    %cst_33 = arith.constant dense<0.000000e+00> : vector<2x24x64xf32>
    %99 = tpu.matmul %98, %82, %cst_33 {dimension_numbers = #tpu.dot_dimension_numbers<[2], [1], [1], [2], [0, 0, 0, 1, 1, 2], [0], [0]>} : vector<2x24x24xbf16>, vector<2x24x64xbf16>, vector<2x24x64xf32> -> vector<2x24x64xf32>
    %100 = vector.shape_cast %99 : vector<2x24x64xf32> to vector<48x64xf32>
    %101 = arith.truncf %100 : vector<48x64xf32> to vector<48x64xbf16>
    %102 = vector.extract_strided_slice %47 {offsets = [64, 0], sizes = [64, 128], strides = [1, 1]} : vector<128x128xbf16> to vector<64x128xbf16>
    %cst_34 = arith.constant dense<0.000000e+00> : vector<48x128xf32>
    %103 = tpu.matmul %101, %102, %cst_34 {dimension_numbers = #tpu.dot_dimension_numbers<[1], [0], [0], [1], [0, 0, 1, 1], [], []>} : vector<48x64xbf16>, vector<64x128xbf16>, vector<48x128xf32> -> vector<48x128xf32>
    %104 = arith.addf %76, %103 : vector<48x128xf32>
    %105 = arith.addf %4, %104 : vector<48x128xf32>
    %c0_35 = arith.constant 0 : index
    %c0_36 = arith.constant 0 : index
    %c0_37 = arith.constant 0 : index
    %106 = vector.load %arg12[%c0_35, %c0_36, %c0_37] : memref<1x1x128xf32, #tpu.memory_space<vmem>>, vector<1x1x128xf32>
    %107 = vector.shape_cast %106 : vector<1x1x128xf32> to vector<1x128xf32>
    %108 = vector.broadcast %107 : vector<1x128xf32> to vector<48x128xf32>
    %109 = arith.addf %105, %108 : vector<48x128xf32>
    %110 = vector.extract_strided_slice %6 {offsets = [2, 0], sizes = [1, 128], strides = [1, 1]} : vector<4x128xf32> to vector<1x128xf32>
    %111 = vector.extract_strided_slice %6 {offsets = [3, 0], sizes = [1, 128], strides = [1, 1]} : vector<4x128xf32> to vector<1x128xf32>
    %cst_38 = arith.constant dense<0.000000e+00> : vector<48xf32>
    %112 = vector.multi_reduction <add>, %109, %cst_38 [1] : vector<48x128xf32> to vector<48xf32>
    %113 = vector.shape_cast %112 : vector<48xf32> to vector<48x1xf32>
    %cst_39 = arith.constant 1.280000e+02 : f32
    %114 = vector.broadcast %cst_39 : f32 to vector<48x1xf32>
    %115 = arith.divf %113, %114 : vector<48x1xf32>
    %116 = vector.broadcast %115 : vector<48x1xf32> to vector<48x128xf32>
    %117 = arith.subf %109, %116 : vector<48x128xf32>
    %118 = arith.mulf %117, %117 : vector<48x128xf32>
    %cst_40 = arith.constant dense<0.000000e+00> : vector<48xf32>
    %119 = vector.multi_reduction <add>, %118, %cst_40 [1] : vector<48x128xf32> to vector<48xf32>
    %120 = vector.shape_cast %119 : vector<48xf32> to vector<48x1xf32>
    %cst_41 = arith.constant 1.280000e+02 : f32
    %121 = vector.broadcast %cst_41 : f32 to vector<48x1xf32>
    %122 = arith.divf %120, %121 : vector<48x1xf32>
    %123 = vector.broadcast %115 : vector<48x1xf32> to vector<48x128xf32>
    %124 = arith.subf %109, %123 : vector<48x128xf32>
    %cst_42 = arith.constant 9.99999997E-7 : f32
    %125 = vector.broadcast %cst_42 : f32 to vector<48x1xf32>
    %126 = arith.addf %122, %125 : vector<48x1xf32>
    %127 = math.rsqrt %126 : vector<48x1xf32>
    %128 = vector.broadcast %127 : vector<48x1xf32> to vector<48x128xf32>
    %129 = arith.mulf %124, %128 : vector<48x128xf32>
    %130 = vector.broadcast %110 : vector<1x128xf32> to vector<48x128xf32>
    %131 = arith.mulf %129, %130 : vector<48x128xf32>
    %132 = vector.broadcast %111 : vector<1x128xf32> to vector<48x128xf32>
    %133 = arith.addf %131, %132 : vector<48x128xf32>
    %134 = arith.truncf %133 : vector<48x128xf32> to vector<48x128xbf16>
    %c0_43 = arith.constant 0 : index
    %c0_44 = arith.constant 0 : index
    %c0_45 = arith.constant 0 : index
    %135 = vector.load %arg13[%c0_43, %c0_44, %c0_45] : memref<1x128x512xbf16, #tpu.memory_space<vmem>>, vector<1x128x512xbf16>
    %136 = vector.shape_cast %135 : vector<1x128x512xbf16> to vector<128x512xbf16>
    %cst_46 = arith.constant dense<0.000000e+00> : vector<48x512xf32>
    %137 = tpu.matmul %134, %136, %cst_46 {dimension_numbers = #tpu.dot_dimension_numbers<[1], [0], [0], [1], [0, 0, 1, 1], [], []>} : vector<48x128xbf16>, vector<128x512xbf16>, vector<48x512xf32> -> vector<48x512xf32>
    %c0_47 = arith.constant 0 : index
    %c0_48 = arith.constant 0 : index
    %c0_49 = arith.constant 0 : index
    %138 = vector.load %arg14[%c0_47, %c0_48, %c0_49] : memref<1x1x512xf32, #tpu.memory_space<vmem>>, vector<1x1x512xf32>
    %139 = vector.shape_cast %138 : vector<1x1x512xf32> to vector<1x512xf32>
    %140 = vector.broadcast %139 : vector<1x512xf32> to vector<48x512xf32>
    %141 = arith.addf %137, %140 : vector<48x512xf32>
    %142 = arith.mulf %141, %141 : vector<48x512xf32>
    %143 = arith.mulf %141, %142 : vector<48x512xf32>
    %cst_50 = arith.constant 4.471500e-02 : f32
    %144 = vector.broadcast %cst_50 : f32 to vector<48x512xf32>
    %145 = arith.mulf %144, %143 : vector<48x512xf32>
    %146 = arith.addf %141, %145 : vector<48x512xf32>
    %cst_51 = arith.constant 0.797884583 : f32
    %147 = vector.broadcast %cst_51 : f32 to vector<48x512xf32>
    %148 = arith.mulf %147, %146 : vector<48x512xf32>
    %149 = math.tanh %148 : vector<48x512xf32>
    %cst_52 = arith.constant 1.000000e+00 : f32
    %150 = vector.broadcast %cst_52 : f32 to vector<48x512xf32>
    %151 = arith.addf %150, %149 : vector<48x512xf32>
    %cst_53 = arith.constant 5.000000e-01 : f32
    %152 = vector.broadcast %cst_53 : f32 to vector<48x512xf32>
    %153 = arith.mulf %152, %151 : vector<48x512xf32>
    %154 = arith.mulf %141, %153 : vector<48x512xf32>
    %155 = arith.truncf %154 : vector<48x512xf32> to vector<48x512xbf16>
    %c0_54 = arith.constant 0 : index
    %c0_55 = arith.constant 0 : index
    %c0_56 = arith.constant 0 : index
    %156 = vector.load %arg15[%c0_54, %c0_55, %c0_56] : memref<1x512x128xbf16, #tpu.memory_space<vmem>>, vector<1x512x128xbf16>
    %157 = vector.shape_cast %156 : vector<1x512x128xbf16> to vector<512x128xbf16>
    %cst_57 = arith.constant dense<0.000000e+00> : vector<48x128xf32>
    %158 = tpu.matmul %155, %157, %cst_57 {dimension_numbers = #tpu.dot_dimension_numbers<[1], [0], [0], [1], [0, 0, 1, 1], [], []>} : vector<48x512xbf16>, vector<512x128xbf16>, vector<48x128xf32> -> vector<48x128xf32>
    %159 = arith.addf %109, %158 : vector<48x128xf32>
    %c0_58 = arith.constant 0 : index
    %c0_59 = arith.constant 0 : index
    %c0_60 = arith.constant 0 : index
    %160 = vector.load %arg16[%c0_58, %c0_59, %c0_60] : memref<1x1x128xf32, #tpu.memory_space<vmem>>, vector<1x1x128xf32>
    %161 = vector.shape_cast %160 : vector<1x1x128xf32> to vector<1x128xf32>
    %162 = vector.broadcast %161 : vector<1x128xf32> to vector<48x128xf32>
    %163 = arith.addf %159, %162 : vector<48x128xf32>
    %164 = vector.shape_cast %163 : vector<48x128xf32> to vector<2x24x128xf32>
    %c0_61 = arith.constant 0 : index
    %c0_62 = arith.constant 0 : index
    %c0_63 = arith.constant 0 : index
    %165 = vector.load %arg18[%c0_61, %c0_62, %c0_63] : memref<2x24x128xf32, #tpu.memory_space<vmem>>, vector<2x24x128xf32>
    tpu.vector_store %arg18[%c0_61, %c0_62, %c0_63], %164 {strides = array<i32>} : memref<2x24x128xf32, #tpu.memory_space<vmem>>, vector<2x24x128xf32>,
    %c1_i32 = arith.constant 1 : i32
    %166 = arith.cmpi eq, %arg1, %c1_i32 : i32
    %167 = arith.extui %166 : i1 to i32
    %c0_i32_64 = arith.constant 0 : i32
    %168 = arith.cmpi ne, %167, %c0_i32_64 : i32
    scf.if %168 {
      %c0_65 = arith.constant 0 : index
      %c0_66 = arith.constant 0 : index
      %c0_67 = arith.constant 0 : index
      %169 = vector.load %arg18[%c0_65, %c0_66, %c0_67] : memref<2x24x128xf32, #tpu.memory_space<vmem>>, vector<2x16x128xf32>
      %170 = vector.shape_cast %169 : vector<2x16x128xf32> to vector<32x128xf32>
      %c0_68 = arith.constant 0 : index
      %c0_69 = arith.constant 0 : index
      %171 = vector.load %arg7[%c0_68, %c0_69] : memref<2x128xf32, #tpu.memory_space<vmem>>, vector<1x128xf32>
      %c1 = arith.constant 1 : index
      %c0_70 = arith.constant 0 : index
      %172 = vector.load %arg7[%c1, %c0_70] : memref<2x128xf32, #tpu.memory_space<vmem>>, vector<1x128xf32>
      %cst_71 = arith.constant dense<0.000000e+00> : vector<32xf32>
      %173 = vector.multi_reduction <add>, %170, %cst_71 [1] : vector<32x128xf32> to vector<32xf32>
      %174 = vector.shape_cast %173 : vector<32xf32> to vector<32x1xf32>
      %cst_72 = arith.constant 1.280000e+02 : f32
      %175 = vector.broadcast %cst_72 : f32 to vector<32x1xf32>
      %176 = arith.divf %174, %175 : vector<32x1xf32>
      %177 = vector.broadcast %176 : vector<32x1xf32> to vector<32x128xf32>
      %178 = arith.subf %170, %177 : vector<32x128xf32>
      %179 = arith.mulf %178, %178 : vector<32x128xf32>
      %cst_73 = arith.constant dense<0.000000e+00> : vector<32xf32>
      %180 = vector.multi_reduction <add>, %179, %cst_73 [1] : vector<32x128xf32> to vector<32xf32>
      %181 = vector.shape_cast %180 : vector<32xf32> to vector<32x1xf32>
      %cst_74 = arith.constant 1.280000e+02 : f32
      %182 = vector.broadcast %cst_74 : f32 to vector<32x1xf32>
      %183 = arith.divf %181, %182 : vector<32x1xf32>
      %184 = vector.broadcast %176 : vector<32x1xf32> to vector<32x128xf32>
      %185 = arith.subf %170, %184 : vector<32x128xf32>
      %cst_75 = arith.constant 9.99999997E-7 : f32
      %186 = vector.broadcast %cst_75 : f32 to vector<32x1xf32>
      %187 = arith.addf %183, %186 : vector<32x1xf32>
      %188 = math.rsqrt %187 : vector<32x1xf32>
      %189 = vector.broadcast %188 : vector<32x1xf32> to vector<32x128xf32>
      %190 = arith.mulf %185, %189 : vector<32x128xf32>
      %191 = vector.broadcast %171 : vector<1x128xf32> to vector<32x128xf32>
      %192 = arith.mulf %190, %191 : vector<32x128xf32>
      %193 = vector.broadcast %172 : vector<1x128xf32> to vector<32x128xf32>
      %194 = arith.addf %192, %193 : vector<32x128xf32>
      %195 = vector.shape_cast %194 : vector<32x128xf32> to vector<2x16x128xf32>
      %c0_76 = arith.constant 0 : index
      %c0_77 = arith.constant 0 : index
      %c0_78 = arith.constant 0 : index
      %196 = vector.load %arg17[%c0_76, %c0_77, %c0_78] : memref<2x16x128xf32, #tpu.memory_space<vmem>>, vector<2x16x128xf32>
      tpu.vector_store %arg17[%c0_76, %c0_77, %c0_78], %195 {strides = array<i32>} : memref<2x16x128xf32, #tpu.memory_space<vmem>>, vector<2x16x128xf32>,
    } else {
    }
    return
  }
  func.func @transform_0(%arg0: i32, %arg1: i32) -> (i32, i32, i32) {
    %c0_i32 = arith.constant 0 : i32
    %c0_i32_0 = arith.constant 0 : i32
    %c0_i32_1 = arith.constant 0 : i32
    return %arg0, %c0_i32, %c0_i32_0 : i32, i32, i32
  }
  func.func @transform_1(%arg0: i32, %arg1: i32) -> (i32, i32) {
    %c0_i32 = arith.constant 0 : i32
    %c0_i32_0 = arith.constant 0 : i32
    %c0_i32_1 = arith.constant 0 : i32
    return %c0_i32, %c0_i32_0 : i32, i32
  }
  func.func @transform_2(%arg0: i32, %arg1: i32) -> (i32, i32) {
    %c0_i32 = arith.constant 0 : i32
    %c0_i32_0 = arith.constant 0 : i32
    %c0_i32_1 = arith.constant 0 : i32
    return %c0_i32, %c0_i32_0 : i32, i32
  }
  func.func @transform_3(%arg0: i32, %arg1: i32) -> (i32, i32) {
    %c0_i32 = arith.constant 0 : i32
    %c0_i32_0 = arith.constant 0 : i32
    %c0_i32_1 = arith.constant 0 : i32
    return %c0_i32, %c0_i32_0 : i32, i32
  }
  func.func @transform_4(%arg0: i32, %arg1: i32) -> (i32, i32) {
    %c0_i32 = arith.constant 0 : i32
    %c0_i32_0 = arith.constant 0 : i32
    %c0_i32_1 = arith.constant 0 : i32
    return %c0_i32, %c0_i32_0 : i32, i32
  }
  func.func @transform_5(%arg0: i32, %arg1: i32) -> (i32, i32) {
    %c0_i32 = arith.constant 0 : i32
    %c0_i32_0 = arith.constant 0 : i32
    %c0_i32_1 = arith.constant 0 : i32
    return %c0_i32, %c0_i32_0 : i32, i32
  }
  func.func @transform_6(%arg0: i32, %arg1: i32) -> (i32, i32, i32) {
    %c0_i32 = arith.constant 0 : i32
    %c0_i32_0 = arith.constant 0 : i32
    %c0_i32_1 = arith.constant 0 : i32
    return %arg1, %c0_i32, %c0_i32_0 : i32, i32, i32
  }
  func.func @transform_7(%arg0: i32, %arg1: i32) -> (i32, i32, i32) {
    %c0_i32 = arith.constant 0 : i32
    %c0_i32_0 = arith.constant 0 : i32
    %c0_i32_1 = arith.constant 0 : i32
    return %arg1, %c0_i32, %c0_i32_0 : i32, i32, i32
  }
  func.func @transform_8(%arg0: i32, %arg1: i32) -> (i32, i32, i32) {
    %c0_i32 = arith.constant 0 : i32
    %c0_i32_0 = arith.constant 0 : i32
    %c0_i32_1 = arith.constant 0 : i32
    return %arg1, %c0_i32, %c0_i32_0 : i32, i32, i32
  }
  func.func @transform_9(%arg0: i32, %arg1: i32) -> (i32, i32, i32) {
    %c0_i32 = arith.constant 0 : i32
    %c0_i32_0 = arith.constant 0 : i32
    %c0_i32_1 = arith.constant 0 : i32
    return %arg1, %c0_i32, %c0_i32_0 : i32, i32, i32
  }
  func.func @transform_10(%arg0: i32, %arg1: i32) -> (i32, i32, i32) {
    %c0_i32 = arith.constant 0 : i32
    %c0_i32_0 = arith.constant 0 : i32
    %c0_i32_1 = arith.constant 0 : i32
    return %arg1, %c0_i32, %c0_i32_0 : i32, i32, i32
  }
  func.func @transform_11(%arg0: i32, %arg1: i32) -> (i32, i32, i32) {
    %c0_i32 = arith.constant 0 : i32
    %c0_i32_0 = arith.constant 0 : i32
    %c0_i32_1 = arith.constant 0 : i32
    return %arg1, %c0_i32, %c0_i32_0 : i32, i32, i32
  }
  func.func @transform_12(%arg0: i32, %arg1: i32) -> (i32, i32, i32) {
    %c0_i32 = arith.constant 0 : i32
    %c0_i32_0 = arith.constant 0 : i32
    %c0_i32_1 = arith.constant 0 : i32
    return %arg1, %c0_i32, %c0_i32_0 : i32, i32, i32
  }
  func.func @transform_13(%arg0: i32, %arg1: i32) -> (i32, i32, i32) {
    %c0_i32 = arith.constant 0 : i32
    %c0_i32_0 = arith.constant 0 : i32
    %c0_i32_1 = arith.constant 0 : i32
    return %arg1, %c0_i32, %c0_i32_0 : i32, i32, i32
  }
  func.func @transform_14(%arg0: i32, %arg1: i32) -> (i32, i32, i32) {
    %c0_i32 = arith.constant 0 : i32
    %c0_i32_0 = arith.constant 0 : i32
    %c0_i32_1 = arith.constant 0 : i32
    return %arg1, %c0_i32, %c0_i32_0 : i32, i32, i32
  }
  func.func @transform_15(%arg0: i32, %arg1: i32) -> (i32, i32, i32) {
    %c0_i32 = arith.constant 0 : i32
    %c0_i32_0 = arith.constant 0 : i32
    %c0_i32_1 = arith.constant 0 : i32
    return %arg0, %c0_i32, %c0_i32_0 : i32, i32, i32
  }
}

</mosaic_0001>

<llo_original>
// kernel: radio_featurizer_forward.1
$region0: #{radio_featurizer_forward.1}
  #allocation0 [shape = 'u32[]', space=smem, size = 0x4, offset = 0x4, fixed_abs, tag = 'smem constant byte address 0x4 - core index']
  #allocation1 [shape = 'u32[72,128]{1,0:T(1,128)}', space=vmem, size = 0x9000, scoped, tag = 'internal scratch']
  #allocation2 [shape = 'f32[2,24,128]{2,1,0:T(8,128)}', space=vmem, size = 0x6000, scoped, tag = 'scratch operand']
  %s0 = inlined_call_operand.vmem [shape: bf16[2,16,768], index: 0, kind: input, shape index: {}]
  %s1 = inlined_call_operand.vmem [shape: bf16[768,128], index: 1, kind: input, shape index: {}]
  %s2 = inlined_call_operand.vmem [shape: f32[1,128], index: 2, kind: input, shape index: {}]
  %s3 = inlined_call_operand.vmem [shape: f32[16,128], index: 3, kind: input, shape index: {}]
  %s4 = inlined_call_operand.vmem [shape: f32[8,128], index: 4, kind: input, shape index: {}]
  %s5 = inlined_call_operand.vmem [shape: f32[2,128], index: 5, kind: input, shape index: {}]
  %s6 = inlined_call_operand.vmem [shape: f32[2,4,128], index: 6, kind: input, shape index: {}]
  %s7 = inlined_call_operand.vmem [shape: bf16[2,128,384], index: 7, kind: input, shape index: {}]
  %s8 = inlined_call_operand.vmem [shape: f32[2,1,384], index: 8, kind: input, shape index: {}]
  %s9 = inlined_call_operand.vmem [shape: bf16[2,128,128], index: 9, kind: input, shape index: {}]
  %s10 = inlined_call_operand.vmem [shape: f32[2,1,128], index: 10, kind: input, shape index: {}]
  %s11 = inlined_call_operand.vmem [shape: bf16[2,128,512], index: 11, kind: input, shape index: {}]
  %s12 = inlined_call_operand.vmem [shape: f32[2,1,512], index: 12, kind: input, shape index: {}]
  %s13 = inlined_call_operand.vmem [shape: bf16[2,512,128], index: 13, kind: input, shape index: {}]
  %s14 = inlined_call_operand.vmem [shape: f32[2,1,128], index: 14, kind: input, shape index: {}]
  %s15 = inlined_call_operand.hbm [shape: f32[2,16,128], index: 15, kind: output, shape index: {}]
  %s16 = sld [smem:[#allocation0]]
  $region101: #{radio_featurizer_forward.1} parent=0
    _
  %s18 = ssub.s32 1, %s16
  %s19 = scalar_select 0, %s18, %s16
  $region1: #{radio_featurizer_forward.1} parent=0
    #allocation3 [shape = 'u8[16384]{0}', space=vmem, size = 0x4000, scoped, tag = 'output window, operand 0, single buffered']
    #allocation4 [shape = 's32[2]{0}', space=sflag, size = 0x8, scoped, tag = 'scoped memory for radio_featurizer_forward.1']
    %20 = vsyncpa [#allocation4], 0
    loop: start=0, step=1, limit=4
    $region2: #{radio_featurizer_forward.1} parent=1 // loop_pre_header
      _
    $region3: #{radio_featurizer_forward.1} parent=1 // loop_header
      %s22 = sphi 0, %s26
      %p23 = scmp.ge.s32.totalorder %s22, 4
      %s29 = sphi 0, %s41
      %s30 = sphi 0, %s37
      %s31 = sphi 0, %s29
      %s32 = sphi 0, %s30
      %s33 = sphi 0, %s31
      %s34 = sphi 0, %s32
      %s44 = sphi 0, %s46
      %s47 = sphi 0, %s44
      %s48 = sphi 0, %s47
      %s64 = sphi 0, %s48
      %s68 = sphi 0, %s68
      %s70 = sphi 0, %s68
      %s71 = sphi 0, %s70
      %s85 = sphi 0, %s71
      %s89 = sphi 0, %s89
      %s91 = sphi 0, %s89
      %s92 = sphi 0, %s91
      %s106 = sphi 0, %s92
      %s110 = sphi 0, %s110
      %s112 = sphi 0, %s110
      %s113 = sphi 0, %s112
      %s127 = sphi 0, %s113
      %s131 = sphi 0, %s131
      %s133 = sphi 0, %s131
      %s134 = sphi 0, %s133
      %s148 = sphi 0, %s134
      %s152 = sphi 0, %s152
      %s154 = sphi 0, %s152
      %s155 = sphi 0, %s154
      %s169 = sphi 0, %s155
      %s175 = sphi 0, %s177
      %s178 = sphi 0, %s175
      %s179 = sphi 0, %s178
      %s195 = sphi 0, %s179
      %s201 = sphi 0, %s203
      %s204 = sphi 0, %s201
      %s205 = sphi 0, %s204
      %s221 = sphi 0, %s205
      %s227 = sphi 0, %s229
      %s230 = sphi 0, %s227
      %s231 = sphi 0, %s230
      %s247 = sphi 0, %s231
      %s253 = sphi 0, %s255
      %s256 = sphi 0, %s253
      %s257 = sphi 0, %s256
      %s273 = sphi 0, %s257
      %s279 = sphi 0, %s281
      %s282 = sphi 0, %s279
      %s283 = sphi 0, %s282
      %s299 = sphi 0, %s283
      %s305 = sphi 0, %s307
      %s308 = sphi 0, %s305
      %s309 = sphi 0, %s308
      %s325 = sphi 0, %s309
      %s331 = sphi 0, %s333
      %s334 = sphi 0, %s331
      %s335 = sphi 0, %s334
      %s351 = sphi 0, %s335
      %s357 = sphi 0, %s359
      %s360 = sphi 0, %s357
      %s361 = sphi 0, %s360
      %s377 = sphi 0, %s361
      %s383 = sphi 0, %s385
      %s386 = sphi 0, %s383
      %s387 = sphi 0, %s386
      %s403 = sphi 0, %s387
      %s409 = sphi 0, %s411
      %s412 = sphi 0, %s409
      %s413 = sphi 0, %s412
      %s429 = sphi 0, %s413
    $region4: #{radio_featurizer_forward.1} parent=1 // loop_header_branch
      %25 = sbr.rel (%p23) target = $region8
    $region5: #{radio_featurizer_forward.1} parent=1 // loop_body
      %s27 = ssub.s32 %s22, 1
      %s28 = ssub.s32 %s22, 2
      %s35 = sadd.s32 1, %s30
      %p36 = scmp.ge.s32.totalorder %s35, 2
      %s37 = scalar_select %p36, 0, %s35
      %s38 = sadd.s32 1, %s29
      %s39 = scalar_select %p36, %s38, %s29
      %p40 = scmp.ge.s32.totalorder %s39, 1
      %s41 = scalar_select %p40, 0, %s39
      %s42 = ssub.s32 %s29, %s41
      %p43 = scmp.eq.s32.totalorder %s42, 0
      %s45 = sadd.s32 %s44, 1
      %s46 = scalar_select %p43, %s44, %s45
      %p49 = pneg %p43
      %p50 = scmp.eq.s32.totalorder %s22, 1
      %p51 = por %p49, %p50
      %p52 = scmp.ne.s32.totalorder %s44, %s47
      %p53 = scmp.eq.s32.totalorder %s22, 0
      %p54 = por %p52, %p53
      %p55 = scmp.ne.s32.totalorder %s44, %s47
      %p56 = scmp.eq.s32.totalorder %s27, 1
      %p57 = por %p55, %p56
      %p58 = scmp.ne.s32.totalorder %s47, %s48
      %p59 = scmp.eq.s32.totalorder %s27, 0
      %p60 = por %p58, %p59
      %p61 = scmp.ne.s32.totalorder %s47, %s48
      %p62 = scmp.eq.s32.totalorder %s28, 1
      %p63 = por %p61, %p62
      %p65 = scmp.ne.s32.totalorder %s48, %s64
      %p66 = scmp.eq.s32.totalorder %s28, 0
      %p67 = por %p65, %p66
      %s69 = sadd.s32 %s68, 1
      %p72 = scmp.eq.s32.totalorder %s22, 1
      %p73 = scmp.ne.s32.totalorder %s68, %s70
      %p74 = scmp.eq.s32.totalorder %s22, 0
      %p75 = por %p73, %p74
      %p76 = scmp.ne.s32.totalorder %s68, %s70
      %p77 = scmp.eq.s32.totalorder %s27, 1
      %p78 = por %p76, %p77
      %p79 = scmp.ne.s32.totalorder %s70, %s71
      %p80 = scmp.eq.s32.totalorder %s27, 0
      %p81 = por %p79, %p80
      %p82 = scmp.ne.s32.totalorder %s70, %s71
      %p83 = scmp.eq.s32.totalorder %s28, 1
      %p84 = por %p82, %p83
      %p86 = scmp.ne.s32.totalorder %s71, %s85
      %p87 = scmp.eq.s32.totalorder %s28, 0
      %p88 = por %p86, %p87
      %s90 = sadd.s32 %s89, 1
      %p93 = scmp.eq.s32.totalorder %s22, 1
      %p94 = scmp.ne.s32.totalorder %s89, %s91
      %p95 = scmp.eq.s32.totalorder %s22, 0
      %p96 = por %p94, %p95
      %p97 = scmp.ne.s32.totalorder %s89, %s91
      %p98 = scmp.eq.s32.totalorder %s27, 1
      %p99 = por %p97, %p98
      %p100 = scmp.ne.s32.totalorder %s91, %s92
      %p101 = scmp.eq.s32.totalorder %s27, 0
      %p102 = por %p100, %p101
      %p103 = scmp.ne.s32.totalorder %s91, %s92
      %p104 = scmp.eq.s32.totalorder %s28, 1
      %p105 = por %p103, %p104
      %p107 = scmp.ne.s32.totalorder %s92, %s106
      %p108 = scmp.eq.s32.totalorder %s28, 0
      %p109 = por %p107, %p108
      %s111 = sadd.s32 %s110, 1
      %p114 = scmp.eq.s32.totalorder %s22, 1
      %p115 = scmp.ne.s32.totalorder %s110, %s112
      %p116 = scmp.eq.s32.totalorder %s22, 0
      %p117 = por %p115, %p116
      %p118 = scmp.ne.s32.totalorder %s110, %s112
      %p119 = scmp.eq.s32.totalorder %s27, 1
      %p120 = por %p118, %p119
      %p121 = scmp.ne.s32.totalorder %s112, %s113
      %p122 = scmp.eq.s32.totalorder %s27, 0
      %p123 = por %p121, %p122
      %p124 = scmp.ne.s32.totalorder %s112, %s113
      %p125 = scmp.eq.s32.totalorder %s28, 1
      %p126 = por %p124, %p125
      %p128 = scmp.ne.s32.totalorder %s113, %s127
      %p129 = scmp.eq.s32.totalorder %s28, 0
      %p130 = por %p128, %p129
      %s132 = sadd.s32 %s131, 1
      %p135 = scmp.eq.s32.totalorder %s22, 1
      %p136 = scmp.ne.s32.totalorder %s131, %s133
      %p137 = scmp.eq.s32.totalorder %s22, 0
      %p138 = por %p136, %p137
      %p139 = scmp.ne.s32.totalorder %s131, %s133
      %p140 = scmp.eq.s32.totalorder %s27, 1
      %p141 = por %p139, %p140
      %p142 = scmp.ne.s32.totalorder %s133, %s134
      %p143 = scmp.eq.s32.totalorder %s27, 0
      %p144 = por %p142, %p143
      %p145 = scmp.ne.s32.totalorder %s133, %s134
      %p146 = scmp.eq.s32.totalorder %s28, 1
      %p147 = por %p145, %p146
      %p149 = scmp.ne.s32.totalorder %s134, %s148
      %p150 = scmp.eq.s32.totalorder %s28, 0
      %p151 = por %p149, %p150
      %s153 = sadd.s32 %s152, 1
      %p156 = scmp.eq.s32.totalorder %s22, 1
      %p157 = scmp.ne.s32.totalorder %s152, %s154
      %p158 = scmp.eq.s32.totalorder %s22, 0
      %p159 = por %p157, %p158
      %p160 = scmp.ne.s32.totalorder %s152, %s154
      %p161 = scmp.eq.s32.totalorder %s27, 1
      %p162 = por %p160, %p161
      %p163 = scmp.ne.s32.totalorder %s154, %s155
      %p164 = scmp.eq.s32.totalorder %s27, 0
      %p165 = por %p163, %p164
      %p166 = scmp.ne.s32.totalorder %s154, %s155
      %p167 = scmp.eq.s32.totalorder %s28, 1
      %p168 = por %p166, %p167
      %p170 = scmp.ne.s32.totalorder %s155, %s169
      %p171 = scmp.eq.s32.totalorder %s28, 0
      %p172 = por %p170, %p171
      %s173 = ssub.s32 %s30, %s37
      %p174 = scmp.eq.s32.totalorder %s173, 0
      %s176 = sadd.s32 %s175, 1
      %s177 = scalar_select %p174, %s175, %s176
      %p180 = pneg %p174
      %p181 = scmp.eq.s32.totalorder %s22, 1
      %p182 = por %p180, %p181
      %p183 = scmp.ne.s32.totalorder %s175, %s178
      %p184 = scmp.eq.s32.totalorder %s22, 0
      %p185 = por %p183, %p184
      %p186 = scmp.ne.s32.totalorder %s175, %s178
      %p187 = scmp.eq.s32.totalorder %s27, 1
      %p188 = por %p186, %p187
      %p189 = scmp.ne.s32.totalorder %s178, %s179
      %p190 = scmp.eq.s32.totalorder %s27, 0
      %p191 = por %p189, %p190
      %p192 = scmp.ne.s32.totalorder %s178, %s179
      %p193 = scmp.eq.s32.totalorder %s28, 1
      %p194 = por %p192, %p193
      %p196 = scmp.ne.s32.totalorder %s179, %s195
      %p197 = scmp.eq.s32.totalorder %s28, 0
      %p198 = por %p196, %p197
      %s199 = ssub.s32 %s30, %s37
      %p200 = scmp.eq.s32.totalorder %s199, 0
      %s202 = sadd.s32 %s201, 1
      %s203 = scalar_select %p200, %s201, %s202
      %p206 = pneg %p200
      %p207 = scmp.eq.s32.totalorder %s22, 1
      %p208 = por %p206, %p207
      %p209 = scmp.ne.s32.totalorder %s201, %s204
      %p210 = scmp.eq.s32.totalorder %s22, 0
      %p211 = por %p209, %p210
      %p212 = scmp.ne.s32.totalorder %s201, %s204
      %p213 = scmp.eq.s32.totalorder %s27, 1
      %p214 = por %p212, %p213
      %p215 = scmp.ne.s32.totalorder %s204, %s205
      %p216 = scmp.eq.s32.totalorder %s27, 0
      %p217 = por %p215, %p216
      %p218 = scmp.ne.s32.totalorder %s204, %s205
      %p219 = scmp.eq.s32.totalorder %s28, 1
      %p220 = por %p218, %p219
      %p222 = scmp.ne.s32.totalorder %s205, %s221
      %p223 = scmp.eq.s32.totalorder %s28, 0
      %p224 = por %p222, %p223
      %s225 = ssub.s32 %s30, %s37
      %p226 = scmp.eq.s32.totalorder %s225, 0
      %s228 = sadd.s32 %s227, 1
      %s229 = scalar_select %p226, %s227, %s228
      %p232 = pneg %p226
      %p233 = scmp.eq.s32.totalorder %s22, 1
      %p234 = por %p232, %p233
      %p235 = scmp.ne.s32.totalorder %s227, %s230
      %p236 = scmp.eq.s32.totalorder %s22, 0
      %p237 = por %p235, %p236
      %p238 = scmp.ne.s32.totalorder %s227, %s230
      %p239 = scmp.eq.s32.totalorder %s27, 1
      %p240 = por %p238, %p239
      %p241 = scmp.ne.s32.totalorder %s230, %s231
      %p242 = scmp.eq.s32.totalorder %s27, 0
      %p243 = por %p241, %p242
      %p244 = scmp.ne.s32.totalorder %s230, %s231
      %p245 = scmp.eq.s32.totalorder %s28, 1
      %p246 = por %p244, %p245
      %p248 = scmp.ne.s32.totalorder %s231, %s247
      %p249 = scmp.eq.s32.totalorder %s28, 0
      %p250 = por %p248, %p249
      %s251 = ssub.s32 %s30, %s37
      %p252 = scmp.eq.s32.totalorder %s251, 0
      %s254 = sadd.s32 %s253, 1
      %s255 = scalar_select %p252, %s253, %s254
      %p258 = pneg %p252
      %p259 = scmp.eq.s32.totalorder %s22, 1
      %p260 = por %p258, %p259
      %p261 = scmp.ne.s32.totalorder %s253, %s256
      %p262 = scmp.eq.s32.totalorder %s22, 0
      %p263 = por %p261, %p262
      %p264 = scmp.ne.s32.totalorder %s253, %s256
      %p265 = scmp.eq.s32.totalorder %s27, 1
      %p266 = por %p264, %p265
      %p267 = scmp.ne.s32.totalorder %s256, %s257
      %p268 = scmp.eq.s32.totalorder %s27, 0
      %p269 = por %p267, %p268
      %p270 = scmp.ne.s32.totalorder %s256, %s257
      %p271 = scmp.eq.s32.totalorder %s28, 1
      %p272 = por %p270, %p271
      %p274 = scmp.ne.s32.totalorder %s257, %s273
      %p275 = scmp.eq.s32.totalorder %s28, 0
      %p276 = por %p274, %p275
      %s277 = ssub.s32 %s30, %s37
      %p278 = scmp.eq.s32.totalorder %s277, 0
      %s280 = sadd.s32 %s279, 1
      %s281 = scalar_select %p278, %s279, %s280
      %p284 = pneg %p278
      %p285 = scmp.eq.s32.totalorder %s22, 1
      %p286 = por %p284, %p285
      %p287 = scmp.ne.s32.totalorder %s279, %s282
      %p288 = scmp.eq.s32.totalorder %s22, 0
      %p289 = por %p287, %p288
      %p290 = scmp.ne.s32.totalorder %s279, %s282
      %p291 = scmp.eq.s32.totalorder %s27, 1
      %p292 = por %p290, %p291
      %p293 = scmp.ne.s32.totalorder %s282, %s283
      %p294 = scmp.eq.s32.totalorder %s27, 0
      %p295 = por %p293, %p294
      %p296 = scmp.ne.s32.totalorder %s282, %s283
      %p297 = scmp.eq.s32.totalorder %s28, 1
      %p298 = por %p296, %p297
      %p300 = scmp.ne.s32.totalorder %s283, %s299
      %p301 = scmp.eq.s32.totalorder %s28, 0
      %p302 = por %p300, %p301
      %s303 = ssub.s32 %s30, %s37
      %p304 = scmp.eq.s32.totalorder %s303, 0
      %s306 = sadd.s32 %s305, 1
      %s307 = scalar_select %p304, %s305, %s306
      %p310 = pneg %p304
      %p311 = scmp.eq.s32.totalorder %s22, 1
      %p312 = por %p310, %p311
      %p313 = scmp.ne.s32.totalorder %s305, %s308
      %p314 = scmp.eq.s32.totalorder %s22, 0
      %p315 = por %p313, %p314
      %p316 = scmp.ne.s32.totalorder %s305, %s308
      %p317 = scmp.eq.s32.totalorder %s27, 1
      %p318 = por %p316, %p317
      %p319 = scmp.ne.s32.totalorder %s308, %s309
      %p320 = scmp.eq.s32.totalorder %s27, 0
      %p321 = por %p319, %p320
      %p322 = scmp.ne.s32.totalorder %s308, %s309
      %p323 = scmp.eq.s32.totalorder %s28, 1
      %p324 = por %p322, %p323
      %p326 = scmp.ne.s32.totalorder %s309, %s325
      %p327 = scmp.eq.s32.totalorder %s28, 0
      %p328 = por %p326, %p327
      %s329 = ssub.s32 %s30, %s37
      %p330 = scmp.eq.s32.totalorder %s329, 0
      %s332 = sadd.s32 %s331, 1
      %s333 = scalar_select %p330, %s331, %s332
      %p336 = pneg %p330
      %p337 = scmp.eq.s32.totalorder %s22, 1
      %p338 = por %p336, %p337
      %p339 = scmp.ne.s32.totalorder %s331, %s334
      %p340 = scmp.eq.s32.totalorder %s22, 0
      %p341 = por %p339, %p340
      %p342 = scmp.ne.s32.totalorder %s331, %s334
      %p343 = scmp.eq.s32.totalorder %s27, 1
      %p344 = por %p342, %p343
      %p345 = scmp.ne.s32.totalorder %s334, %s335
      %p346 = scmp.eq.s32.totalorder %s27, 0
      %p347 = por %p345, %p346
      %p348 = scmp.ne.s32.totalorder %s334, %s335
      %p349 = scmp.eq.s32.totalorder %s28, 1
      %p350 = por %p348, %p349
      %p352 = scmp.ne.s32.totalorder %s335, %s351
      %p353 = scmp.eq.s32.totalorder %s28, 0
      %p354 = por %p352, %p353
      %s355 = ssub.s32 %s30, %s37
      %p356 = scmp.eq.s32.totalorder %s355, 0
      %s358 = sadd.s32 %s357, 1
      %s359 = scalar_select %p356, %s357, %s358
      %p362 = pneg %p356
      %p363 = scmp.eq.s32.totalorder %s22, 1
      %p364 = por %p362, %p363
      %p365 = scmp.ne.s32.totalorder %s357, %s360
      %p366 = scmp.eq.s32.totalorder %s22, 0
      %p367 = por %p365, %p366
      %p368 = scmp.ne.s32.totalorder %s357, %s360
      %p369 = scmp.eq.s32.totalorder %s27, 1
      %p370 = por %p368, %p369
      %p371 = scmp.ne.s32.totalorder %s360, %s361
      %p372 = scmp.eq.s32.totalorder %s27, 0
      %p373 = por %p371, %p372
      %p374 = scmp.ne.s32.totalorder %s360, %s361
      %p375 = scmp.eq.s32.totalorder %s28, 1
      %p376 = por %p374, %p375
      %p378 = scmp.ne.s32.totalorder %s361, %s377
      %p379 = scmp.eq.s32.totalorder %s28, 0
      %p380 = por %p378, %p379
      %s381 = ssub.s32 %s30, %s37
      %p382 = scmp.eq.s32.totalorder %s381, 0
      %s384 = sadd.s32 %s383, 1
      %s385 = scalar_select %p382, %s383, %s384
      %p388 = pneg %p382
      %p389 = scmp.eq.s32.totalorder %s22, 1
      %p390 = por %p388, %p389
      %p391 = scmp.ne.s32.totalorder %s383, %s386
      %p392 = scmp.eq.s32.totalorder %s22, 0
      %p393 = por %p391, %p392
      %p394 = scmp.ne.s32.totalorder %s383, %s386
      %p395 = scmp.eq.s32.totalorder %s27, 1
      %p396 = por %p394, %p395
      %p397 = scmp.ne.s32.totalorder %s386, %s387
      %p398 = scmp.eq.s32.totalorder %s27, 0
      %p399 = por %p397, %p398
      %p400 = scmp.ne.s32.totalorder %s386, %s387
      %p401 = scmp.eq.s32.totalorder %s28, 1
      %p402 = por %p400, %p401
      %p404 = scmp.ne.s32.totalorder %s387, %s403
      %p405 = scmp.eq.s32.totalorder %s28, 0
      %p406 = por %p404, %p405
      %s407 = ssub.s32 %s29, %s41
      %p408 = scmp.eq.s32.totalorder %s407, 0
      %s410 = sadd.s32 %s409, 1
      %s411 = scalar_select %p408, %s409, %s410
      %p414 = pneg %p408
      %p415 = scmp.eq.s32.totalorder %s22, 1
      %p416 = por %p414, %p415
      %p417 = scmp.ne.s32.totalorder %s409, %s412
      %p418 = scmp.eq.s32.totalorder %s22, 0
      %p419 = por %p417, %p418
      %p420 = scmp.ne.s32.totalorder %s409, %s412
      %p421 = scmp.eq.s32.totalorder %s27, 1
      %p422 = por %p420, %p421
      %p423 = scmp.ne.s32.totalorder %s412, %s413
      %p424 = scmp.eq.s32.totalorder %s27, 0
      %p425 = por %p423, %p424
      %p426 = scmp.ne.s32.totalorder %s412, %s413
      %p427 = scmp.eq.s32.totalorder %s28, 1
      %p428 = por %p426, %p427
      %p430 = scmp.ne.s32.totalorder %s413, %s429
      %p431 = scmp.eq.s32.totalorder %s28, 0
      %p432 = por %p430, %p431
      %p433 = scmp.le.s32.totalorder 1, %s22
      %p434 = scmp.lt.s32.totalorder %s22, 3
      %p435 = pnand %p433, %p434
      %p436 = pneg %p435
      // Predicated region
      $region9: #{radio_featurizer_forward.1} parent=5 // pred_check
        _
      $region10: #{radio_featurizer_forward.1} parent=5 // pred_check_branch
        %438 = sbr.rel (%p435) target = $region12
      $region11: #{radio_featurizer_forward.1} parent=5 // pred_region
        %s439 = ssub.s32 %s22, 1
        // Predicated region
        $region13: #{radio_featurizer_forward.1} parent=11 // pred_check
          %p440 = pneg %p60
        $region14: #{radio_featurizer_forward.1} parent=11 // pred_check_branch
          %442 = sbr.rel (%p440) target = $region16
        $region15: #{radio_featurizer_forward.1} parent=11 // pred_region
          %s443 = smul.u32 2, %s31
          %p444 = scmp.lt.s32.totalorder %s443, 1
          %s445 = scalar_select %p444, %s443, 1
          %s446 = smul.addr %s445, 12
          %s447 = smul.addr %s446, 4
          %s448 = scalar_lea.vmem %s0, %s447
          %s449 = smul.u32 2, %s31
        $region16: #{radio_featurizer_forward.1} parent=11 // pred_fallthru
          _
        // Predicated region
        $region17: #{radio_featurizer_forward.1} parent=11 // pred_check
          %p450 = pneg %p81
        $region18: #{radio_featurizer_forward.1} parent=11 // pred_check_branch
          %452 = sbr.rel (%p450) target = $region20
        $region19: #{radio_featurizer_forward.1} parent=11 // pred_region
          _
        $region20: #{radio_featurizer_forward.1} parent=11 // pred_fallthru
          _
        // Predicated region
        $region21: #{radio_featurizer_forward.1} parent=11 // pred_check
          %p453 = pneg %p102
        $region22: #{radio_featurizer_forward.1} parent=11 // pred_check_branch
          %455 = sbr.rel (%p453) target = $region24
        $region23: #{radio_featurizer_forward.1} parent=11 // pred_region
          _
        $region24: #{radio_featurizer_forward.1} parent=11 // pred_fallthru
          _
        // Predicated region
        $region25: #{radio_featurizer_forward.1} parent=11 // pred_check
          %p456 = pneg %p123
        $region26: #{radio_featurizer_forward.1} parent=11 // pred_check_branch
          %458 = sbr.rel (%p456) target = $region28
        $region27: #{radio_featurizer_forward.1} parent=11 // pred_region
          _
        $region28: #{radio_featurizer_forward.1} parent=11 // pred_fallthru
          _
        // Predicated region
        $region29: #{radio_featurizer_forward.1} parent=11 // pred_check
          %p459 = pneg %p144
        $region30: #{radio_featurizer_forward.1} parent=11 // pred_check_branch
          %461 = sbr.rel (%p459) target = $region32
        $region31: #{radio_featurizer_forward.1} parent=11 // pred_region
          _
        $region32: #{radio_featurizer_forward.1} parent=11 // pred_fallthru
          _
        // Predicated region
        $region33: #{radio_featurizer_forward.1} parent=11 // pred_check
          %p462 = pneg %p165
        $region34: #{radio_featurizer_forward.1} parent=11 // pred_check_branch
          %464 = sbr.rel (%p462) target = $region36
        $region35: #{radio_featurizer_forward.1} parent=11 // pred_region
          _
        $region36: #{radio_featurizer_forward.1} parent=11 // pred_fallthru
          _
      $region12: #{radio_featurizer_forward.1} parent=5 // pred_fallthru
        _
      %p465 = scmp.lt.s32.totalorder %s22, 2
      // Predicated region
      $region37: #{radio_featurizer_forward.1} parent=5 // pred_check
        %p466 = pneg %p465
      $region38: #{radio_featurizer_forward.1} parent=5 // pred_check_branch
        %468 = sbr.rel (%p466) target = $region40
      $region39: #{radio_featurizer_forward.1} parent=5 // pred_region
        // Predicated region
        $region41: #{radio_featurizer_forward.1} parent=39 // pred_check
          %p469 = pneg %p185
        $region42: #{radio_featurizer_forward.1} parent=39 // pred_check_branch
          %471 = sbr.rel (%p469) target = $region44
        $region43: #{radio_featurizer_forward.1} parent=39 // pred_region
          %p472 = scmp.lt.s32.totalorder %s30, 1
          %s473 = scalar_select %p472, %s30, 1
          %s474 = smul.addr %s473, 4
          %s475 = scalar_lea.vmem %s6, %s474
        $region44: #{radio_featurizer_forward.1} parent=39 // pred_fallthru
          _
        // Predicated region
        $region45: #{radio_featurizer_forward.1} parent=39 // pred_check
          %p476 = pneg %p211
        $region46: #{radio_featurizer_forward.1} parent=39 // pred_check_branch
          %478 = sbr.rel (%p476) target = $region48
        $region47: #{radio_featurizer_forward.1} parent=39 // pred_region
          %p479 = scmp.lt.s32.totalorder %s30, 1
          %s480 = scalar_select %p479, %s30, 1
          %s481 = smul.addr %s480, 48
          %s482 = smul.addr %s481, 4
          %s483 = scalar_lea.vmem %s7, %s482
        $region48: #{radio_featurizer_forward.1} parent=39 // pred_fallthru
          _
        // Predicated region
        $region49: #{radio_featurizer_forward.1} parent=39 // pred_check
          %p484 = pneg %p237
        $region50: #{radio_featurizer_forward.1} parent=39 // pred_check_branch
          %486 = sbr.rel (%p484) target = $region52
        $region51: #{radio_featurizer_forward.1} parent=39 // pred_region
          %p487 = scmp.lt.s32.totalorder %s30, 1
          %s488 = scalar_select %p487, %s30, 1
          %s489 = smul.addr %s488, 3
          %s490 = scalar_lea.vmem %s8, %s489
        $region52: #{radio_featurizer_forward.1} parent=39 // pred_fallthru
          _
        // Predicated region
        $region53: #{radio_featurizer_forward.1} parent=39 // pred_check
          %p491 = pneg %p263
        $region54: #{radio_featurizer_forward.1} parent=39 // pred_check_branch
          %493 = sbr.rel (%p491) target = $region56
        $region55: #{radio_featurizer_forward.1} parent=39 // pred_region
          %p494 = scmp.lt.s32.totalorder %s30, 1
          %s495 = scalar_select %p494, %s30, 1
          %s496 = smul.addr %s495, 16
          %s497 = smul.addr %s496, 4
          %s498 = scalar_lea.vmem %s9, %s497
        $region56: #{radio_featurizer_forward.1} parent=39 // pred_fallthru
          _
        // Predicated region
        $region57: #{radio_featurizer_forward.1} parent=39 // pred_check
          %p499 = pneg %p289
        $region58: #{radio_featurizer_forward.1} parent=39 // pred_check_branch
          %501 = sbr.rel (%p499) target = $region60
        $region59: #{radio_featurizer_forward.1} parent=39 // pred_region
          %p502 = scmp.lt.s32.totalorder %s30, 1
          %s503 = scalar_select %p502, %s30, 1
          %s504 = scalar_lea.vmem %s10, %s503
        $region60: #{radio_featurizer_forward.1} parent=39 // pred_fallthru
          _
        // Predicated region
        $region61: #{radio_featurizer_forward.1} parent=39 // pred_check
          %p505 = pneg %p315
        $region62: #{radio_featurizer_forward.1} parent=39 // pred_check_branch
          %507 = sbr.rel (%p505) target = $region64
        $region63: #{radio_featurizer_forward.1} parent=39 // pred_region
          %p508 = scmp.lt.s32.totalorder %s30, 1
          %s509 = scalar_select %p508, %s30, 1
          %s510 = smul.addr %s509, 64
          %s511 = smul.addr %s510, 4
          %s512 = scalar_lea.vmem %s11, %s511
        $region64: #{radio_featurizer_forward.1} parent=39 // pred_fallthru
          _
        // Predicated region
        $region65: #{radio_featurizer_forward.1} parent=39 // pred_check
          %p513 = pneg %p341
        $region66: #{radio_featurizer_forward.1} parent=39 // pred_check_branch
          %515 = sbr.rel (%p513) target = $region68
        $region67: #{radio_featurizer_forward.1} parent=39 // pred_region
          %p516 = scmp.lt.s32.totalorder %s30, 1
          %s517 = scalar_select %p516, %s30, 1
          %s518 = smul.addr %s517, 4
          %s519 = scalar_lea.vmem %s12, %s518
        $region68: #{radio_featurizer_forward.1} parent=39 // pred_fallthru
          _
        // Predicated region
        $region69: #{radio_featurizer_forward.1} parent=39 // pred_check
          %p520 = pneg %p367
        $region70: #{radio_featurizer_forward.1} parent=39 // pred_check_branch
          %522 = sbr.rel (%p520) target = $region72
        $region71: #{radio_featurizer_forward.1} parent=39 // pred_region
          %p523 = scmp.lt.s32.totalorder %s30, 1
          %s524 = scalar_select %p523, %s30, 1
          %s525 = smul.addr %s524, 64
          %s526 = smul.addr %s525, 4
          %s527 = scalar_lea.vmem %s13, %s526
        $region72: #{radio_featurizer_forward.1} parent=39 // pred_fallthru
          _
        // Predicated region
        $region73: #{radio_featurizer_forward.1} parent=39 // pred_check
          %p528 = pneg %p393
        $region74: #{radio_featurizer_forward.1} parent=39 // pred_check_branch
          %530 = sbr.rel (%p528) target = $region76
        $region75: #{radio_featurizer_forward.1} parent=39 // pred_region
          %p531 = scmp.lt.s32.totalorder %s30, 1
          %s532 = scalar_select %p531, %s30, 1
          %s533 = scalar_lea.vmem %s14, %s532
        $region76: #{radio_featurizer_forward.1} parent=39 // pred_fallthru
          _
      $region40: #{radio_featurizer_forward.1} parent=5 // pred_fallthru
        _
      %p534 = scmp.le.s32.totalorder 1, %s22
      %p535 = scmp.lt.s32.totalorder %s22, 3
      %p536 = pnand %p534, %p535
      %p537 = pneg %p536
      // Predicated region
      $region77: #{radio_featurizer_forward.1} parent=5 // pred_check
        _
      $region78: #{radio_featurizer_forward.1} parent=5 // pred_check_branch
        %539 = sbr.rel (%p536) target = $region80
      $region79: #{radio_featurizer_forward.1} parent=5 // pred_region
        %s540 = ssub.s32 %s22, 1
        %s541 = smul.u32 2, %s31
        %p542 = scmp.lt.s32.totalorder %s541, 1
        %s543 = scalar_select %p542, %s541, 1
        %s544 = smul.addr %s543, 12
        %s545 = smul.addr %s544, 4
        %s546 = scalar_lea.vmem %s0, %s545
        %p547 = pneg %p60
        %p548 = pneg %p57
        %p549 = pneg %p81
        %p550 = pneg %p78
        %p551 = pneg %p102
        %p552 = pneg %p99
        %p553 = pneg %p123
        %p554 = pneg %p120
        %p555 = pneg %p144
        %p556 = pneg %p141
        %p557 = pneg %p165
        %p558 = pneg %p162
        %p559 = scmp.lt.s32.totalorder %s32, 1
        %s560 = scalar_select %p559, %s32, 1
        %s561 = smul.addr %s560, 4
        %s562 = scalar_lea.vmem %s6, %s561
        %p563 = pneg %p191
        %p564 = pneg %p188
        %p565 = scmp.lt.s32.totalorder %s32, 1
        %s566 = scalar_select %p565, %s32, 1
        %s567 = smul.addr %s566, 48
        %s568 = smul.addr %s567, 4
        %s569 = scalar_lea.vmem %s7, %s568
        %p570 = pneg %p217
        %p571 = pneg %p214
        %p572 = scmp.lt.s32.totalorder %s32, 1
        %s573 = scalar_select %p572, %s32, 1
        %s574 = smul.addr %s573, 3
        %s575 = scalar_lea.vmem %s8, %s574
        %p576 = pneg %p243
        %p577 = pneg %p240
        %p578 = scmp.lt.s32.totalorder %s32, 1
        %s579 = scalar_select %p578, %s32, 1
        %s580 = smul.addr %s579, 16
        %s581 = smul.addr %s580, 4
        %s582 = scalar_lea.vmem %s9, %s581
        %p583 = pneg %p269
        %p584 = pneg %p266
        %p585 = scmp.lt.s32.totalorder %s32, 1
        %s586 = scalar_select %p585, %s32, 1
        %s587 = scalar_lea.vmem %s10, %s586
        %p588 = pneg %p295
        %p589 = pneg %p292
        %p590 = scmp.lt.s32.totalorder %s32, 1
        %s591 = scalar_select %p590, %s32, 1
        %s592 = smul.addr %s591, 64
        %s593 = smul.addr %s592, 4
        %s594 = scalar_lea.vmem %s11, %s593
        %p595 = pneg %p321
        %p596 = pneg %p318
        %p597 = scmp.lt.s32.totalorder %s32, 1
        %s598 = scalar_select %p597, %s32, 1
        %s599 = smul.addr %s598, 4
        %s600 = scalar_lea.vmem %s12, %s599
        %p601 = pneg %p347
        %p602 = pneg %p344
        %p603 = scmp.lt.s32.totalorder %s32, 1
        %s604 = scalar_select %p603, %s32, 1
        %s605 = smul.addr %s604, 64
        %s606 = smul.addr %s605, 4
        %s607 = scalar_lea.vmem %s13, %s606
        %p608 = pneg %p373
        %p609 = pneg %p370
        %p610 = scmp.lt.s32.totalorder %s32, 1
        %s611 = scalar_select %p610, %s32, 1
        %s612 = scalar_lea.vmem %s14, %s611
        %p613 = pneg %p399
        %p614 = pneg %p396
        %p615 = pneg %p425
        %p616 = pneg %p422
        %s617 = smul.u32 2, %s31
        %p618 = scmp.lt.s32.totalorder %s617, 1
        %s619 = scalar_select %p618, %s617, 1
        %s620 = smul.addr %s619, 12
        %s621 = smul.addr %s620, 4
        %s622 = scalar_lea.vmem %s0, %s621
        %s623 = smul.u32 2, %s31
        %p624 = scmp.lt.s32.totalorder %s32, 1
        %s625 = scalar_select %p624, %s32, 1
        %s626 = smul.addr %s625, 4
        %s627 = scalar_lea.vmem %s6, %s626
        %p628 = scmp.lt.s32.totalorder %s32, 1
        %s629 = scalar_select %p628, %s32, 1
        %s630 = smul.addr %s629, 48
        %s631 = smul.addr %s630, 4
        %s632 = scalar_lea.vmem %s7, %s631
        %p633 = scmp.lt.s32.totalorder %s32, 1
        %s634 = scalar_select %p633, %s32, 1
        %s635 = smul.addr %s634, 3
        %s636 = scalar_lea.vmem %s8, %s635
        %p637 = scmp.lt.s32.totalorder %s32, 1
        %s638 = scalar_select %p637, %s32, 1
        %s639 = smul.addr %s638, 16
        %s640 = smul.addr %s639, 4
        %s641 = scalar_lea.vmem %s9, %s640
        %p642 = scmp.lt.s32.totalorder %s32, 1
        %s643 = scalar_select %p642, %s32, 1
        %s644 = scalar_lea.vmem %s10, %s643
        %p645 = scmp.lt.s32.totalorder %s32, 1
        %s646 = scalar_select %p645, %s32, 1
        %s647 = smul.addr %s646, 64
        %s648 = smul.addr %s647, 4
        %s649 = scalar_lea.vmem %s11, %s648
        %p650 = scmp.lt.s32.totalorder %s32, 1
        %s651 = scalar_select %p650, %s32, 1
        %s652 = smul.addr %s651, 4
        %s653 = scalar_lea.vmem %s12, %s652
        %p654 = scmp.lt.s32.totalorder %s32, 1
        %s655 = scalar_select %p654, %s32, 1
        %s656 = smul.addr %s655, 64
        %s657 = smul.addr %s656, 4
        %s658 = scalar_lea.vmem %s13, %s657
        %p659 = scmp.lt.s32.totalorder %s32, 1
        %s660 = scalar_select %p659, %s32, 1
        %s661 = scalar_lea.vmem %s14, %s660
        %s662 = smul.u32 2, %s31
        %p664 = scmp.eq.s32.totalorder %s32, 0
        // Predicated region
        $region81: #{radio_featurizer_forward.1} parent=79 // pred_check
          %p665 = pneg %p664
        $region82: #{radio_featurizer_forward.1} parent=79 // pred_check_branch
          %667 = sbr.rel (%p665) target = $region84
        $region83: #{radio_featurizer_forward.1} parent=79 // pred_region
          %v668 = vld [vmem:[%s622] sm:$0xff]
          %v669 = vld [vmem:[%s622 + $0x8] sm:$0xff]
          %v670 = vld [vmem:[%s622 + $0x10] sm:$0xff]
          %v671 = vld [vmem:[%s622 + $0x18] sm:$0xff]
          %v672 = vld [vmem:[%s622 + $0x20] sm:$0xff]
          %v673 = vld [vmem:[%s622 + $0x28] sm:$0xff]
          %v674 = vld [vmem:[%s622 + $0x30] sm:$0xff]
          %v675 = vld [vmem:[%s622 + $0x38] sm:$0xff]
          %v676 = vld [vmem:[%s622 + $0x40] sm:$0xff]
          %v677 = vld [vmem:[%s622 + $0x48] sm:$0xff]
          %v678 = vld [vmem:[%s622 + $0x50] sm:$0xff]
          %v679 = vld [vmem:[%s622 + $0x58] sm:$0xff]
          %v680 = vld [vmem:[%s1] sm:$0xf]
          %v681 = vld [vmem:[%s1 + $0x4] sm:$0xf]
          %v682 = vld [vmem:[%s1 + $0x8] sm:$0xf]
          %v683 = vld [vmem:[%s1 + $0xc] sm:$0xf]
          %v684 = vld [vmem:[%s1 + $0x10] sm:$0xf]
          %v685 = vld [vmem:[%s1 + $0x14] sm:$0xf]
          %v686 = vld [vmem:[%s1 + $0x18] sm:$0xf]
          %v687 = vld [vmem:[%s1 + $0x1c] sm:$0xf]
          %v688 = vld [vmem:[%s1 + $0x20] sm:$0xf]
          %v689 = vld [vmem:[%s1 + $0x24] sm:$0xf]
          %v690 = vld [vmem:[%s1 + $0x28] sm:$0xf]
          %v691 = vld [vmem:[%s1 + $0x2c] sm:$0xf]
          %v692 = vld [vmem:[%s1 + $0x30] sm:$0xf]
          %v693 = vld [vmem:[%s1 + $0x34] sm:$0xf]
          %v694 = vld [vmem:[%s1 + $0x38] sm:$0xf]
          %v695 = vld [vmem:[%s1 + $0x3c] sm:$0xf]
          %v696 = vld [vmem:[%s1 + $0x40] sm:$0xf]
          %v697 = vld [vmem:[%s1 + $0x44] sm:$0xf]
          %v698 = vld [vmem:[%s1 + $0x48] sm:$0xf]
          %v699 = vld [vmem:[%s1 + $0x4c] sm:$0xf]
          %v700 = vld [vmem:[%s1 + $0x50] sm:$0xf]
          %v701 = vld [vmem:[%s1 + $0x54] sm:$0xf]
          %v702 = vld [vmem:[%s1 + $0x58] sm:$0xf]
          %v703 = vld [vmem:[%s1 + $0x5c] sm:$0xf]
          %v704 = vld [vmem:[%s1 + $0x60] sm:$0xf]
          %v705 = vld [vmem:[%s1 + $0x64] sm:$0xf]
          %v706 = vld [vmem:[%s1 + $0x68] sm:$0xf]
          %v707 = vld [vmem:[%s1 + $0x6c] sm:$0xf]
          %v708 = vld [vmem:[%s1 + $0x70] sm:$0xf]
          %v709 = vld [vmem:[%s1 + $0x74] sm:$0xf]
          %v710 = vld [vmem:[%s1 + $0x78] sm:$0xf]
          %v711 = vld [vmem:[%s1 + $0x7c] sm:$0xf]
          %v712 = vld [vmem:[%s1 + $0x80] sm:$0xf]
          %v713 = vld [vmem:[%s1 + $0x84] sm:$0xf]
          %v714 = vld [vmem:[%s1 + $0x88] sm:$0xf]
          %v715 = vld [vmem:[%s1 + $0x8c] sm:$0xf]
          %v716 = vld [vmem:[%s1 + $0x90] sm:$0xf]
          %v717 = vld [vmem:[%s1 + $0x94] sm:$0xf]
          %v718 = vld [vmem:[%s1 + $0x98] sm:$0xf]
          %v719 = vld [vmem:[%s1 + $0x9c] sm:$0xf]
          %v720 = vld [vmem:[%s1 + $0xa0] sm:$0xf]
          %v721 = vld [vmem:[%s1 + $0xa4] sm:$0xf]
          %v722 = vld [vmem:[%s1 + $0xa8] sm:$0xf]
          %v723 = vld [vmem:[%s1 + $0xac] sm:$0xf]
          %v724 = vld [vmem:[%s1 + $0xb0] sm:$0xf]
          %v725 = vld [vmem:[%s1 + $0xb4] sm:$0xf]
          %v726 = vld [vmem:[%s1 + $0xb8] sm:$0xf]
          %v727 = vld [vmem:[%s1 + $0xbc] sm:$0xf]
          %v728 = vld [vmem:[%s1 + $0xc0] sm:$0xf]
          %v729 = vld [vmem:[%s1 + $0xc4] sm:$0xf]
          %v730 = vld [vmem:[%s1 + $0xc8] sm:$0xf]
          %v731 = vld [vmem:[%s1 + $0xcc] sm:$0xf]
          %v732 = vld [vmem:[%s1 + $0xd0] sm:$0xf]
          %v733 = vld [vmem:[%s1 + $0xd4] sm:$0xf]
          %v734 = vld [vmem:[%s1 + $0xd8] sm:$0xf]
          %v735 = vld [vmem:[%s1 + $0xdc] sm:$0xf]
          %v736 = vld [vmem:[%s1 + $0xe0] sm:$0xf]
          %v737 = vld [vmem:[%s1 + $0xe4] sm:$0xf]
          %v738 = vld [vmem:[%s1 + $0xe8] sm:$0xf]
          %v739 = vld [vmem:[%s1 + $0xec] sm:$0xf]
          %v740 = vld [vmem:[%s1 + $0xf0] sm:$0xf]
          %v741 = vld [vmem:[%s1 + $0xf4] sm:$0xf]
          %v742 = vld [vmem:[%s1 + $0xf8] sm:$0xf]
          %v743 = vld [vmem:[%s1 + $0xfc] sm:$0xf]
          %v744 = vld [vmem:[%s1 + $0x100] sm:$0xf]
          %v745 = vld [vmem:[%s1 + $0x104] sm:$0xf]
          %v746 = vld [vmem:[%s1 + $0x108] sm:$0xf]
          %v747 = vld [vmem:[%s1 + $0x10c] sm:$0xf]
          %v748 = vld [vmem:[%s1 + $0x110] sm:$0xf]
          %v749 = vld [vmem:[%s1 + $0x114] sm:$0xf]
          %v750 = vld [vmem:[%s1 + $0x118] sm:$0xf]
          %v751 = vld [vmem:[%s1 + $0x11c] sm:$0xf]
          %v752 = vld [vmem:[%s1 + $0x120] sm:$0xf]
          %v753 = vld [vmem:[%s1 + $0x124] sm:$0xf]
          %v754 = vld [vmem:[%s1 + $0x128] sm:$0xf]
          %v755 = vld [vmem:[%s1 + $0x12c] sm:$0xf]
          %v756 = vld [vmem:[%s1 + $0x130] sm:$0xf]
          %v757 = vld [vmem:[%s1 + $0x134] sm:$0xf]
          %v758 = vld [vmem:[%s1 + $0x138] sm:$0xf]
          %v759 = vld [vmem:[%s1 + $0x13c] sm:$0xf]
          %v760 = vld [vmem:[%s1 + $0x140] sm:$0xf]
          %v761 = vld [vmem:[%s1 + $0x144] sm:$0xf]
          %v762 = vld [vmem:[%s1 + $0x148] sm:$0xf]
          %v763 = vld [vmem:[%s1 + $0x14c] sm:$0xf]
          %v764 = vld [vmem:[%s1 + $0x150] sm:$0xf]
          %v765 = vld [vmem:[%s1 + $0x154] sm:$0xf]
          %v766 = vld [vmem:[%s1 + $0x158] sm:$0xf]
          %v767 = vld [vmem:[%s1 + $0x15c] sm:$0xf]
          %v768 = vld [vmem:[%s1 + $0x160] sm:$0xf]
          %v769 = vld [vmem:[%s1 + $0x164] sm:$0xf]
          %v770 = vld [vmem:[%s1 + $0x168] sm:$0xf]
          %v771 = vld [vmem:[%s1 + $0x16c] sm:$0xf]
          %v772 = vld [vmem:[%s1 + $0x170] sm:$0xf]
          %v773 = vld [vmem:[%s1 + $0x174] sm:$0xf]
          %v774 = vld [vmem:[%s1 + $0x178] sm:$0xf]
          %v775 = vld [vmem:[%s1 + $0x17c] sm:$0xf]
          %v776 = vld [vmem:[%s2] sm:$0x1]
          %v778 = vperm.slane %v776, 0
          %v792 = vunpack.c.l.b16 %v668
          %v793 = vunpack.c.h.b16 %v668
          %v794 = vunpack.c.l.b16 %v669
          %v795 = vunpack.c.h.b16 %v669
          %v796 = vunpack.c.l.b16 %v670
          %v797 = vunpack.c.h.b16 %v670
          %v798 = vunpack.c.l.b16 %v671
          %v799 = vunpack.c.h.b16 %v671
          %v800 = vunpack.c.l.b16 %v672
          %v801 = vunpack.c.h.b16 %v672
          %v802 = vunpack.c.l.b16 %v673
          %v803 = vunpack.c.h.b16 %v673
          %v804 = vunpack.c.l.b16 %v674
          %v805 = vunpack.c.h.b16 %v674
          %v806 = vunpack.c.l.b16 %v675
          %v807 = vunpack.c.h.b16 %v675
          %v808 = vunpack.c.l.b16 %v676
          %v809 = vunpack.c.h.b16 %v676
          %v810 = vunpack.c.l.b16 %v677
          %v811 = vunpack.c.h.b16 %v677
          %v812 = vunpack.c.l.b16 %v678
          %v813 = vunpack.c.h.b16 %v678
          %v814 = vunpack.c.l.b16 %v679
          %v815 = vunpack.c.h.b16 %v679
          %v816 = vpack.c.b16 %v798, %v792
          %v817 = vpack.c.b16 %v799, %v793
          %v818 = vpack.c.b16 %v800, %v794
          %v819 = vpack.c.b16 %v801, %v795
          %v820 = vpack.c.b16 %v802, %v796
          %v821 = vpack.c.b16 %v803, %v797
          %v822 = vpack.c.b16 %v810, %v804
          %v823 = vpack.c.b16 %v811, %v805
          %v824 = vpack.c.b16 %v812, %v806
          %v825 = vpack.c.b16 %v813, %v807
          %v826 = vpack.c.b16 %v814, %v808
          %v827 = vpack.c.b16 %v815, %v809
          %v936 = vunpack.c.l.b16 %v680
          %v937 = vunpack.c.l.b16 %v681
          %v938 = vunpack.c.l.b16 %v682
          %v939 = vunpack.c.l.b16 %v683
          %v940 = vunpack.c.l.b16 %v684
          %v941 = vunpack.c.l.b16 %v685
          %v942 = vunpack.c.l.b16 %v686
          %v943 = vunpack.c.l.b16 %v687
          %v944 = vunpack.c.l.b16 %v688
          %v945 = vunpack.c.l.b16 %v689
          %v946 = vunpack.c.l.b16 %v690
          %v947 = vunpack.c.l.b16 %v691
          %v948 = vunpack.c.l.b16 %v692
          %v949 = vunpack.c.l.b16 %v693
          %v950 = vunpack.c.l.b16 %v694
          %v951 = vunpack.c.l.b16 %v695
          %v952 = vunpack.c.l.b16 %v696
          %v953 = vunpack.c.l.b16 %v697
          %v954 = vunpack.c.l.b16 %v698
          %v955 = vunpack.c.l.b16 %v699
          %v956 = vunpack.c.l.b16 %v700
          %v957 = vunpack.c.l.b16 %v701
          %v958 = vunpack.c.l.b16 %v702
          %v959 = vunpack.c.l.b16 %v703
          %v960 = vunpack.c.l.b16 %v704
          %v961 = vunpack.c.l.b16 %v705
          %v962 = vunpack.c.l.b16 %v706
          %v963 = vunpack.c.l.b16 %v707
          %v964 = vunpack.c.l.b16 %v708
          %v965 = vunpack.c.l.b16 %v709
          %v966 = vunpack.c.l.b16 %v710
          %v967 = vunpack.c.l.b16 %v711
          %v968 = vunpack.c.l.b16 %v712
          %v969 = vunpack.c.l.b16 %v713
          %v970 = vunpack.c.l.b16 %v714
          %v971 = vunpack.c.l.b16 %v715
          %v972 = vunpack.c.l.b16 %v716
          %v973 = vunpack.c.l.b16 %v717
          %v974 = vunpack.c.l.b16 %v718
          %v975 = vunpack.c.l.b16 %v719
          %v976 = vunpack.c.l.b16 %v720
          %v977 = vunpack.c.l.b16 %v721
          %v978 = vunpack.c.l.b16 %v722
          %v979 = vunpack.c.l.b16 %v723
          %v980 = vunpack.c.l.b16 %v724
          %v981 = vunpack.c.l.b16 %v725
          %v982 = vunpack.c.l.b16 %v726
          %v983 = vunpack.c.l.b16 %v727
          %v984 = vunpack.c.l.b16 %v728
          %v985 = vunpack.c.l.b16 %v729
          %v986 = vunpack.c.l.b16 %v730
          %v987 = vunpack.c.l.b16 %v731
          %v988 = vunpack.c.l.b16 %v732
          %v989 = vunpack.c.l.b16 %v733
          %v990 = vunpack.c.l.b16 %v734
          %v991 = vunpack.c.l.b16 %v735
          %v992 = vunpack.c.l.b16 %v736
          %v993 = vunpack.c.l.b16 %v737
          %v994 = vunpack.c.l.b16 %v738
          %v995 = vunpack.c.l.b16 %v739
          %v996 = vunpack.c.l.b16 %v740
          %v997 = vunpack.c.l.b16 %v741
          %v998 = vunpack.c.l.b16 %v742
          %v999 = vunpack.c.l.b16 %v743
          %v1000 = vunpack.c.l.b16 %v744
          %v1001 = vunpack.c.l.b16 %v745
          %v1002 = vunpack.c.l.b16 %v746
          %v1003 = vunpack.c.l.b16 %v747
          %v1004 = vunpack.c.l.b16 %v748
          %v1005 = vunpack.c.l.b16 %v749
          %v1006 = vunpack.c.l.b16 %v750
          %v1007 = vunpack.c.l.b16 %v751
          %v1008 = vunpack.c.l.b16 %v752
          %v1009 = vunpack.c.l.b16 %v753
          %v1010 = vunpack.c.l.b16 %v754
          %v1011 = vunpack.c.l.b16 %v755
          %v1012 = vunpack.c.l.b16 %v756
          %v1013 = vunpack.c.l.b16 %v757
          %v1014 = vunpack.c.l.b16 %v758
          %v1015 = vunpack.c.l.b16 %v759
          %v1016 = vunpack.c.l.b16 %v760
          %v1017 = vunpack.c.l.b16 %v761
          %v1018 = vunpack.c.l.b16 %v762
          %v1019 = vunpack.c.l.b16 %v763
          %v1020 = vunpack.c.l.b16 %v764
          %v1021 = vunpack.c.l.b16 %v765
          %v1022 = vunpack.c.l.b16 %v766
          %v1023 = vunpack.c.l.b16 %v767
          %v1024 = vunpack.c.l.b16 %v768
          %v1025 = vunpack.c.l.b16 %v769
          %v1026 = vunpack.c.l.b16 %v770
          %v1027 = vunpack.c.l.b16 %v771
          %v1028 = vunpack.c.l.b16 %v772
          %v1029 = vunpack.c.l.b16 %v773
          %v1030 = vunpack.c.l.b16 %v774
          %v1031 = vunpack.c.l.b16 %v775
          %v1032 = vpack.c.b16 %v937, %v936
          %v1033 = vpack.c.b16 %v939, %v938
          %v1034 = vpack.c.b16 %v941, %v940
          %v1035 = vpack.c.b16 %v943, %v942
          %v1036 = vpack.c.b16 %v945, %v944
          %v1037 = vpack.c.b16 %v947, %v946
          %v1038 = vpack.c.b16 %v949, %v948
          %v1039 = vpack.c.b16 %v951, %v950
          %v1040 = vpack.c.b16 %v953, %v952
          %v1041 = vpack.c.b16 %v955, %v954
          %v1042 = vpack.c.b16 %v957, %v956
          %v1043 = vpack.c.b16 %v959, %v958
          %v1044 = vpack.c.b16 %v961, %v960
          %v1045 = vpack.c.b16 %v963, %v962
          %v1046 = vpack.c.b16 %v965, %v964
          %v1047 = vpack.c.b16 %v967, %v966
          %v1048 = vpack.c.b16 %v969, %v968
          %v1049 = vpack.c.b16 %v971, %v970
          %v1050 = vpack.c.b16 %v973, %v972
          %v1051 = vpack.c.b16 %v975, %v974
          %v1052 = vpack.c.b16 %v977, %v976
          %v1053 = vpack.c.b16 %v979, %v978
          %v1054 = vpack.c.b16 %v981, %v980
          %v1055 = vpack.c.b16 %v983, %v982
          %v1056 = vpack.c.b16 %v985, %v984
          %v1057 = vpack.c.b16 %v987, %v986
          %v1058 = vpack.c.b16 %v989, %v988
          %v1059 = vpack.c.b16 %v991, %v990
          %v1060 = vpack.c.b16 %v993, %v992
          %v1061 = vpack.c.b16 %v995, %v994
          %v1062 = vpack.c.b16 %v997, %v996
          %v1063 = vpack.c.b16 %v999, %v998
          %v1064 = vpack.c.b16 %v1001, %v1000
          %v1065 = vpack.c.b16 %v1003, %v1002
          %v1066 = vpack.c.b16 %v1005, %v1004
          %v1067 = vpack.c.b16 %v1007, %v1006
          %v1068 = vpack.c.b16 %v1009, %v1008
          %v1069 = vpack.c.b16 %v1011, %v1010
          %v1070 = vpack.c.b16 %v1013, %v1012
          %v1071 = vpack.c.b16 %v1015, %v1014
          %v1072 = vpack.c.b16 %v1017, %v1016
          %v1073 = vpack.c.b16 %v1019, %v1018
          %v1074 = vpack.c.b16 %v1021, %v1020
          %v1075 = vpack.c.b16 %v1023, %v1022
          %v1076 = vpack.c.b16 %v1025, %v1024
          %v1077 = vpack.c.b16 %v1027, %v1026
          %v1078 = vpack.c.b16 %v1029, %v1028
          %v1079 = vpack.c.b16 %v1031, %v1030
          %1128 = vmatpush.bf16.msra.mxu0 %v1039
          %1129 = vmatpush.bf16.msra.mxu0 %v1038
          %1130 = vmatpush.bf16.msra.mxu0 %v1037
          %1131 = vmatpush.bf16.msra.mxu0 %v1036
          %1132 = vmatpush.bf16.msra.mxu0 %v1035
          %1133 = vmatpush.bf16.msra.mxu0 %v1034
          %1134 = vmatpush.bf16.msra.mxu0 %v1033
          %1135 = vmatpush.bf16.msra.mxu0 %v1032
          %1136 = vmatmul.bf16.gmra.mxu0 %v816
          %v1137 = vpop.f32.mrf.mxu0
          %v1138 = vadd.f32 %v778, %v1137
          %v1139 = vpop.f32.mrf.mxu0
          %v1140 = vadd.f32 %v778, %v1139
          %1141 = vmatmul.bf16.gmra.mxu0 %v822
          %v1142 = vpop.f32.mrf.mxu0
          %v1143 = vadd.f32 %v778, %v1142
          %v1144 = vpop.f32.mrf.mxu0
          %v1145 = vadd.f32 %v778, %v1144
          %1146 = vdwg.mxu0
          %1147 = vmatpush.bf16.msra.mxu0 %v1047
          %1148 = vmatpush.bf16.msra.mxu0 %v1046
          %1149 = vmatpush.bf16.msra.mxu0 %v1045
          %1150 = vmatpush.bf16.msra.mxu0 %v1044
          %1151 = vmatpush.bf16.msra.mxu0 %v1043
          %1152 = vmatpush.bf16.msra.mxu0 %v1042
          %1153 = vmatpush.bf16.msra.mxu0 %v1041
          %1154 = vmatpush.bf16.msra.mxu0 %v1040
          %1155 = vmatmul.bf16.gmra.mxu0 %v817
          %v1156 = vpop.f32.mrf.mxu0
          %v1157 = vadd.f32 %v1138, %v1156
          %v1158 = vpop.f32.mrf.mxu0
          %v1159 = vadd.f32 %v1140, %v1158
          %1160 = vmatmul.bf16.gmra.mxu0 %v823
          %v1161 = vpop.f32.mrf.mxu0
          %v1162 = vadd.f32 %v1143, %v1161
          %v1163 = vpop.f32.mrf.mxu0
          %v1164 = vadd.f32 %v1145, %v1163
          %1165 = vdwg.mxu0
          %1166 = vmatpush.bf16.msra.mxu0 %v1055
          %1167 = vmatpush.bf16.msra.mxu0 %v1054
          %1168 = vmatpush.bf16.msra.mxu0 %v1053
          %1169 = vmatpush.bf16.msra.mxu0 %v1052
          %1170 = vmatpush.bf16.msra.mxu0 %v1051
          %1171 = vmatpush.bf16.msra.mxu0 %v1050
          %1172 = vmatpush.bf16.msra.mxu0 %v1049
          %1173 = vmatpush.bf16.msra.mxu0 %v1048
          %1174 = vmatmul.bf16.gmra.mxu0 %v818
          %v1175 = vpop.f32.mrf.mxu0
          %v1176 = vadd.f32 %v1157, %v1175
          %v1177 = vpop.f32.mrf.mxu0
          %v1178 = vadd.f32 %v1159, %v1177
          %1179 = vmatmul.bf16.gmra.mxu0 %v824
          %v1180 = vpop.f32.mrf.mxu0
          %v1181 = vadd.f32 %v1162, %v1180
          %v1182 = vpop.f32.mrf.mxu0
          %v1183 = vadd.f32 %v1164, %v1182
          %1184 = vdwg.mxu0
          %1185 = vmatpush.bf16.msra.mxu0 %v1063
          %1186 = vmatpush.bf16.msra.mxu0 %v1062
          %1187 = vmatpush.bf16.msra.mxu0 %v1061
          %1188 = vmatpush.bf16.msra.mxu0 %v1060
          %1189 = vmatpush.bf16.msra.mxu0 %v1059
          %1190 = vmatpush.bf16.msra.mxu0 %v1058
          %1191 = vmatpush.bf16.msra.mxu0 %v1057
          %1192 = vmatpush.bf16.msra.mxu0 %v1056
          %1193 = vmatmul.bf16.gmra.mxu0 %v819
          %v1194 = vpop.f32.mrf.mxu0
          %v1195 = vadd.f32 %v1176, %v1194
          %v1196 = vpop.f32.mrf.mxu0
          %v1197 = vadd.f32 %v1178, %v1196
          %1198 = vmatmul.bf16.gmra.mxu0 %v825
          %v1199 = vpop.f32.mrf.mxu0
          %v1200 = vadd.f32 %v1181, %v1199
          %v1201 = vpop.f32.mrf.mxu0
          %v1202 = vadd.f32 %v1183, %v1201
          %1203 = vdwg.mxu0
          %1204 = vmatpush.bf16.msra.mxu0 %v1071
          %1205 = vmatpush.bf16.msra.mxu0 %v1070
          %1206 = vmatpush.bf16.msra.mxu0 %v1069
          %1207 = vmatpush.bf16.msra.mxu0 %v1068
          %1208 = vmatpush.bf16.msra.mxu0 %v1067
          %1209 = vmatpush.bf16.msra.mxu0 %v1066
          %1210 = vmatpush.bf16.msra.mxu0 %v1065
          %1211 = vmatpush.bf16.msra.mxu0 %v1064
          %1212 = vmatmul.bf16.gmra.mxu0 %v820
          %v1213 = vpop.f32.mrf.mxu0
          %v1214 = vadd.f32 %v1195, %v1213
          %v1215 = vpop.f32.mrf.mxu0
          %v1216 = vadd.f32 %v1197, %v1215
          %1217 = vmatmul.bf16.gmra.mxu0 %v826
          %v1218 = vpop.f32.mrf.mxu0
          %v1219 = vadd.f32 %v1200, %v1218
          %v1220 = vpop.f32.mrf.mxu0
          %v1221 = vadd.f32 %v1202, %v1220
          %1222 = vdwg.mxu0
          %1223 = vmatpush.bf16.msra.mxu0 %v1079
          %1224 = vmatpush.bf16.msra.mxu0 %v1078
          %1225 = vmatpush.bf16.msra.mxu0 %v1077
          %1226 = vmatpush.bf16.msra.mxu0 %v1076
          %1227 = vmatpush.bf16.msra.mxu0 %v1075
          %1228 = vmatpush.bf16.msra.mxu0 %v1074
          %1229 = vmatpush.bf16.msra.mxu0 %v1073
          %1230 = vmatpush.bf16.msra.mxu0 %v1072
          %1231 = vmatmul.bf16.gmra.mxu0 %v821
          %v1232 = vpop.f32.mrf.mxu0
          %v1233 = vadd.f32 %v1214, %v1232
          %v1234 = vpop.f32.mrf.mxu0
          %v1235 = vadd.f32 %v1216, %v1234
          %1236 = vmatmul.bf16.gmra.mxu0 %v827
          %v1237 = vpop.f32.mrf.mxu0
          %v1238 = vadd.f32 %v1219, %v1237
          %v1239 = vpop.f32.mrf.mxu0
          %v1240 = vadd.f32 %v1221, %v1239
          %1241 = vdwg.mxu0
          %v1242 = vld [vmem:[%s3] sm:$0xff]
          %v1243 = vld [vmem:[%s3 + $0x8] sm:$0xff]
          %v1244 = vadd.f32 %v1233, %v1242
          %v1245 = vadd.f32 %v1235, %v1243
          %v1246 = vadd.f32 %v1238, %v1242
          %v1247 = vadd.f32 %v1240, %v1243
          %1248 = vst [vmem:[#allocation2] sm:$0xff] %v1244
          %1249 = vst [vmem:[#allocation2 + $0x8] sm:$0xff] %v1245
          %1250 = vst [vmem:[#allocation2 + $0x18] sm:$0xff] %v1246
          %1251 = vst [vmem:[#allocation2 + $0x20] sm:$0xff] %v1247
          %v1252 = vld [vmem:[%s4] sm:$0xff]
          %1253 = vst [vmem:[#allocation2 + $0x10] sm:$0xff] %v1252
          %1254 = vst [vmem:[#allocation2 + $0x28] sm:$0xff] %v1252
        $region84: #{radio_featurizer_forward.1} parent=79 // pred_fallthru
          _
        %v1255 = vld [vmem:[#allocation2] sm:$0xff]
        %v1256 = vld [vmem:[#allocation2 + $0x8] sm:$0xff]
        %v1257 = vld [vmem:[#allocation2 + $0x10] sm:$0xff]
        %v1258 = vld [vmem:[#allocation2 + $0x18] sm:$0xff]
        %v1259 = vld [vmem:[#allocation2 + $0x20] sm:$0xff]
        %v1260 = vld [vmem:[#allocation2 + $0x28] sm:$0xff]
        %v1261 = vld [vmem:[%s627] sm:$0xf]
        %1262 = vadd.xlane.f32.xlu0 %v1255
        %v1263 = vpop.xlane.xlu0 %1262
        %1264 = vadd.xlane.f32.xlu0 %v1256
        %v1265 = vpop.xlane.xlu0 %1264
        %1266 = vadd.xlane.f32.xlu0 %v1257
        %v1267 = vpop.xlane.xlu0 %1266
        %1268 = vadd.xlane.f32.xlu0 %v1258
        %v1269 = vpop.xlane.xlu0 %1268
        %1270 = vadd.xlane.f32.xlu0 %v1259
        %v1271 = vpop.xlane.xlu0 %1270
        %1272 = vadd.xlane.f32.xlu0 %v1260
        %v1273 = vpop.xlane.xlu0 %1272
        %v1274 = vrcp.pop 128.0
        %v1275 = vmul.f32 128.0, %v1274
        %v1276 = vsub.f32 1.0, %v1275
        %v1277 = vmul.f32 %v1274, %v1276
        %v1278 = vadd.f32 %v1274, %v1277
        %vm1279 = vweird.f32 %v1274
        %v1280 = vsel %vm1279, %v1274, %v1278
        %v1281 = vmul.f32 %v1263, %v1280
        %v1282 = vmul.f32 %v1265, %v1280
        %v1283 = vmul.f32 %v1267, %v1280
        %v1284 = vmul.f32 %v1269, %v1280
        %v1285 = vmul.f32 %v1271, %v1280
        %v1286 = vmul.f32 %v1273, %v1280
        %v1287 = vsub.f32 %v1255, %v1281
        %v1288 = vsub.f32 %v1256, %v1282
        %v1289 = vsub.f32 %v1257, %v1283
        %v1290 = vsub.f32 %v1258, %v1284
        %v1291 = vsub.f32 %v1259, %v1285
        %v1292 = vsub.f32 %v1260, %v1286
        %v1293 = vmul.f32 %v1287, %v1287
        %v1294 = vmul.f32 %v1288, %v1288
        %v1295 = vmul.f32 %v1289, %v1289
        %v1296 = vmul.f32 %v1290, %v1290
        %v1297 = vmul.f32 %v1291, %v1291
        %v1298 = vmul.f32 %v1292, %v1292
        %1299 = vadd.xlane.f32.xlu0 %v1293
        %v1300 = vpop.xlane.xlu0 %1299
        %1301 = vadd.xlane.f32.xlu0 %v1294
        %v1302 = vpop.xlane.xlu0 %1301
        %1303 = vadd.xlane.f32.xlu0 %v1295
        %v1304 = vpop.xlane.xlu0 %1303
        %1305 = vadd.xlane.f32.xlu0 %v1296
        %v1306 = vpop.xlane.xlu0 %1305
        %1307 = vadd.xlane.f32.xlu0 %v1297
        %v1308 = vpop.xlane.xlu0 %1307
        %1309 = vadd.xlane.f32.xlu0 %v1298
        %v1310 = vpop.xlane.xlu0 %1309
        %v1311 = vmul.f32 %v1300, %v1280
        %v1312 = vmul.f32 %v1302, %v1280
        %v1313 = vmul.f32 %v1304, %v1280
        %v1314 = vmul.f32 %v1306, %v1280
        %v1315 = vmul.f32 %v1308, %v1280
        %v1316 = vmul.f32 %v1310, %v1280
        %v1317 = vadd.f32 %v1311, 1e-06
        %v1318 = vadd.f32 %v1312, 1e-06
        %v1319 = vadd.f32 %v1313, 1e-06
        %v1320 = vadd.f32 %v1314, 1e-06
        %v1321 = vadd.f32 %v1315, 1e-06
        %v1322 = vadd.f32 %v1316, 1e-06
        %v1323 = vrsqrt.pop %v1317
        %v1324 = vmul.f32 %v1323, %v1317
        %v1325 = vmul.f32 %v1324, %v1323
        %v1326 = vmul.f32 0.5, %v1325
        %v1327 = vsub.f32 1.5, %v1326
        %v1328 = vmul.f32 %v1323, %v1327
        %vm1329 = vweird.f32 %v1317
        %vm1330 = vweird.f32 %v1323
        %vm1331 = vmor %vm1329, %vm1330
        %v1332 = vsel %vm1331, %v1323, %v1328
        %v1333 = vrsqrt.pop %v1318
        %v1334 = vmul.f32 %v1333, %v1318
        %v1335 = vmul.f32 %v1334, %v1333
        %v1336 = vmul.f32 0.5, %v1335
        %v1337 = vsub.f32 1.5, %v1336
        %v1338 = vmul.f32 %v1333, %v1337
        %vm1339 = vweird.f32 %v1318
        %vm1340 = vweird.f32 %v1333
        %vm1341 = vmor %vm1339, %vm1340
        %v1342 = vsel %vm1341, %v1333, %v1338
        %v1343 = vrsqrt.pop %v1319
        %v1344 = vmul.f32 %v1343, %v1319
        %v1345 = vmul.f32 %v1344, %v1343
        %v1346 = vmul.f32 0.5, %v1345
        %v1347 = vsub.f32 1.5, %v1346
        %v1348 = vmul.f32 %v1343, %v1347
        %vm1349 = vweird.f32 %v1319
        %vm1350 = vweird.f32 %v1343
        %vm1351 = vmor %vm1349, %vm1350
        %v1352 = vsel %vm1351, %v1343, %v1348
        %v1353 = vrsqrt.pop %v1320
        %v1354 = vmul.f32 %v1353, %v1320
        %v1355 = vmul.f32 %v1354, %v1353
        %v1356 = vmul.f32 0.5, %v1355
        %v1357 = vsub.f32 1.5, %v1356
        %v1358 = vmul.f32 %v1353, %v1357
        %vm1359 = vweird.f32 %v1320
        %vm1360 = vweird.f32 %v1353
        %vm1361 = vmor %vm1359, %vm1360
        %v1362 = vsel %vm1361, %v1353, %v1358
        %v1363 = vrsqrt.pop %v1321
        %v1364 = vmul.f32 %v1363, %v1321
        %v1365 = vmul.f32 %v1364, %v1363
        %v1366 = vmul.f32 0.5, %v1365
        %v1367 = vsub.f32 1.5, %v1366
        %v1368 = vmul.f32 %v1363, %v1367
        %vm1369 = vweird.f32 %v1321
        %vm1370 = vweird.f32 %v1363
        %vm1371 = vmor %vm1369, %vm1370
        %v1372 = vsel %vm1371, %v1363, %v1368
        %v1373 = vrsqrt.pop %v1322
        %v1374 = vmul.f32 %v1373, %v1322
        %v1375 = vmul.f32 %v1374, %v1373
        %v1376 = vmul.f32 0.5, %v1375
        %v1377 = vsub.f32 1.5, %v1376
        %v1378 = vmul.f32 %v1373, %v1377
        %vm1379 = vweird.f32 %v1322
        %vm1380 = vweird.f32 %v1373
        %vm1381 = vmor %vm1379, %vm1380
        %v1382 = vsel %vm1381, %v1373, %v1378
        %v1383 = vmul.f32 %v1287, %v1332
        %v1384 = vmul.f32 %v1288, %v1342
        %v1385 = vmul.f32 %v1289, %v1352
        %v1386 = vmul.f32 %v1290, %v1362
        %v1387 = vmul.f32 %v1291, %v1372
        %v1388 = vmul.f32 %v1292, %v1382
        %v1389 = vperm.slane %v1261, 0
        %v1390 = vmul.f32 %v1383, %v1389
        %v1391 = vmul.f32 %v1384, %v1389
        %v1392 = vmul.f32 %v1385, %v1389
        %v1393 = vmul.f32 %v1386, %v1389
        %v1394 = vmul.f32 %v1387, %v1389
        %v1395 = vmul.f32 %v1388, %v1389
        %v1396 = vperm.slane %v1261, 1
        %v1397 = vadd.f32 %v1390, %v1396
        %v1398 = vadd.f32 %v1391, %v1396
        %v1399 = vadd.f32 %v1392, %v1396
        %v1400 = vadd.f32 %v1393, %v1396
        %v1401 = vadd.f32 %v1394, %v1396
        %v1402 = vadd.f32 %v1395, %v1396
        %v1403 = vpack.c.bf16 %v1398, %v1397
        %v1404 = vpack.c.bf16 %v1400, %v1399
        %v1405 = vpack.c.bf16 %v1402, %v1401
        %v1406 = vld [vmem:[%s632] sm:$0xff]
        %v1407 = vld [vmem:[%s632 + $0x8] sm:$0xf]
        %v1408 = vld [vmem:[%s632 + $0xc] sm:$0xff]
        %v1409 = vld [vmem:[%s632 + $0x14] sm:$0xf]
        %v1410 = vld [vmem:[%s632 + $0x18] sm:$0xff]
        %v1411 = vld [vmem:[%s632 + $0x20] sm:$0xf]
        %v1412 = vld [vmem:[%s632 + $0x24] sm:$0xff]
        %v1413 = vld [vmem:[%s632 + $0x2c] sm:$0xf]
        %v1414 = vld [vmem:[%s632 + $0x30] sm:$0xff]
        %v1415 = vld [vmem:[%s632 + $0x38] sm:$0xf]
        %v1416 = vld [vmem:[%s632 + $0x3c] sm:$0xff]
        %v1417 = vld [vmem:[%s632 + $0x44] sm:$0xf]
        %v1418 = vld [vmem:[%s632 + $0x48] sm:$0xff]
        %v1419 = vld [vmem:[%s632 + $0x50] sm:$0xf]
        %v1420 = vld [vmem:[%s632 + $0x54] sm:$0xff]
        %v1421 = vld [vmem:[%s632 + $0x5c] sm:$0xf]
        %v1422 = vld [vmem:[%s632 + $0x60] sm:$0xff]
        %v1423 = vld [vmem:[%s632 + $0x68] sm:$0xf]
        %v1424 = vld [vmem:[%s632 + $0x6c] sm:$0xff]
        %v1425 = vld [vmem:[%s632 + $0x74] sm:$0xf]
        %v1426 = vld [vmem:[%s632 + $0x78] sm:$0xff]
        %v1427 = vld [vmem:[%s632 + $0x80] sm:$0xf]
        %v1428 = vld [vmem:[%s632 + $0x84] sm:$0xff]
        %v1429 = vld [vmem:[%s632 + $0x8c] sm:$0xf]
        %v1430 = vld [vmem:[%s632 + $0x90] sm:$0xff]
        %v1431 = vld [vmem:[%s632 + $0x98] sm:$0xf]
        %v1432 = vld [vmem:[%s632 + $0x9c] sm:$0xff]
        %v1433 = vld [vmem:[%s632 + $0xa4] sm:$0xf]
        %v1434 = vld [vmem:[%s632 + $0xa8] sm:$0xff]
        %v1435 = vld [vmem:[%s632 + $0xb0] sm:$0xf]
        %v1436 = vld [vmem:[%s632 + $0xb4] sm:$0xff]
        %v1437 = vld [vmem:[%s632 + $0xbc] sm:$0xf]
        %v1438 = vld [vmem:[%s636] sm:$0x7]
        %v1440 = vperm.slane %v1438, 0
        %v1441 = vperm.slane %v1438, 1
        %v1442 = vperm.slane %v1438, 2
        %v1478 = vunpack.c.l.b16 %v1406
        %v1479 = vunpack.c.h.b16 %v1406
        %v1480 = vunpack.c.l.b16 %v1407
        %v1481 = vunpack.c.l.b16 %v1408
        %v1482 = vunpack.c.h.b16 %v1408
        %v1483 = vunpack.c.l.b16 %v1409
        %v1484 = vunpack.c.l.b16 %v1410
        %v1485 = vunpack.c.h.b16 %v1410
        %v1486 = vunpack.c.l.b16 %v1411
        %v1487 = vunpack.c.l.b16 %v1412
        %v1488 = vunpack.c.h.b16 %v1412
        %v1489 = vunpack.c.l.b16 %v1413
        %v1490 = vunpack.c.l.b16 %v1414
        %v1491 = vunpack.c.h.b16 %v1414
        %v1492 = vunpack.c.l.b16 %v1415
        %v1493 = vunpack.c.l.b16 %v1416
        %v1494 = vunpack.c.h.b16 %v1416
        %v1495 = vunpack.c.l.b16 %v1417
        %v1496 = vunpack.c.l.b16 %v1418
        %v1497 = vunpack.c.h.b16 %v1418
        %v1498 = vunpack.c.l.b16 %v1419
        %v1499 = vunpack.c.l.b16 %v1420
        %v1500 = vunpack.c.h.b16 %v1420
        %v1501 = vunpack.c.l.b16 %v1421
        %v1502 = vunpack.c.l.b16 %v1422
        %v1503 = vunpack.c.h.b16 %v1422
        %v1504 = vunpack.c.l.b16 %v1423
        %v1505 = vunpack.c.l.b16 %v1424
        %v1506 = vunpack.c.h.b16 %v1424
        %v1507 = vunpack.c.l.b16 %v1425
        %v1508 = vunpack.c.l.b16 %v1426
        %v1509 = vunpack.c.h.b16 %v1426
        %v1510 = vunpack.c.l.b16 %v1427
        %v1511 = vunpack.c.l.b16 %v1428
        %v1512 = vunpack.c.h.b16 %v1428
        %v1513 = vunpack.c.l.b16 %v1429
        %v1514 = vunpack.c.l.b16 %v1430
        %v1515 = vunpack.c.h.b16 %v1430
        %v1516 = vunpack.c.l.b16 %v1431
        %v1517 = vunpack.c.l.b16 %v1432
        %v1518 = vunpack.c.h.b16 %v1432
        %v1519 = vunpack.c.l.b16 %v1433
        %v1520 = vunpack.c.l.b16 %v1434
        %v1521 = vunpack.c.h.b16 %v1434
        %v1522 = vunpack.c.l.b16 %v1435
        %v1523 = vunpack.c.l.b16 %v1436
        %v1524 = vunpack.c.h.b16 %v1436
        %v1525 = vunpack.c.l.b16 %v1437
        %v1526 = vpack.c.b16 %v1481, %v1478
        %v1527 = vpack.c.b16 %v1482, %v1479
        %v1528 = vpack.c.b16 %v1483, %v1480
        %v1529 = vpack.c.b16 %v1487, %v1484
        %v1530 = vpack.c.b16 %v1488, %v1485
        %v1531 = vpack.c.b16 %v1489, %v1486
        %v1532 = vpack.c.b16 %v1493, %v1490
        %v1533 = vpack.c.b16 %v1494, %v1491
        %v1534 = vpack.c.b16 %v1495, %v1492
        %v1535 = vpack.c.b16 %v1499, %v1496
        %v1536 = vpack.c.b16 %v1500, %v1497
        %v1537 = vpack.c.b16 %v1501, %v1498
        %v1538 = vpack.c.b16 %v1505, %v1502
        %v1539 = vpack.c.b16 %v1506, %v1503
        %v1540 = vpack.c.b16 %v1507, %v1504
        %v1541 = vpack.c.b16 %v1511, %v1508
        %v1542 = vpack.c.b16 %v1512, %v1509
        %v1543 = vpack.c.b16 %v1513, %v1510
        %v1544 = vpack.c.b16 %v1517, %v1514
        %v1545 = vpack.c.b16 %v1518, %v1515
        %v1546 = vpack.c.b16 %v1519, %v1516
        %v1547 = vpack.c.b16 %v1523, %v1520
        %v1548 = vpack.c.b16 %v1524, %v1521
        %v1549 = vpack.c.b16 %v1525, %v1522
        %1574 = vmatpush.bf16.msra.mxu0 %v1547
        %1575 = vmatpush.bf16.msra.mxu0 %v1544
        %1576 = vmatpush.bf16.msra.mxu0 %v1541
        %1577 = vmatpush.bf16.msra.mxu0 %v1538
        %1578 = vmatpush.bf16.msra.mxu0 %v1535
        %1579 = vmatpush.bf16.msra.mxu0 %v1532
        %1580 = vmatpush.bf16.msra.mxu0 %v1529
        %1581 = vmatpush.bf16.msra.mxu0 %v1526
        %1582 = vmatmul.bf16.gmra.mxu0 %v1403
        %v1583 = vpop.f32.mrf.mxu0
        %v1584 = vadd.f32 %v1440, %v1583
        %v1585 = vpop.f32.mrf.mxu0
        %v1586 = vadd.f32 %v1440, %v1585
        %1587 = vmatmul.bf16.gmra.mxu0 %v1404
        %v1588 = vpop.f32.mrf.mxu0
        %v1589 = vadd.f32 %v1440, %v1588
        %v1590 = vpop.f32.mrf.mxu0
        %v1591 = vadd.f32 %v1440, %v1590
        %1592 = vmatmul.bf16.gmra.mxu0 %v1405
        %v1593 = vpop.f32.mrf.mxu0
        %v1594 = vadd.f32 %v1440, %v1593
        %v1595 = vpop.f32.mrf.mxu0
        %v1596 = vadd.f32 %v1440, %v1595
        %1597 = vdwg.mxu0
        %1598 = vmatpush.bf16.msra.mxu0 %v1548
        %1599 = vmatpush.bf16.msra.mxu0 %v1545
        %1600 = vmatpush.bf16.msra.mxu0 %v1542
        %1601 = vmatpush.bf16.msra.mxu0 %v1539
        %1602 = vmatpush.bf16.msra.mxu0 %v1536
        %1603 = vmatpush.bf16.msra.mxu0 %v1533
        %1604 = vmatpush.bf16.msra.mxu0 %v1530
        %1605 = vmatpush.bf16.msra.mxu0 %v1527
        %1606 = vmatmul.bf16.gmra.mxu0 %v1403
        %v1607 = vpop.f32.mrf.mxu0
        %v1608 = vadd.f32 %v1441, %v1607
        %v1609 = vpop.f32.mrf.mxu0
        %v1610 = vadd.f32 %v1441, %v1609
        %1611 = vmatmul.bf16.gmra.mxu0 %v1404
        %v1612 = vpop.f32.mrf.mxu0
        %v1613 = vadd.f32 %v1441, %v1612
        %v1614 = vpop.f32.mrf.mxu0
        %v1615 = vadd.f32 %v1441, %v1614
        %1616 = vmatmul.bf16.gmra.mxu0 %v1405
        %v1617 = vpop.f32.mrf.mxu0
        %v1618 = vadd.f32 %v1441, %v1617
        %v1619 = vpop.f32.mrf.mxu0
        %v1620 = vadd.f32 %v1441, %v1619
        %1621 = vdwg.mxu0
        %1622 = vmatpush.bf16.msra.mxu0 %v1549
        %1623 = vmatpush.bf16.msra.mxu0 %v1546
        %1624 = vmatpush.bf16.msra.mxu0 %v1543
        %1625 = vmatpush.bf16.msra.mxu0 %v1540
        %1626 = vmatpush.bf16.msra.mxu0 %v1537
        %1627 = vmatpush.bf16.msra.mxu0 %v1534
        %1628 = vmatpush.bf16.msra.mxu0 %v1531
        %1629 = vmatpush.bf16.msra.mxu0 %v1528
        %1630 = vmatmul.bf16.gmra.mxu0 %v1403
        %v1631 = vpop.f32.mrf.mxu0
        %v1632 = vadd.f32 %v1442, %v1631
        %v1633 = vpop.f32.mrf.mxu0
        %v1634 = vadd.f32 %v1442, %v1633
        %1635 = vmatmul.bf16.gmra.mxu0 %v1404
        %v1636 = vpop.f32.mrf.mxu0
        %v1637 = vadd.f32 %v1442, %v1636
        %v1638 = vpop.f32.mrf.mxu0
        %v1639 = vadd.f32 %v1442, %v1638
        %1640 = vmatmul.bf16.gmra.mxu0 %v1405
        %v1641 = vpop.f32.mrf.mxu0
        %v1642 = vadd.f32 %v1442, %v1641
        %v1643 = vpop.f32.mrf.mxu0
        %v1644 = vadd.f32 %v1442, %v1643
        %1645 = vdwg.mxu0
        %v1646 = vlaneseq
        %v1647 = vand.u32 %v1646, 127
        %vm1648 = vcmp.lt.s32.totalorder %v1647, 17
        %v1649 = vsel %vm1648, 0.0, -1e+30
        %v1650 = vld [vmem:[%s641] sm:$0xf]
        %v1651 = vld [vmem:[%s641 + $0x4] sm:$0xf]
        %v1652 = vld [vmem:[%s641 + $0x8] sm:$0xf]
        %v1653 = vld [vmem:[%s641 + $0xc] sm:$0xf]
        %v1654 = vld [vmem:[%s641 + $0x10] sm:$0xf]
        %v1655 = vld [vmem:[%s641 + $0x14] sm:$0xf]
        %v1656 = vld [vmem:[%s641 + $0x18] sm:$0xf]
        %v1657 = vld [vmem:[%s641 + $0x1c] sm:$0xf]
        %v1658 = vld [vmem:[%s641 + $0x20] sm:$0xf]
        %v1659 = vld [vmem:[%s641 + $0x24] sm:$0xf]
        %v1660 = vld [vmem:[%s641 + $0x28] sm:$0xf]
        %v1661 = vld [vmem:[%s641 + $0x2c] sm:$0xf]
        %v1662 = vld [vmem:[%s641 + $0x30] sm:$0xf]
        %v1663 = vld [vmem:[%s641 + $0x34] sm:$0xf]
        %v1664 = vld [vmem:[%s641 + $0x38] sm:$0xf]
        %v1665 = vld [vmem:[%s641 + $0x3c] sm:$0xf]
        %v1666 = vpack.c.bf16 %v1584, %v1584
        %v1667 = vpack.c.bf16 %v1586, %v1586
        %v1668 = vpack.c.bf16 %v1589, %v1589
        %v1669 = vpack.c.bf16 %v1591, %v1591
        %v1670 = vpack.c.bf16 %v1594, %v1594
        %v1671 = vpack.c.bf16 %v1596, %v1596
        %v1672 = vpack.c.bf16 %v1608, %v1608
        %v1673 = vpack.c.bf16 %v1610, %v1610
        %v1674 = vpack.c.bf16 %v1613, %v1613
        %v1675 = vpack.c.bf16 %v1615, %v1615
        %v1676 = vpack.c.bf16 %v1618, %v1618
        %v1677 = vpack.c.bf16 %v1620, %v1620
        %v1678 = vpack.c.bf16 %v1632, %v1632
        %v1679 = vpack.c.bf16 %v1634, %v1634
        %v1680 = vpack.c.bf16 %v1637, %v1637
        %v1681 = vpack.c.bf16 %v1639, %v1639
        %v1682 = vpack.c.bf16 %v1642, %v1642
        %v1683 = vpack.c.bf16 %v1644, %v1644
        %v1687 = vunpack.c.l.b16 %v1666
        %v1688 = vunpack.c.l.b16 %v1667
        %v1689 = vunpack.c.l.b16 %v1668
        %v1690 = vpack.c.b16 %v1688, %v1687
        %v1691 = vpack.c.b16 %v1689, %v1689
        %v1695 = vunpack.c.l.b16 %v1672
        %v1696 = vunpack.c.l.b16 %v1673
        %v1697 = vunpack.c.l.b16 %v1674
        %v1698 = vpack.c.b16 %v1696, %v1695
        %v1699 = vpack.c.b16 %v1697, %v1697
        %vm1700 = vcmask 523264
        %v1702 = vsel %vm1700, %v1690, 0
        %v1705 = vsel %vm1700, %v1691, 0
        %v1708 = vsel %vm1700, %v1698, 0
        %v1711 = vsel %vm1700, %v1699, 0
        %1713 = vmatpush.bf16.xpose.msra.mxu0 0
        %1714 = vmatpush.bf16.xpose.msra.mxu0 0
        %1715 = vmatpush.bf16.xpose.msra.mxu0 0
        %1716 = vmatpush.bf16.xpose.msra.mxu0 0
        %1717 = vmatpush.bf16.xpose.msra.mxu0 0
        %1718 = vmatpush.bf16.xpose.msra.mxu0 0
        %1719 = vmatpush.bf16.xpose.msra.mxu0 %v1711
        %1720 = vmatpush.bf16.xpose.msra.mxu0 %v1708
        %1721 = vmatmul.bf16.gmra.mxu0 %v1702
        %v1722 = vpop.f32.mrf.mxu0
        %v1723 = vadd.f32 0.0, %v1722
        %v1724 = vpop.f32.mrf.mxu0
        %v1725 = vadd.f32 0.0, %v1724
        %1726 = vmatmul.bf16.gmra.mxu0 %v1705
        %v1727 = vpop.f32.mrf.mxu0
        %v1728 = vadd.f32 0.0, %v1727
        %v1729 = vpop.f32.mrf.mxu0
        %1730 = vdwg.mxu0
        %v1734 = vunpack.c.l.b16 %v1669
        %v1735 = vunpack.c.l.b16 %v1670
        %v1736 = vunpack.c.l.b16 %v1671
        %v1737 = vpack.c.b16 %v1735, %v1734
        %v1738 = vpack.c.b16 %v1736, %v1736
        %v1742 = vunpack.c.l.b16 %v1675
        %v1743 = vunpack.c.l.b16 %v1676
        %v1744 = vunpack.c.l.b16 %v1677
        %v1745 = vpack.c.b16 %v1743, %v1742
        %v1746 = vpack.c.b16 %v1744, %v1744
        %v1748 = vsel %vm1700, %v1737, 0
        %v1751 = vsel %vm1700, %v1738, 0
        %v1754 = vsel %vm1700, %v1745, 0
        %v1757 = vsel %vm1700, %v1746, 0
        %1759 = vmatpush.bf16.xpose.msra.mxu0 0
        %1760 = vmatpush.bf16.xpose.msra.mxu0 0
        %1761 = vmatpush.bf16.xpose.msra.mxu0 0
        %1762 = vmatpush.bf16.xpose.msra.mxu0 0
        %1763 = vmatpush.bf16.xpose.msra.mxu0 0
        %1764 = vmatpush.bf16.xpose.msra.mxu0 0
        %1765 = vmatpush.bf16.xpose.msra.mxu0 %v1757
        %1766 = vmatpush.bf16.xpose.msra.mxu0 %v1754
        %1767 = vmatmul.bf16.gmra.mxu0 %v1748
        %v1768 = vpop.f32.mrf.mxu0
        %v1769 = vadd.f32 0.0, %v1768
        %v1770 = vpop.f32.mrf.mxu0
        %v1771 = vadd.f32 0.0, %v1770
        %1772 = vmatmul.bf16.gmra.mxu0 %v1751
        %v1773 = vpop.f32.mrf.mxu0
        %v1774 = vadd.f32 0.0, %v1773
        %v1775 = vpop.f32.mrf.mxu0
        %1776 = vdwg.mxu0
        %v1777 = vmul.f32 %v1723, 0.125
        %v1778 = vmul.f32 %v1725, 0.125
        %v1779 = vmul.f32 %v1728, 0.125
        %v1780 = vmul.f32 %v1769, 0.125
        %v1781 = vmul.f32 %v1771, 0.125
        %v1782 = vmul.f32 %v1774, 0.125
        %v1783 = vadd.f32 %v1777, %v1649
        %v1784 = vadd.f32 %v1778, %v1649
        %v1785 = vadd.f32 %v1779, %v1649
        %v1786 = vadd.f32 %v1780, %v1649
        %v1787 = vadd.f32 %v1781, %v1649
        %v1788 = vadd.f32 %v1782, %v1649
        %vm1789 = vcmask 195584
        %v1790 = vsel %vm1789, %v1783, -inf
        %1791 = vmax.xlane.f32.xlu0 %v1790
        %v1792 = vpop.xlane.xlu0 %1791
        %v1793 = vsel %vm1789, %v1784, -inf
        %1794 = vmax.xlane.f32.xlu0 %v1793
        %v1795 = vpop.xlane.xlu0 %1794
        %v1796 = vsel %vm1789, %v1785, -inf
        %1797 = vmax.xlane.f32.xlu0 %v1796
        %v1798 = vpop.xlane.xlu0 %1797
        %v1799 = vsel %vm1789, %v1786, -inf
        %1800 = vmax.xlane.f32.xlu0 %v1799
        %v1801 = vpop.xlane.xlu0 %1800
        %v1802 = vsel %vm1789, %v1787, -inf
        %1803 = vmax.xlane.f32.xlu0 %v1802
        %v1804 = vpop.xlane.xlu0 %1803
        %v1805 = vsel %vm1789, %v1788, -inf
        %1806 = vmax.xlane.f32.xlu0 %v1805
        %v1807 = vpop.xlane.xlu0 %1806
        %v1808 = vsub.f32 %v1783, %v1792
        %v1809 = vsub.f32 %v1784, %v1795
        %v1810 = vsub.f32 %v1785, %v1798
        %v1811 = vsub.f32 %v1786, %v1801
        %v1812 = vsub.f32 %v1787, %v1804
        %v1813 = vsub.f32 %v1788, %v1807
        %v1814 = vmul.f32 %v1808, 1.442695
        %v1815 = vpow.pop %v1814
        %v1816 = vmul.f32 %v1809, 1.442695
        %v1817 = vpow.pop %v1816
        %v1818 = vmul.f32 %v1810, 1.442695
        %v1819 = vpow.pop %v1818
        %v1820 = vmul.f32 %v1811, 1.442695
        %v1821 = vpow.pop %v1820
        %v1822 = vmul.f32 %v1812, 1.442695
        %v1823 = vpow.pop %v1822
        %v1824 = vmul.f32 %v1813, 1.442695
        %v1825 = vpow.pop %v1824
        %v1826 = vsel %vm1789, %v1815, 0.0
        %1827 = vadd.xlane.f32.xlu0 %v1826
        %v1828 = vpop.xlane.xlu0 %1827
        %v1829 = vsel %vm1789, %v1817, 0.0
        %1830 = vadd.xlane.f32.xlu0 %v1829
        %v1831 = vpop.xlane.xlu0 %1830
        %v1832 = vsel %vm1789, %v1819, 0.0
        %1833 = vadd.xlane.f32.xlu0 %v1832
        %v1834 = vpop.xlane.xlu0 %1833
        %v1835 = vsel %vm1789, %v1821, 0.0
        %1836 = vadd.xlane.f32.xlu0 %v1835
        %v1837 = vpop.xlane.xlu0 %1836
        %v1838 = vsel %vm1789, %v1823, 0.0
        %1839 = vadd.xlane.f32.xlu0 %v1838
        %v1840 = vpop.xlane.xlu0 %1839
        %v1841 = vsel %vm1789, %v1825, 0.0
        %1842 = vadd.xlane.f32.xlu0 %v1841
        %v1843 = vpop.xlane.xlu0 %1842
        %v1844 = vrcp.pop %v1828
        %v1845 = vrcp.pop %v1831
        %v1846 = vrcp.pop %v1834
        %v1847 = vrcp.pop %v1837
        %v1848 = vrcp.pop %v1840
        %v1849 = vrcp.pop %v1843
        %v1850 = vmul.f32 %v1815, %v1844
        %v1851 = vmul.f32 %v1817, %v1845
        %v1852 = vmul.f32 %v1819, %v1846
        %v1853 = vmul.f32 %v1821, %v1847
        %v1854 = vmul.f32 %v1823, %v1848
        %v1855 = vmul.f32 %v1825, %v1849
        %v1856 = vpack.c.bf16 %v1850, %v1850
        %v1857 = vpack.c.bf16 %v1851, %v1851
        %v1858 = vpack.c.bf16 %v1852, %v1852
        %v1859 = vpack.c.bf16 %v1853, %v1853
        %v1860 = vpack.c.bf16 %v1854, %v1854
        %v1861 = vpack.c.bf16 %v1855, %v1855
        %v1865 = vunpack.c.l.b16 %v1856
        %v1866 = vunpack.c.l.b16 %v1857
        %v1867 = vunpack.c.l.b16 %v1858
        %v1868 = vpack.c.b16 %v1866, %v1865
        %v1869 = vpack.c.b16 %v1867, %v1867
        %v1873 = vunpack.c.l.b16 %v1678
        %v1874 = vunpack.c.l.b16 %v1679
        %v1875 = vunpack.c.l.b16 %v1680
        %v1876 = vpack.c.b16 %v1874, %v1873
        %v1877 = vpack.c.b16 %v1875, %v1875
        %v1880 = vsel %vm1789, %v1868, 0
        %v1883 = vsel %vm1789, %v1869, 0
        %vm1885 = vcmask 1043456
        %v1887 = vsel %vm1885, %v1877, 0
        %1889 = vmatpush.bf16.msra.mxu0 0
        %1890 = vmatpush.bf16.msra.mxu0 0
        %1891 = vmatpush.bf16.msra.mxu0 0
        %1892 = vmatpush.bf16.msra.mxu0 0
        %1893 = vmatpush.bf16.msra.mxu0 0
        %1894 = vmatpush.bf16.msra.mxu0 0
        %1895 = vmatpush.bf16.msra.mxu0 %v1887
        %1896 = vmatpush.bf16.msra.mxu0 %v1876
        %1897 = vmatmul.bf16.gmra.mxu0 %v1880
        %v1898 = vpop.f32.mrf.mxu0
        %v1899 = vadd.f32 0.0, %v1898
        %v1900 = vpop.f32.mrf.mxu0
        %v1901 = vadd.f32 0.0, %v1900
        %1902 = vmatmul.bf16.gmra.mxu0 %v1883
        %v1903 = vpop.f32.mrf.mxu0
        %v1904 = vadd.f32 0.0, %v1903
        %v1905 = vpop.f32.mrf.mxu0
        %1906 = vdwg.mxu0
        %v1910 = vunpack.c.l.b16 %v1859
        %v1911 = vunpack.c.l.b16 %v1860
        %v1912 = vunpack.c.l.b16 %v1861
        %v1913 = vpack.c.b16 %v1911, %v1910
        %v1914 = vpack.c.b16 %v1912, %v1912
        %v1918 = vunpack.c.l.b16 %v1681
        %v1919 = vunpack.c.l.b16 %v1682
        %v1920 = vunpack.c.l.b16 %v1683
        %v1921 = vpack.c.b16 %v1919, %v1918
        %v1922 = vpack.c.b16 %v1920, %v1920
        %v1925 = vsel %vm1789, %v1913, 0
        %v1928 = vsel %vm1789, %v1914, 0
        %v1931 = vsel %vm1885, %v1922, 0
        %1933 = vmatpush.bf16.msra.mxu0 0
        %1934 = vmatpush.bf16.msra.mxu0 0
        %1935 = vmatpush.bf16.msra.mxu0 0
        %1936 = vmatpush.bf16.msra.mxu0 0
        %1937 = vmatpush.bf16.msra.mxu0 0
        %1938 = vmatpush.bf16.msra.mxu0 0
        %1939 = vmatpush.bf16.msra.mxu0 %v1931
        %1940 = vmatpush.bf16.msra.mxu0 %v1921
        %1941 = vmatmul.bf16.gmra.mxu0 %v1925
        %v1942 = vpop.f32.mrf.mxu0
        %v1943 = vadd.f32 0.0, %v1942
        %v1944 = vpop.f32.mrf.mxu0
        %v1945 = vadd.f32 0.0, %v1944
        %1946 = vmatmul.bf16.gmra.mxu0 %v1928
        %v1947 = vpop.f32.mrf.mxu0
        %v1948 = vadd.f32 0.0, %v1947
        %v1949 = vpop.f32.mrf.mxu0
        %1950 = vdwg.mxu0
        %v1951 = vpack.c.bf16 %v1901, %v1899
        %v1952 = vpack.c.bf16 %v1943, %v1904
        %v1953 = vpack.c.bf16 %v1948, %v1945
        %1954 = vrot.lane.b32.xlu0 %v1690, 64
        %v1955 = vpop.permute.xlu0 %1954
        %1956 = vrot.lane.b32.xlu0 %v1691, 64
        %v1957 = vpop.permute.xlu0 %1956
        %1958 = vrot.lane.b32.xlu0 %v1698, 64
        %v1959 = vpop.permute.xlu0 %1958
        %1960 = vrot.lane.b32.xlu0 %v1699, 64
        %v1961 = vpop.permute.xlu0 %1960
        %v1963 = vsel %vm1700, %v1955, 0
        %v1966 = vsel %vm1700, %v1957, 0
        %v1969 = vsel %vm1700, %v1959, 0
        %v1972 = vsel %vm1700, %v1961, 0
        %1974 = vmatpush.bf16.xpose.msra.mxu0 0
        %1975 = vmatpush.bf16.xpose.msra.mxu0 0
        %1976 = vmatpush.bf16.xpose.msra.mxu0 0
        %1977 = vmatpush.bf16.xpose.msra.mxu0 0
        %1978 = vmatpush.bf16.xpose.msra.mxu0 0
        %1979 = vmatpush.bf16.xpose.msra.mxu0 0
        %1980 = vmatpush.bf16.xpose.msra.mxu0 %v1972
        %1981 = vmatpush.bf16.xpose.msra.mxu0 %v1969
        %1982 = vmatmul.bf16.gmra.mxu0 %v1963
        %v1983 = vpop.f32.mrf.mxu0
        %v1984 = vadd.f32 0.0, %v1983
        %v1985 = vpop.f32.mrf.mxu0
        %v1986 = vadd.f32 0.0, %v1985
        %1987 = vmatmul.bf16.gmra.mxu0 %v1966
        %v1988 = vpop.f32.mrf.mxu0
        %v1989 = vadd.f32 0.0, %v1988
        %v1990 = vpop.f32.mrf.mxu0
        %1991 = vdwg.mxu0
        %1992 = vrot.lane.b32.xlu0 %v1737, 64
        %v1993 = vpop.permute.xlu0 %1992
        %1994 = vrot.lane.b32.xlu0 %v1738, 64
        %v1995 = vpop.permute.xlu0 %1994
        %1996 = vrot.lane.b32.xlu0 %v1745, 64
        %v1997 = vpop.permute.xlu0 %1996
        %1998 = vrot.lane.b32.xlu0 %v1746, 64
        %v1999 = vpop.permute.xlu0 %1998
        %v2001 = vsel %vm1700, %v1993, 0
        %v2004 = vsel %vm1700, %v1995, 0
        %v2007 = vsel %vm1700, %v1997, 0
        %v2010 = vsel %vm1700, %v1999, 0
        %2012 = vmatpush.bf16.xpose.msra.mxu0 0
        %2013 = vmatpush.bf16.xpose.msra.mxu0 0
        %2014 = vmatpush.bf16.xpose.msra.mxu0 0
        %2015 = vmatpush.bf16.xpose.msra.mxu0 0
        %2016 = vmatpush.bf16.xpose.msra.mxu0 0
        %2017 = vmatpush.bf16.xpose.msra.mxu0 0
        %2018 = vmatpush.bf16.xpose.msra.mxu0 %v2010
        %2019 = vmatpush.bf16.xpose.msra.mxu0 %v2007
        %2020 = vmatmul.bf16.gmra.mxu0 %v2001
        %v2021 = vpop.f32.mrf.mxu0
        %v2022 = vadd.f32 0.0, %v2021
        %v2023 = vpop.f32.mrf.mxu0
        %v2024 = vadd.f32 0.0, %v2023
        %2025 = vmatmul.bf16.gmra.mxu0 %v2004
        %v2026 = vpop.f32.mrf.mxu0
        %v2027 = vadd.f32 0.0, %v2026
        %v2028 = vpop.f32.mrf.mxu0
        %2029 = vdwg.mxu0
        %v2030 = vmul.f32 %v1984, 0.125
        %v2031 = vmul.f32 %v1986, 0.125
        %v2032 = vmul.f32 %v1989, 0.125
        %v2033 = vmul.f32 %v2022, 0.125
        %v2034 = vmul.f32 %v2024, 0.125
        %v2035 = vmul.f32 %v2027, 0.125
        %v2036 = vadd.f32 %v2030, %v1649
        %v2037 = vadd.f32 %v2031, %v1649
        %v2038 = vadd.f32 %v2032, %v1649
        %v2039 = vadd.f32 %v2033, %v1649
        %v2040 = vadd.f32 %v2034, %v1649
        %v2041 = vadd.f32 %v2035, %v1649
        %v2042 = vsel %vm1789, %v2036, -inf
        %2043 = vmax.xlane.f32.xlu0 %v2042
        %v2044 = vpop.xlane.xlu0 %2043
        %v2045 = vsel %vm1789, %v2037, -inf
        %2046 = vmax.xlane.f32.xlu0 %v2045
        %v2047 = vpop.xlane.xlu0 %2046
        %v2048 = vsel %vm1789, %v2038, -inf
        %2049 = vmax.xlane.f32.xlu0 %v2048
        %v2050 = vpop.xlane.xlu0 %2049
        %v2051 = vsel %vm1789, %v2039, -inf
        %2052 = vmax.xlane.f32.xlu0 %v2051
        %v2053 = vpop.xlane.xlu0 %2052
        %v2054 = vsel %vm1789, %v2040, -inf
        %2055 = vmax.xlane.f32.xlu0 %v2054
        %v2056 = vpop.xlane.xlu0 %2055
        %v2057 = vsel %vm1789, %v2041, -inf
        %2058 = vmax.xlane.f32.xlu0 %v2057
        %v2059 = vpop.xlane.xlu0 %2058
        %v2060 = vsub.f32 %v2036, %v2044
        %v2061 = vsub.f32 %v2037, %v2047
        %v2062 = vsub.f32 %v2038, %v2050
        %v2063 = vsub.f32 %v2039, %v2053
        %v2064 = vsub.f32 %v2040, %v2056
        %v2065 = vsub.f32 %v2041, %v2059
        %v2066 = vmul.f32 %v2060, 1.442695
        %v2067 = vpow.pop %v2066
        %v2068 = vmul.f32 %v2061, 1.442695
        %v2069 = vpow.pop %v2068
        %v2070 = vmul.f32 %v2062, 1.442695
        %v2071 = vpow.pop %v2070
        %v2072 = vmul.f32 %v2063, 1.442695
        %v2073 = vpow.pop %v2072
        %v2074 = vmul.f32 %v2064, 1.442695
        %v2075 = vpow.pop %v2074
        %v2076 = vmul.f32 %v2065, 1.442695
        %v2077 = vpow.pop %v2076
        %v2078 = vsel %vm1789, %v2067, 0.0
        %2079 = vadd.xlane.f32.xlu0 %v2078
        %v2080 = vpop.xlane.xlu0 %2079
        %v2081 = vsel %vm1789, %v2069, 0.0
        %2082 = vadd.xlane.f32.xlu0 %v2081
        %v2083 = vpop.xlane.xlu0 %2082
        %v2084 = vsel %vm1789, %v2071, 0.0
        %2085 = vadd.xlane.f32.xlu0 %v2084
        %v2086 = vpop.xlane.xlu0 %2085
        %v2087 = vsel %vm1789, %v2073, 0.0
        %2088 = vadd.xlane.f32.xlu0 %v2087
        %v2089 = vpop.xlane.xlu0 %2088
        %v2090 = vsel %vm1789, %v2075, 0.0
        %2091 = vadd.xlane.f32.xlu0 %v2090
        %v2092 = vpop.xlane.xlu0 %2091
        %v2093 = vsel %vm1789, %v2077, 0.0
        %2094 = vadd.xlane.f32.xlu0 %v2093
        %v2095 = vpop.xlane.xlu0 %2094
        %v2096 = vrcp.pop %v2080
        %v2097 = vrcp.pop %v2083
        %v2098 = vrcp.pop %v2086
        %v2099 = vrcp.pop %v2089
        %v2100 = vrcp.pop %v2092
        %v2101 = vrcp.pop %v2095
        %v2102 = vmul.f32 %v2067, %v2096
        %v2103 = vmul.f32 %v2069, %v2097
        %v2104 = vmul.f32 %v2071, %v2098
        %v2105 = vmul.f32 %v2073, %v2099
        %v2106 = vmul.f32 %v2075, %v2100
        %v2107 = vmul.f32 %v2077, %v2101
        %v2108 = vpack.c.bf16 %v2102, %v2102
        %v2109 = vpack.c.bf16 %v2103, %v2103
        %v2110 = vpack.c.bf16 %v2104, %v2104
        %v2111 = vpack.c.bf16 %v2105, %v2105
        %v2112 = vpack.c.bf16 %v2106, %v2106
        %v2113 = vpack.c.bf16 %v2107, %v2107
        %v2117 = vunpack.c.l.b16 %v2108
        %v2118 = vunpack.c.l.b16 %v2109
        %v2119 = vunpack.c.l.b16 %v2110
        %v2120 = vpack.c.b16 %v2118, %v2117
        %v2121 = vpack.c.b16 %v2119, %v2119
        %2122 = vrot.lane.b32.xlu0 %v1876, 64
        %v2123 = vpop.permute.xlu0 %2122
        %2124 = vrot.lane.b32.xlu0 %v1877, 64
        %v2125 = vpop.permute.xlu0 %2124
        %v2128 = vsel %vm1789, %v2120, 0
        %v2131 = vsel %vm1789, %v2121, 0
        %v2134 = vsel %vm1885, %v2125, 0
        %2136 = vmatpush.bf16.msra.mxu0 0
        %2137 = vmatpush.bf16.msra.mxu0 0
        %2138 = vmatpush.bf16.msra.mxu0 0
        %2139 = vmatpush.bf16.msra.mxu0 0
        %2140 = vmatpush.bf16.msra.mxu0 0
        %2141 = vmatpush.bf16.msra.mxu0 0
        %2142 = vmatpush.bf16.msra.mxu0 %v2134
        %2143 = vmatpush.bf16.msra.mxu0 %v2123
        %2144 = vmatmul.bf16.gmra.mxu0 %v2128
        %v2145 = vpop.f32.mrf.mxu0
        %v2146 = vadd.f32 0.0, %v2145
        %v2147 = vpop.f32.mrf.mxu0
        %v2148 = vadd.f32 0.0, %v2147
        %2149 = vmatmul.bf16.gmra.mxu0 %v2131
        %v2150 = vpop.f32.mrf.mxu0
        %v2151 = vadd.f32 0.0, %v2150
        %v2152 = vpop.f32.mrf.mxu0
        %2153 = vdwg.mxu0
        %v2157 = vunpack.c.l.b16 %v2111
        %v2158 = vunpack.c.l.b16 %v2112
        %v2159 = vunpack.c.l.b16 %v2113
        %v2160 = vpack.c.b16 %v2158, %v2157
        %v2161 = vpack.c.b16 %v2159, %v2159
        %2162 = vrot.lane.b32.xlu0 %v1921, 64
        %v2163 = vpop.permute.xlu0 %2162
        %2164 = vrot.lane.b32.xlu0 %v1922, 64
        %v2165 = vpop.permute.xlu0 %2164
        %v2168 = vsel %vm1789, %v2160, 0
        %v2171 = vsel %vm1789, %v2161, 0
        %v2174 = vsel %vm1885, %v2165, 0
        %2176 = vmatpush.bf16.msra.mxu0 0
        %2177 = vmatpush.bf16.msra.mxu0 0
        %2178 = vmatpush.bf16.msra.mxu0 0
        %2179 = vmatpush.bf16.msra.mxu0 0
        %2180 = vmatpush.bf16.msra.mxu0 0
        %2181 = vmatpush.bf16.msra.mxu0 0
        %2182 = vmatpush.bf16.msra.mxu0 %v2174
        %2183 = vmatpush.bf16.msra.mxu0 %v2163
        %2184 = vmatmul.bf16.gmra.mxu0 %v2168
        %v2185 = vpop.f32.mrf.mxu0
        %v2186 = vadd.f32 0.0, %v2185
        %v2187 = vpop.f32.mrf.mxu0
        %v2188 = vadd.f32 0.0, %v2187
        %2189 = vmatmul.bf16.gmra.mxu0 %v2171
        %v2190 = vpop.f32.mrf.mxu0
        %v2191 = vadd.f32 0.0, %v2190
        %v2192 = vpop.f32.mrf.mxu0
        %2193 = vdwg.mxu0
        %v2194 = vpack.c.bf16 %v2148, %v2146
        %v2195 = vpack.c.bf16 %v2186, %v2151
        %v2196 = vpack.c.bf16 %v2191, %v2188
        %v2205 = vunpack.c.l.b16 %v1658
        %v2206 = vunpack.c.l.b16 %v1659
        %v2207 = vunpack.c.l.b16 %v1660
        %v2208 = vunpack.c.l.b16 %v1661
        %v2209 = vunpack.c.l.b16 %v1662
        %v2210 = vunpack.c.l.b16 %v1663
        %v2211 = vunpack.c.l.b16 %v1664
        %v2212 = vunpack.c.l.b16 %v1665
        %v2213 = vpack.c.b16 %v2206, %v2205
        %v2214 = vpack.c.b16 %v2208, %v2207
        %v2215 = vpack.c.b16 %v2210, %v2209
        %v2216 = vpack.c.b16 %v2212, %v2211
        %v2222 = vsel %vm1700, %v2194, 0
        %v2225 = vsel %vm1700, %v2195, 0
        %v2228 = vsel %vm1700, %v2196, 0
        %2230 = vmatpush.bf16.msra.mxu0 0
        %2231 = vmatpush.bf16.msra.mxu0 0
        %2232 = vmatpush.bf16.msra.mxu0 0
        %2233 = vmatpush.bf16.msra.mxu0 0
        %2234 = vmatpush.bf16.msra.mxu0 %v2216
        %2235 = vmatpush.bf16.msra.mxu0 %v2215
        %2236 = vmatpush.bf16.msra.mxu0 %v2214
        %2237 = vmatpush.bf16.msra.mxu0 %v2213
        %2238 = vmatmul.bf16.gmra.mxu0 %v2222
        %v2239 = vpop.f32.mrf.mxu0
        %v2240 = vadd.f32 0.0, %v2239
        %v2241 = vpop.f32.mrf.mxu0
        %v2242 = vadd.f32 0.0, %v2241
        %2243 = vmatmul.bf16.gmra.mxu0 %v2225
        %v2244 = vpop.f32.mrf.mxu0
        %v2245 = vadd.f32 0.0, %v2244
        %v2246 = vpop.f32.mrf.mxu0
        %v2247 = vadd.f32 0.0, %v2246
        %2248 = vmatmul.bf16.gmra.mxu0 %v2228
        %v2249 = vpop.f32.mrf.mxu0
        %v2250 = vadd.f32 0.0, %v2249
        %v2251 = vpop.f32.mrf.mxu0
        %v2252 = vadd.f32 0.0, %v2251
        %2253 = vdwg.mxu0
        %v2262 = vunpack.c.l.b16 %v1650
        %v2263 = vunpack.c.l.b16 %v1651
        %v2264 = vunpack.c.l.b16 %v1652
        %v2265 = vunpack.c.l.b16 %v1653
        %v2266 = vunpack.c.l.b16 %v1654
        %v2267 = vunpack.c.l.b16 %v1655
        %v2268 = vunpack.c.l.b16 %v1656
        %v2269 = vunpack.c.l.b16 %v1657
        %v2270 = vpack.c.b16 %v2263, %v2262
        %v2271 = vpack.c.b16 %v2265, %v2264
        %v2272 = vpack.c.b16 %v2267, %v2266
        %v2273 = vpack.c.b16 %v2269, %v2268
        %v2279 = vsel %vm1700, %v1951, 0
        %v2282 = vsel %vm1700, %v1952, 0
        %v2285 = vsel %vm1700, %v1953, 0
        %2287 = vmatpush.bf16.msra.mxu0 0
        %2288 = vmatpush.bf16.msra.mxu0 0
        %2289 = vmatpush.bf16.msra.mxu0 0
        %2290 = vmatpush.bf16.msra.mxu0 0
        %2291 = vmatpush.bf16.msra.mxu0 %v2273
        %2292 = vmatpush.bf16.msra.mxu0 %v2272
        %2293 = vmatpush.bf16.msra.mxu0 %v2271
        %2294 = vmatpush.bf16.msra.mxu0 %v2270
        %2295 = vmatmul.bf16.gmra.mxu0 %v2279
        %v2296 = vpop.f32.mrf.mxu0
        %v2297 = vadd.f32 %v2240, %v2296
        %v2298 = vpop.f32.mrf.mxu0
        %v2299 = vadd.f32 %v2242, %v2298
        %2300 = vmatmul.bf16.gmra.mxu0 %v2282
        %v2301 = vpop.f32.mrf.mxu0
        %v2302 = vadd.f32 %v2245, %v2301
        %v2303 = vpop.f32.mrf.mxu0
        %v2304 = vadd.f32 %v2247, %v2303
        %2305 = vmatmul.bf16.gmra.mxu0 %v2285
        %v2306 = vpop.f32.mrf.mxu0
        %v2307 = vadd.f32 %v2250, %v2306
        %v2308 = vpop.f32.mrf.mxu0
        %v2309 = vadd.f32 %v2252, %v2308
        %2310 = vdwg.mxu0
        %v2311 = vadd.f32 %v1255, %v2297
        %v2312 = vadd.f32 %v1256, %v2299
        %v2313 = vadd.f32 %v1257, %v2302
        %v2314 = vadd.f32 %v1258, %v2304
        %v2315 = vadd.f32 %v1259, %v2307
        %v2316 = vadd.f32 %v1260, %v2309
        %v2317 = vld [vmem:[%s644] sm:$0x1]
        %v2319 = vperm.slane %v2317, 0
        %v2321 = vadd.f32 %v2311, %v2319
        %v2322 = vadd.f32 %v2312, %v2319
        %v2323 = vadd.f32 %v2313, %v2319
        %v2324 = vadd.f32 %v2314, %v2319
        %v2325 = vadd.f32 %v2315, %v2319
        %v2326 = vadd.f32 %v2316, %v2319
        %2327 = vadd.xlane.f32.xlu0 %v2321
        %v2328 = vpop.xlane.xlu0 %2327
        %2329 = vadd.xlane.f32.xlu0 %v2322
        %v2330 = vpop.xlane.xlu0 %2329
        %2331 = vadd.xlane.f32.xlu0 %v2323
        %v2332 = vpop.xlane.xlu0 %2331
        %2333 = vadd.xlane.f32.xlu0 %v2324
        %v2334 = vpop.xlane.xlu0 %2333
        %2335 = vadd.xlane.f32.xlu0 %v2325
        %v2336 = vpop.xlane.xlu0 %2335
        %2337 = vadd.xlane.f32.xlu0 %v2326
        %v2338 = vpop.xlane.xlu0 %2337
        %v2339 = vmul.f32 %v2328, %v1280
        %v2340 = vmul.f32 %v2330, %v1280
        %v2341 = vmul.f32 %v2332, %v1280
        %v2342 = vmul.f32 %v2334, %v1280
        %v2343 = vmul.f32 %v2336, %v1280
        %v2344 = vmul.f32 %v2338, %v1280
        %v2345 = vsub.f32 %v2321, %v2339
        %v2346 = vsub.f32 %v2322, %v2340
        %v2347 = vsub.f32 %v2323, %v2341
        %v2348 = vsub.f32 %v2324, %v2342
        %v2349 = vsub.f32 %v2325, %v2343
        %v2350 = vsub.f32 %v2326, %v2344
        %v2351 = vmul.f32 %v2345, %v2345
        %v2352 = vmul.f32 %v2346, %v2346
        %v2353 = vmul.f32 %v2347, %v2347
        %v2354 = vmul.f32 %v2348, %v2348
        %v2355 = vmul.f32 %v2349, %v2349
        %v2356 = vmul.f32 %v2350, %v2350
        %2357 = vadd.xlane.f32.xlu0 %v2351
        %v2358 = vpop.xlane.xlu0 %2357
        %2359 = vadd.xlane.f32.xlu0 %v2352
        %v2360 = vpop.xlane.xlu0 %2359
        %2361 = vadd.xlane.f32.xlu0 %v2353
        %v2362 = vpop.xlane.xlu0 %2361
        %2363 = vadd.xlane.f32.xlu0 %v2354
        %v2364 = vpop.xlane.xlu0 %2363
        %2365 = vadd.xlane.f32.xlu0 %v2355
        %v2366 = vpop.xlane.xlu0 %2365
        %2367 = vadd.xlane.f32.xlu0 %v2356
        %v2368 = vpop.xlane.xlu0 %2367
        %v2369 = vmul.f32 %v2358, %v1280
        %v2370 = vmul.f32 %v2360, %v1280
        %v2371 = vmul.f32 %v2362, %v1280
        %v2372 = vmul.f32 %v2364, %v1280
        %v2373 = vmul.f32 %v2366, %v1280
        %v2374 = vmul.f32 %v2368, %v1280
        %v2375 = vadd.f32 %v2369, 1e-06
        %v2376 = vadd.f32 %v2370, 1e-06
        %v2377 = vadd.f32 %v2371, 1e-06
        %v2378 = vadd.f32 %v2372, 1e-06
        %v2379 = vadd.f32 %v2373, 1e-06
        %v2380 = vadd.f32 %v2374, 1e-06
        %v2381 = vrsqrt.pop %v2375
        %v2382 = vmul.f32 %v2381, %v2375
        %v2383 = vmul.f32 %v2382, %v2381
        %v2384 = vmul.f32 0.5, %v2383
        %v2385 = vsub.f32 1.5, %v2384
        %v2386 = vmul.f32 %v2381, %v2385
        %vm2387 = vweird.f32 %v2375
        %vm2388 = vweird.f32 %v2381
        %vm2389 = vmor %vm2387, %vm2388
        %v2390 = vsel %vm2389, %v2381, %v2386
        %v2391 = vrsqrt.pop %v2376
        %v2392 = vmul.f32 %v2391, %v2376
        %v2393 = vmul.f32 %v2392, %v2391
        %v2394 = vmul.f32 0.5, %v2393
        %v2395 = vsub.f32 1.5, %v2394
        %v2396 = vmul.f32 %v2391, %v2395
        %vm2397 = vweird.f32 %v2376
        %vm2398 = vweird.f32 %v2391
        %vm2399 = vmor %vm2397, %vm2398
        %v2400 = vsel %vm2399, %v2391, %v2396
        %v2401 = vrsqrt.pop %v2377
        %v2402 = vmul.f32 %v2401, %v2377
        %v2403 = vmul.f32 %v2402, %v2401
        %v2404 = vmul.f32 0.5, %v2403
        %v2405 = vsub.f32 1.5, %v2404
        %v2406 = vmul.f32 %v2401, %v2405
        %vm2407 = vweird.f32 %v2377
        %vm2408 = vweird.f32 %v2401
        %vm2409 = vmor %vm2407, %vm2408
        %v2410 = vsel %vm2409, %v2401, %v2406
        %v2411 = vrsqrt.pop %v2378
        %v2412 = vmul.f32 %v2411, %v2378
        %v2413 = vmul.f32 %v2412, %v2411
        %v2414 = vmul.f32 0.5, %v2413
        %v2415 = vsub.f32 1.5, %v2414
        %v2416 = vmul.f32 %v2411, %v2415
        %vm2417 = vweird.f32 %v2378
        %vm2418 = vweird.f32 %v2411
        %vm2419 = vmor %vm2417, %vm2418
        %v2420 = vsel %vm2419, %v2411, %v2416
        %v2421 = vrsqrt.pop %v2379
        %v2422 = vmul.f32 %v2421, %v2379
        %v2423 = vmul.f32 %v2422, %v2421
        %v2424 = vmul.f32 0.5, %v2423
        %v2425 = vsub.f32 1.5, %v2424
        %v2426 = vmul.f32 %v2421, %v2425
        %vm2427 = vweird.f32 %v2379
        %vm2428 = vweird.f32 %v2421
        %vm2429 = vmor %vm2427, %vm2428
        %v2430 = vsel %vm2429, %v2421, %v2426
        %v2431 = vrsqrt.pop %v2380
        %v2432 = vmul.f32 %v2431, %v2380
        %v2433 = vmul.f32 %v2432, %v2431
        %v2434 = vmul.f32 0.5, %v2433
        %v2435 = vsub.f32 1.5, %v2434
        %v2436 = vmul.f32 %v2431, %v2435
        %vm2437 = vweird.f32 %v2380
        %vm2438 = vweird.f32 %v2431
        %vm2439 = vmor %vm2437, %vm2438
        %v2440 = vsel %vm2439, %v2431, %v2436
        %v2441 = vmul.f32 %v2345, %v2390
        %v2442 = vmul.f32 %v2346, %v2400
        %v2443 = vmul.f32 %v2347, %v2410
        %v2444 = vmul.f32 %v2348, %v2420
        %v2445 = vmul.f32 %v2349, %v2430
        %v2446 = vmul.f32 %v2350, %v2440
        %v2447 = vperm.slane %v1261, 2
        %v2448 = vmul.f32 %v2441, %v2447
        %v2449 = vmul.f32 %v2442, %v2447
        %v2450 = vmul.f32 %v2443, %v2447
        %v2451 = vmul.f32 %v2444, %v2447
        %v2452 = vmul.f32 %v2445, %v2447
        %v2453 = vmul.f32 %v2446, %v2447
        %v2454 = vperm.slane %v1261, 3
        %v2455 = vadd.f32 %v2448, %v2454
        %v2456 = vadd.f32 %v2449, %v2454
        %v2457 = vadd.f32 %v2450, %v2454
        %v2458 = vadd.f32 %v2451, %v2454
        %v2459 = vadd.f32 %v2452, %v2454
        %v2460 = vadd.f32 %v2453, %v2454
        %v2461 = vpack.c.bf16 %v2456, %v2455
        %v2462 = vpack.c.bf16 %v2458, %v2457
        %v2463 = vpack.c.bf16 %v2460, %v2459
        %v2464 = vld [vmem:[%s649] sm:$0xff]
        %v2465 = vld [vmem:[%s649 + $0x8] sm:$0xff]
        %v2466 = vld [vmem:[%s649 + $0x10] sm:$0xff]
        %v2467 = vld [vmem:[%s649 + $0x18] sm:$0xff]
        %v2468 = vld [vmem:[%s649 + $0x20] sm:$0xff]
        %v2469 = vld [vmem:[%s649 + $0x28] sm:$0xff]
        %v2470 = vld [vmem:[%s649 + $0x30] sm:$0xff]
        %v2471 = vld [vmem:[%s649 + $0x38] sm:$0xff]
        %v2472 = vld [vmem:[%s649 + $0x40] sm:$0xff]
        %v2473 = vld [vmem:[%s649 + $0x48] sm:$0xff]
        %v2474 = vld [vmem:[%s649 + $0x50] sm:$0xff]
        %v2475 = vld [vmem:[%s649 + $0x58] sm:$0xff]
        %v2476 = vld [vmem:[%s649 + $0x60] sm:$0xff]
        %v2477 = vld [vmem:[%s649 + $0x68] sm:$0xff]
        %v2478 = vld [vmem:[%s649 + $0x70] sm:$0xff]
        %v2479 = vld [vmem:[%s649 + $0x78] sm:$0xff]
        %v2480 = vld [vmem:[%s649 + $0x80] sm:$0xff]
        %v2481 = vld [vmem:[%s649 + $0x88] sm:$0xff]
        %v2482 = vld [vmem:[%s649 + $0x90] sm:$0xff]
        %v2483 = vld [vmem:[%s649 + $0x98] sm:$0xff]
        %v2484 = vld [vmem:[%s649 + $0xa0] sm:$0xff]
        %v2485 = vld [vmem:[%s649 + $0xa8] sm:$0xff]
        %v2486 = vld [vmem:[%s649 + $0xb0] sm:$0xff]
        %v2487 = vld [vmem:[%s649 + $0xb8] sm:$0xff]
        %v2488 = vld [vmem:[%s649 + $0xc0] sm:$0xff]
        %v2489 = vld [vmem:[%s649 + $0xc8] sm:$0xff]
        %v2490 = vld [vmem:[%s649 + $0xd0] sm:$0xff]
        %v2491 = vld [vmem:[%s649 + $0xd8] sm:$0xff]
        %v2492 = vld [vmem:[%s649 + $0xe0] sm:$0xff]
        %v2493 = vld [vmem:[%s649 + $0xe8] sm:$0xff]
        %v2494 = vld [vmem:[%s649 + $0xf0] sm:$0xff]
        %v2495 = vld [vmem:[%s649 + $0xf8] sm:$0xff]
        %v2496 = vld [vmem:[%s653] sm:$0xf]
        %v2498 = vperm.slane %v2496, 0
        %v2499 = vperm.slane %v2496, 1
        %v2500 = vperm.slane %v2496, 2
        %v2501 = vperm.slane %v2496, 3
        %v2538 = vunpack.c.l.b16 %v2464
        %v2539 = vunpack.c.h.b16 %v2464
        %v2540 = vunpack.c.l.b16 %v2465
        %v2541 = vunpack.c.h.b16 %v2465
        %v2542 = vunpack.c.l.b16 %v2466
        %v2543 = vunpack.c.h.b16 %v2466
        %v2544 = vunpack.c.l.b16 %v2467
        %v2545 = vunpack.c.h.b16 %v2467
        %v2546 = vunpack.c.l.b16 %v2468
        %v2547 = vunpack.c.h.b16 %v2468
        %v2548 = vunpack.c.l.b16 %v2469
        %v2549 = vunpack.c.h.b16 %v2469
        %v2550 = vunpack.c.l.b16 %v2470
        %v2551 = vunpack.c.h.b16 %v2470
        %v2552 = vunpack.c.l.b16 %v2471
        %v2553 = vunpack.c.h.b16 %v2471
        %v2554 = vunpack.c.l.b16 %v2472
        %v2555 = vunpack.c.h.b16 %v2472
        %v2556 = vunpack.c.l.b16 %v2473
        %v2557 = vunpack.c.h.b16 %v2473
        %v2558 = vunpack.c.l.b16 %v2474
        %v2559 = vunpack.c.h.b16 %v2474
        %v2560 = vunpack.c.l.b16 %v2475
        %v2561 = vunpack.c.h.b16 %v2475
        %v2562 = vunpack.c.l.b16 %v2476
        %v2563 = vunpack.c.h.b16 %v2476
        %v2564 = vunpack.c.l.b16 %v2477
        %v2565 = vunpack.c.h.b16 %v2477
        %v2566 = vunpack.c.l.b16 %v2478
        %v2567 = vunpack.c.h.b16 %v2478
        %v2568 = vunpack.c.l.b16 %v2479
        %v2569 = vunpack.c.h.b16 %v2479
        %v2570 = vunpack.c.l.b16 %v2480
        %v2571 = vunpack.c.h.b16 %v2480
        %v2572 = vunpack.c.l.b16 %v2481
        %v2573 = vunpack.c.h.b16 %v2481
        %v2574 = vunpack.c.l.b16 %v2482
        %v2575 = vunpack.c.h.b16 %v2482
        %v2576 = vunpack.c.l.b16 %v2483
        %v2577 = vunpack.c.h.b16 %v2483
        %v2578 = vunpack.c.l.b16 %v2484
        %v2579 = vunpack.c.h.b16 %v2484
        %v2580 = vunpack.c.l.b16 %v2485
        %v2581 = vunpack.c.h.b16 %v2485
        %v2582 = vunpack.c.l.b16 %v2486
        %v2583 = vunpack.c.h.b16 %v2486
        %v2584 = vunpack.c.l.b16 %v2487
        %v2585 = vunpack.c.h.b16 %v2487
        %v2586 = vunpack.c.l.b16 %v2488
        %v2587 = vunpack.c.h.b16 %v2488
        %v2588 = vunpack.c.l.b16 %v2489
        %v2589 = vunpack.c.h.b16 %v2489
        %v2590 = vunpack.c.l.b16 %v2490
        %v2591 = vunpack.c.h.b16 %v2490
        %v2592 = vunpack.c.l.b16 %v2491
        %v2593 = vunpack.c.h.b16 %v2491
        %v2594 = vunpack.c.l.b16 %v2492
        %v2595 = vunpack.c.h.b16 %v2492
        %v2596 = vunpack.c.l.b16 %v2493
        %v2597 = vunpack.c.h.b16 %v2493
        %v2598 = vunpack.c.l.b16 %v2494
        %v2599 = vunpack.c.h.b16 %v2494
        %v2600 = vunpack.c.l.b16 %v2495
        %v2601 = vunpack.c.h.b16 %v2495
        %v2602 = vpack.c.b16 %v2542, %v2538
        %v2603 = vpack.c.b16 %v2543, %v2539
        %v2604 = vpack.c.b16 %v2544, %v2540
        %v2605 = vpack.c.b16 %v2545, %v2541
        %v2606 = vpack.c.b16 %v2550, %v2546
        %v2607 = vpack.c.b16 %v2551, %v2547
        %v2608 = vpack.c.b16 %v2552, %v2548
        %v2609 = vpack.c.b16 %v2553, %v2549
        %v2610 = vpack.c.b16 %v2558, %v2554
        %v2611 = vpack.c.b16 %v2559, %v2555
        %v2612 = vpack.c.b16 %v2560, %v2556
        %v2613 = vpack.c.b16 %v2561, %v2557
        %v2614 = vpack.c.b16 %v2566, %v2562
        %v2615 = vpack.c.b16 %v2567, %v2563
        %v2616 = vpack.c.b16 %v2568, %v2564
        %v2617 = vpack.c.b16 %v2569, %v2565
        %v2618 = vpack.c.b16 %v2574, %v2570
        %v2619 = vpack.c.b16 %v2575, %v2571
        %v2620 = vpack.c.b16 %v2576, %v2572
        %v2621 = vpack.c.b16 %v2577, %v2573
        %v2622 = vpack.c.b16 %v2582, %v2578
        %v2623 = vpack.c.b16 %v2583, %v2579
        %v2624 = vpack.c.b16 %v2584, %v2580
        %v2625 = vpack.c.b16 %v2585, %v2581
        %v2626 = vpack.c.b16 %v2590, %v2586
        %v2627 = vpack.c.b16 %v2591, %v2587
        %v2628 = vpack.c.b16 %v2592, %v2588
        %v2629 = vpack.c.b16 %v2593, %v2589
        %v2630 = vpack.c.b16 %v2598, %v2594
        %v2631 = vpack.c.b16 %v2599, %v2595
        %v2632 = vpack.c.b16 %v2600, %v2596
        %v2633 = vpack.c.b16 %v2601, %v2597
        %2666 = vmatpush.bf16.msra.mxu0 %v2630
        %2667 = vmatpush.bf16.msra.mxu0 %v2626
        %2668 = vmatpush.bf16.msra.mxu0 %v2622
        %2669 = vmatpush.bf16.msra.mxu0 %v2618
        %2670 = vmatpush.bf16.msra.mxu0 %v2614
        %2671 = vmatpush.bf16.msra.mxu0 %v2610
        %2672 = vmatpush.bf16.msra.mxu0 %v2606
        %2673 = vmatpush.bf16.msra.mxu0 %v2602
        %2674 = vmatmul.bf16.gmra.mxu0 %v2461
        %v2675 = vpop.f32.mrf.mxu0
        %v2676 = vadd.f32 %v2498, %v2675
        %v2677 = vpop.f32.mrf.mxu0
        %v2678 = vadd.f32 %v2498, %v2677
        %2679 = vmatmul.bf16.gmra.mxu0 %v2462
        %v2680 = vpop.f32.mrf.mxu0
        %v2681 = vadd.f32 %v2498, %v2680
        %v2682 = vpop.f32.mrf.mxu0
        %v2683 = vadd.f32 %v2498, %v2682
        %2684 = vmatmul.bf16.gmra.mxu0 %v2463
        %v2685 = vpop.f32.mrf.mxu0
        %v2686 = vadd.f32 %v2498, %v2685
        %v2687 = vpop.f32.mrf.mxu0
        %v2688 = vadd.f32 %v2498, %v2687
        %2689 = vdwg.mxu0
        %2690 = vmatpush.bf16.msra.mxu0 %v2631
        %2691 = vmatpush.bf16.msra.mxu0 %v2627
        %2692 = vmatpush.bf16.msra.mxu0 %v2623
        %2693 = vmatpush.bf16.msra.mxu0 %v2619
        %2694 = vmatpush.bf16.msra.mxu0 %v2615
        %2695 = vmatpush.bf16.msra.mxu0 %v2611
        %2696 = vmatpush.bf16.msra.mxu0 %v2607
        %2697 = vmatpush.bf16.msra.mxu0 %v2603
        %2698 = vmatmul.bf16.gmra.mxu0 %v2461
        %v2699 = vpop.f32.mrf.mxu0
        %v2700 = vadd.f32 %v2499, %v2699
        %v2701 = vpop.f32.mrf.mxu0
        %v2702 = vadd.f32 %v2499, %v2701
        %2703 = vmatmul.bf16.gmra.mxu0 %v2462
        %v2704 = vpop.f32.mrf.mxu0
        %v2705 = vadd.f32 %v2499, %v2704
        %v2706 = vpop.f32.mrf.mxu0
        %v2707 = vadd.f32 %v2499, %v2706
        %2708 = vmatmul.bf16.gmra.mxu0 %v2463
        %v2709 = vpop.f32.mrf.mxu0
        %v2710 = vadd.f32 %v2499, %v2709
        %v2711 = vpop.f32.mrf.mxu0
        %v2712 = vadd.f32 %v2499, %v2711
        %2713 = vdwg.mxu0
        %2714 = vmatpush.bf16.msra.mxu0 %v2632
        %2715 = vmatpush.bf16.msra.mxu0 %v2628
        %2716 = vmatpush.bf16.msra.mxu0 %v2624
        %2717 = vmatpush.bf16.msra.mxu0 %v2620
        %2718 = vmatpush.bf16.msra.mxu0 %v2616
        %2719 = vmatpush.bf16.msra.mxu0 %v2612
        %2720 = vmatpush.bf16.msra.mxu0 %v2608
        %2721 = vmatpush.bf16.msra.mxu0 %v2604
        %2722 = vmatmul.bf16.gmra.mxu0 %v2461
        %v2723 = vpop.f32.mrf.mxu0
        %v2724 = vadd.f32 %v2500, %v2723
        %v2725 = vpop.f32.mrf.mxu0
        %v2726 = vadd.f32 %v2500, %v2725
        %2727 = vmatmul.bf16.gmra.mxu0 %v2462
        %v2728 = vpop.f32.mrf.mxu0
        %v2729 = vadd.f32 %v2500, %v2728
        %v2730 = vpop.f32.mrf.mxu0
        %v2731 = vadd.f32 %v2500, %v2730
        %2732 = vmatmul.bf16.gmra.mxu0 %v2463
        %v2733 = vpop.f32.mrf.mxu0
        %v2734 = vadd.f32 %v2500, %v2733
        %v2735 = vpop.f32.mrf.mxu0
        %v2736 = vadd.f32 %v2500, %v2735
        %2737 = vdwg.mxu0
        %2738 = vmatpush.bf16.msra.mxu0 %v2633
        %2739 = vmatpush.bf16.msra.mxu0 %v2629
        %2740 = vmatpush.bf16.msra.mxu0 %v2625
        %2741 = vmatpush.bf16.msra.mxu0 %v2621
        %2742 = vmatpush.bf16.msra.mxu0 %v2617
        %2743 = vmatpush.bf16.msra.mxu0 %v2613
        %2744 = vmatpush.bf16.msra.mxu0 %v2609
        %2745 = vmatpush.bf16.msra.mxu0 %v2605
        %2746 = vmatmul.bf16.gmra.mxu0 %v2461
        %v2747 = vpop.f32.mrf.mxu0
        %v2748 = vadd.f32 %v2501, %v2747
        %v2749 = vpop.f32.mrf.mxu0
        %v2750 = vadd.f32 %v2501, %v2749
        %2751 = vmatmul.bf16.gmra.mxu0 %v2462
        %v2752 = vpop.f32.mrf.mxu0
        %v2753 = vadd.f32 %v2501, %v2752
        %v2754 = vpop.f32.mrf.mxu0
        %v2755 = vadd.f32 %v2501, %v2754
        %2756 = vmatmul.bf16.gmra.mxu0 %v2463
        %v2757 = vpop.f32.mrf.mxu0
        %v2758 = vadd.f32 %v2501, %v2757
        %v2759 = vpop.f32.mrf.mxu0
        %v2760 = vadd.f32 %v2501, %v2759
        %2761 = vdwg.mxu0
        %v2762 = vmul.f32 %v2676, %v2676
        %v2763 = vmul.f32 %v2700, %v2700
        %v2764 = vmul.f32 %v2724, %v2724
        %v2765 = vmul.f32 %v2748, %v2748
        %v2766 = vmul.f32 %v2678, %v2678
        %v2767 = vmul.f32 %v2702, %v2702
        %v2768 = vmul.f32 %v2726, %v2726
        %v2769 = vmul.f32 %v2750, %v2750
        %v2770 = vmul.f32 %v2681, %v2681
        %v2771 = vmul.f32 %v2705, %v2705
        %v2772 = vmul.f32 %v2729, %v2729
        %v2773 = vmul.f32 %v2753, %v2753
        %v2774 = vmul.f32 %v2683, %v2683
        %v2775 = vmul.f32 %v2707, %v2707
        %v2776 = vmul.f32 %v2731, %v2731
        %v2777 = vmul.f32 %v2755, %v2755
        %v2778 = vmul.f32 %v2686, %v2686
        %v2779 = vmul.f32 %v2710, %v2710
        %v2780 = vmul.f32 %v2734, %v2734
        %v2781 = vmul.f32 %v2758, %v2758
        %v2782 = vmul.f32 %v2688, %v2688
        %v2783 = vmul.f32 %v2712, %v2712
        %v2784 = vmul.f32 %v2736, %v2736
        %v2785 = vmul.f32 %v2760, %v2760
        %v2786 = vmul.f32 %v2676, %v2762
        %v2787 = vmul.f32 %v2700, %v2763
        %v2788 = vmul.f32 %v2724, %v2764
        %v2789 = vmul.f32 %v2748, %v2765
        %v2790 = vmul.f32 %v2678, %v2766
        %v2791 = vmul.f32 %v2702, %v2767
        %v2792 = vmul.f32 %v2726, %v2768
        %v2793 = vmul.f32 %v2750, %v2769
        %v2794 = vmul.f32 %v2681, %v2770
        %v2795 = vmul.f32 %v2705, %v2771
        %v2796 = vmul.f32 %v2729, %v2772
        %v2797 = vmul.f32 %v2753, %v2773
        %v2798 = vmul.f32 %v2683, %v2774
        %v2799 = vmul.f32 %v2707, %v2775
        %v2800 = vmul.f32 %v2731, %v2776
        %v2801 = vmul.f32 %v2755, %v2777
        %v2802 = vmul.f32 %v2686, %v2778
        %v2803 = vmul.f32 %v2710, %v2779
        %v2804 = vmul.f32 %v2734, %v2780
        %v2805 = vmul.f32 %v2758, %v2781
        %v2806 = vmul.f32 %v2688, %v2782
        %v2807 = vmul.f32 %v2712, %v2783
        %v2808 = vmul.f32 %v2736, %v2784
        %v2809 = vmul.f32 %v2760, %v2785
        %v2810 = vmul.f32 %v2786, 0.044715
        %v2811 = vmul.f32 %v2787, 0.044715
        %v2812 = vmul.f32 %v2788, 0.044715
        %v2813 = vmul.f32 %v2789, 0.044715
        %v2814 = vmul.f32 %v2790, 0.044715
        %v2815 = vmul.f32 %v2791, 0.044715
        %v2816 = vmul.f32 %v2792, 0.044715
        %v2817 = vmul.f32 %v2793, 0.044715
        %v2818 = vmul.f32 %v2794, 0.044715
        %v2819 = vmul.f32 %v2795, 0.044715
        %v2820 = vmul.f32 %v2796, 0.044715
        %v2821 = vmul.f32 %v2797, 0.044715
        %v2822 = vmul.f32 %v2798, 0.044715
        %v2823 = vmul.f32 %v2799, 0.044715
        %v2824 = vmul.f32 %v2800, 0.044715
        %v2825 = vmul.f32 %v2801, 0.044715
        %v2826 = vmul.f32 %v2802, 0.044715
        %v2827 = vmul.f32 %v2803, 0.044715
        %v2828 = vmul.f32 %v2804, 0.044715
        %v2829 = vmul.f32 %v2805, 0.044715
        %v2830 = vmul.f32 %v2806, 0.044715
        %v2831 = vmul.f32 %v2807, 0.044715
        %v2832 = vmul.f32 %v2808, 0.044715
        %v2833 = vmul.f32 %v2809, 0.044715
        %v2834 = vadd.f32 %v2676, %v2810
        %v2835 = vadd.f32 %v2700, %v2811
        %v2836 = vadd.f32 %v2724, %v2812
        %v2837 = vadd.f32 %v2748, %v2813
        %v2838 = vadd.f32 %v2678, %v2814
        %v2839 = vadd.f32 %v2702, %v2815
        %v2840 = vadd.f32 %v2726, %v2816
        %v2841 = vadd.f32 %v2750, %v2817
        %v2842 = vadd.f32 %v2681, %v2818
        %v2843 = vadd.f32 %v2705, %v2819
        %v2844 = vadd.f32 %v2729, %v2820
        %v2845 = vadd.f32 %v2753, %v2821
        %v2846 = vadd.f32 %v2683, %v2822
        %v2847 = vadd.f32 %v2707, %v2823
        %v2848 = vadd.f32 %v2731, %v2824
        %v2849 = vadd.f32 %v2755, %v2825
        %v2850 = vadd.f32 %v2686, %v2826
        %v2851 = vadd.f32 %v2710, %v2827
        %v2852 = vadd.f32 %v2734, %v2828
        %v2853 = vadd.f32 %v2758, %v2829
        %v2854 = vadd.f32 %v2688, %v2830
        %v2855 = vadd.f32 %v2712, %v2831
        %v2856 = vadd.f32 %v2736, %v2832
        %v2857 = vadd.f32 %v2760, %v2833
        %v2858 = vmul.f32 %v2834, 0.7978846
        %v2859 = vmul.f32 %v2835, 0.7978846
        %v2860 = vmul.f32 %v2836, 0.7978846
        %v2861 = vmul.f32 %v2837, 0.7978846
        %v2862 = vmul.f32 %v2838, 0.7978846
        %v2863 = vmul.f32 %v2839, 0.7978846
        %v2864 = vmul.f32 %v2840, 0.7978846
        %v2865 = vmul.f32 %v2841, 0.7978846
        %v2866 = vmul.f32 %v2842, 0.7978846
        %v2867 = vmul.f32 %v2843, 0.7978846
        %v2868 = vmul.f32 %v2844, 0.7978846
        %v2869 = vmul.f32 %v2845, 0.7978846
        %v2870 = vmul.f32 %v2846, 0.7978846
        %v2871 = vmul.f32 %v2847, 0.7978846
        %v2872 = vmul.f32 %v2848, 0.7978846
        %v2873 = vmul.f32 %v2849, 0.7978846
        %v2874 = vmul.f32 %v2850, 0.7978846
        %v2875 = vmul.f32 %v2851, 0.7978846
        %v2876 = vmul.f32 %v2852, 0.7978846
        %v2877 = vmul.f32 %v2853, 0.7978846
        %v2878 = vmul.f32 %v2854, 0.7978846
        %v2879 = vmul.f32 %v2855, 0.7978846
        %v2880 = vmul.f32 %v2856, 0.7978846
        %v2881 = vmul.f32 %v2857, 0.7978846
        %v2882 = vtanh.pop %v2858
        %v2883 = vtanh.pop %v2859
        %v2884 = vtanh.pop %v2860
        %v2885 = vtanh.pop %v2861
        %v2886 = vtanh.pop %v2862
        %v2887 = vtanh.pop %v2863
        %v2888 = vtanh.pop %v2864
        %v2889 = vtanh.pop %v2865
        %v2890 = vtanh.pop %v2866
        %v2891 = vtanh.pop %v2867
        %v2892 = vtanh.pop %v2868
        %v2893 = vtanh.pop %v2869
        %v2894 = vtanh.pop %v2870
        %v2895 = vtanh.pop %v2871
        %v2896 = vtanh.pop %v2872
        %v2897 = vtanh.pop %v2873
        %v2898 = vtanh.pop %v2874
        %v2899 = vtanh.pop %v2875
        %v2900 = vtanh.pop %v2876
        %v2901 = vtanh.pop %v2877
        %v2902 = vtanh.pop %v2878
        %v2903 = vtanh.pop %v2879
        %v2904 = vtanh.pop %v2880
        %v2905 = vtanh.pop %v2881
        %v2906 = vadd.f32 %v2882, 1.0
        %v2907 = vadd.f32 %v2883, 1.0
        %v2908 = vadd.f32 %v2884, 1.0
        %v2909 = vadd.f32 %v2885, 1.0
        %v2910 = vadd.f32 %v2886, 1.0
        %v2911 = vadd.f32 %v2887, 1.0
        %v2912 = vadd.f32 %v2888, 1.0
        %v2913 = vadd.f32 %v2889, 1.0
        %v2914 = vadd.f32 %v2890, 1.0
        %v2915 = vadd.f32 %v2891, 1.0
        %v2916 = vadd.f32 %v2892, 1.0
        %v2917 = vadd.f32 %v2893, 1.0
        %v2918 = vadd.f32 %v2894, 1.0
        %v2919 = vadd.f32 %v2895, 1.0
        %v2920 = vadd.f32 %v2896, 1.0
        %v2921 = vadd.f32 %v2897, 1.0
        %v2922 = vadd.f32 %v2898, 1.0
        %v2923 = vadd.f32 %v2899, 1.0
        %v2924 = vadd.f32 %v2900, 1.0
        %v2925 = vadd.f32 %v2901, 1.0
        %v2926 = vadd.f32 %v2902, 1.0
        %v2927 = vadd.f32 %v2903, 1.0
        %v2928 = vadd.f32 %v2904, 1.0
        %v2929 = vadd.f32 %v2905, 1.0
        %v2930 = vmul.f32 %v2906, 0.5
        %v2931 = vmul.f32 %v2907, 0.5
        %v2932 = vmul.f32 %v2908, 0.5
        %v2933 = vmul.f32 %v2909, 0.5
        %v2934 = vmul.f32 %v2910, 0.5
        %v2935 = vmul.f32 %v2911, 0.5
        %v2936 = vmul.f32 %v2912, 0.5
        %v2937 = vmul.f32 %v2913, 0.5
        %v2938 = vmul.f32 %v2914, 0.5
        %v2939 = vmul.f32 %v2915, 0.5
        %v2940 = vmul.f32 %v2916, 0.5
        %v2941 = vmul.f32 %v2917, 0.5
        %v2942 = vmul.f32 %v2918, 0.5
        %v2943 = vmul.f32 %v2919, 0.5
        %v2944 = vmul.f32 %v2920, 0.5
        %v2945 = vmul.f32 %v2921, 0.5
        %v2946 = vmul.f32 %v2922, 0.5
        %v2947 = vmul.f32 %v2923, 0.5
        %v2948 = vmul.f32 %v2924, 0.5
        %v2949 = vmul.f32 %v2925, 0.5
        %v2950 = vmul.f32 %v2926, 0.5
        %v2951 = vmul.f32 %v2927, 0.5
        %v2952 = vmul.f32 %v2928, 0.5
        %v2953 = vmul.f32 %v2929, 0.5
        %v2954 = vmul.f32 %v2676, %v2930
        %v2955 = vmul.f32 %v2700, %v2931
        %v2956 = vmul.f32 %v2724, %v2932
        %v2957 = vmul.f32 %v2748, %v2933
        %v2958 = vmul.f32 %v2678, %v2934
        %v2959 = vmul.f32 %v2702, %v2935
        %v2960 = vmul.f32 %v2726, %v2936
        %v2961 = vmul.f32 %v2750, %v2937
        %v2962 = vmul.f32 %v2681, %v2938
        %v2963 = vmul.f32 %v2705, %v2939
        %v2964 = vmul.f32 %v2729, %v2940
        %v2965 = vmul.f32 %v2753, %v2941
        %v2966 = vmul.f32 %v2683, %v2942
        %v2967 = vmul.f32 %v2707, %v2943
        %v2968 = vmul.f32 %v2731, %v2944
        %v2969 = vmul.f32 %v2755, %v2945
        %v2970 = vmul.f32 %v2686, %v2946
        %v2971 = vmul.f32 %v2710, %v2947
        %v2972 = vmul.f32 %v2734, %v2948
        %v2973 = vmul.f32 %v2758, %v2949
        %v2974 = vmul.f32 %v2688, %v2950
        %v2975 = vmul.f32 %v2712, %v2951
        %v2976 = vmul.f32 %v2736, %v2952
        %v2977 = vmul.f32 %v2760, %v2953
        %v2978 = vpack.c.bf16 %v2958, %v2954
        %v2979 = vpack.c.bf16 %v2959, %v2955
        %v2980 = vpack.c.bf16 %v2960, %v2956
        %v2981 = vpack.c.bf16 %v2961, %v2957
        %v2982 = vpack.c.bf16 %v2966, %v2962
        %v2983 = vpack.c.bf16 %v2967, %v2963
        %v2984 = vpack.c.bf16 %v2968, %v2964
        %v2985 = vpack.c.bf16 %v2969, %v2965
        %v2986 = vpack.c.bf16 %v2974, %v2970
        %v2987 = vpack.c.bf16 %v2975, %v2971
        %v2988 = vpack.c.bf16 %v2976, %v2972
        %v2989 = vpack.c.bf16 %v2977, %v2973
        %v2990 = vld [vmem:[%s658] sm:$0xf]
        %v2991 = vld [vmem:[%s658 + $0x4] sm:$0xf]
        %v2992 = vld [vmem:[%s658 + $0x8] sm:$0xf]
        %v2993 = vld [vmem:[%s658 + $0xc] sm:$0xf]
        %v2994 = vld [vmem:[%s658 + $0x10] sm:$0xf]
        %v2995 = vld [vmem:[%s658 + $0x14] sm:$0xf]
        %v2996 = vld [vmem:[%s658 + $0x18] sm:$0xf]
        %v2997 = vld [vmem:[%s658 + $0x1c] sm:$0xf]
        %v2998 = vld [vmem:[%s658 + $0x20] sm:$0xf]
        %v2999 = vld [vmem:[%s658 + $0x24] sm:$0xf]
        %v3000 = vld [vmem:[%s658 + $0x28] sm:$0xf]
        %v3001 = vld [vmem:[%s658 + $0x2c] sm:$0xf]
        %v3002 = vld [vmem:[%s658 + $0x30] sm:$0xf]
        %v3003 = vld [vmem:[%s658 + $0x34] sm:$0xf]
        %v3004 = vld [vmem:[%s658 + $0x38] sm:$0xf]
        %v3005 = vld [vmem:[%s658 + $0x3c] sm:$0xf]
        %v3006 = vld [vmem:[%s658 + $0x40] sm:$0xf]
        %v3007 = vld [vmem:[%s658 + $0x44] sm:$0xf]
        %v3008 = vld [vmem:[%s658 + $0x48] sm:$0xf]
        %v3009 = vld [vmem:[%s658 + $0x4c] sm:$0xf]
        %v3010 = vld [vmem:[%s658 + $0x50] sm:$0xf]
        %v3011 = vld [vmem:[%s658 + $0x54] sm:$0xf]
        %v3012 = vld [vmem:[%s658 + $0x58] sm:$0xf]
        %v3013 = vld [vmem:[%s658 + $0x5c] sm:$0xf]
        %v3014 = vld [vmem:[%s658 + $0x60] sm:$0xf]
        %v3015 = vld [vmem:[%s658 + $0x64] sm:$0xf]
        %v3016 = vld [vmem:[%s658 + $0x68] sm:$0xf]
        %v3017 = vld [vmem:[%s658 + $0x6c] sm:$0xf]
        %v3018 = vld [vmem:[%s658 + $0x70] sm:$0xf]
        %v3019 = vld [vmem:[%s658 + $0x74] sm:$0xf]
        %v3020 = vld [vmem:[%s658 + $0x78] sm:$0xf]
        %v3021 = vld [vmem:[%s658 + $0x7c] sm:$0xf]
        %v3022 = vld [vmem:[%s658 + $0x80] sm:$0xf]
        %v3023 = vld [vmem:[%s658 + $0x84] sm:$0xf]
        %v3024 = vld [vmem:[%s658 + $0x88] sm:$0xf]
        %v3025 = vld [vmem:[%s658 + $0x8c] sm:$0xf]
        %v3026 = vld [vmem:[%s658 + $0x90] sm:$0xf]
        %v3027 = vld [vmem:[%s658 + $0x94] sm:$0xf]
        %v3028 = vld [vmem:[%s658 + $0x98] sm:$0xf]
        %v3029 = vld [vmem:[%s658 + $0x9c] sm:$0xf]
        %v3030 = vld [vmem:[%s658 + $0xa0] sm:$0xf]
        %v3031 = vld [vmem:[%s658 + $0xa4] sm:$0xf]
        %v3032 = vld [vmem:[%s658 + $0xa8] sm:$0xf]
        %v3033 = vld [vmem:[%s658 + $0xac] sm:$0xf]
        %v3034 = vld [vmem:[%s658 + $0xb0] sm:$0xf]
        %v3035 = vld [vmem:[%s658 + $0xb4] sm:$0xf]
        %v3036 = vld [vmem:[%s658 + $0xb8] sm:$0xf]
        %v3037 = vld [vmem:[%s658 + $0xbc] sm:$0xf]
        %v3038 = vld [vmem:[%s658 + $0xc0] sm:$0xf]
        %v3039 = vld [vmem:[%s658 + $0xc4] sm:$0xf]
        %v3040 = vld [vmem:[%s658 + $0xc8] sm:$0xf]
        %v3041 = vld [vmem:[%s658 + $0xcc] sm:$0xf]
        %v3042 = vld [vmem:[%s658 + $0xd0] sm:$0xf]
        %v3043 = vld [vmem:[%s658 + $0xd4] sm:$0xf]
        %v3044 = vld [vmem:[%s658 + $0xd8] sm:$0xf]
        %v3045 = vld [vmem:[%s658 + $0xdc] sm:$0xf]
        %v3046 = vld [vmem:[%s658 + $0xe0] sm:$0xf]
        %v3047 = vld [vmem:[%s658 + $0xe4] sm:$0xf]
        %v3048 = vld [vmem:[%s658 + $0xe8] sm:$0xf]
        %v3049 = vld [vmem:[%s658 + $0xec] sm:$0xf]
        %v3050 = vld [vmem:[%s658 + $0xf0] sm:$0xf]
        %v3051 = vld [vmem:[%s658 + $0xf4] sm:$0xf]
        %v3052 = vld [vmem:[%s658 + $0xf8] sm:$0xf]
        %v3053 = vld [vmem:[%s658 + $0xfc] sm:$0xf]
        %v3118 = vunpack.c.l.b16 %v2990
        %v3119 = vunpack.c.l.b16 %v2991
        %v3120 = vunpack.c.l.b16 %v2992
        %v3121 = vunpack.c.l.b16 %v2993
        %v3122 = vunpack.c.l.b16 %v2994
        %v3123 = vunpack.c.l.b16 %v2995
        %v3124 = vunpack.c.l.b16 %v2996
        %v3125 = vunpack.c.l.b16 %v2997
        %v3126 = vunpack.c.l.b16 %v2998
        %v3127 = vunpack.c.l.b16 %v2999
        %v3128 = vunpack.c.l.b16 %v3000
        %v3129 = vunpack.c.l.b16 %v3001
        %v3130 = vunpack.c.l.b16 %v3002
        %v3131 = vunpack.c.l.b16 %v3003
        %v3132 = vunpack.c.l.b16 %v3004
        %v3133 = vunpack.c.l.b16 %v3005
        %v3134 = vunpack.c.l.b16 %v3006
        %v3135 = vunpack.c.l.b16 %v3007
        %v3136 = vunpack.c.l.b16 %v3008
        %v3137 = vunpack.c.l.b16 %v3009
        %v3138 = vunpack.c.l.b16 %v3010
        %v3139 = vunpack.c.l.b16 %v3011
        %v3140 = vunpack.c.l.b16 %v3012
        %v3141 = vunpack.c.l.b16 %v3013
        %v3142 = vunpack.c.l.b16 %v3014
        %v3143 = vunpack.c.l.b16 %v3015
        %v3144 = vunpack.c.l.b16 %v3016
        %v3145 = vunpack.c.l.b16 %v3017
        %v3146 = vunpack.c.l.b16 %v3018
        %v3147 = vunpack.c.l.b16 %v3019
        %v3148 = vunpack.c.l.b16 %v3020
        %v3149 = vunpack.c.l.b16 %v3021
        %v3150 = vunpack.c.l.b16 %v3022
        %v3151 = vunpack.c.l.b16 %v3023
        %v3152 = vunpack.c.l.b16 %v3024
        %v3153 = vunpack.c.l.b16 %v3025
        %v3154 = vunpack.c.l.b16 %v3026
        %v3155 = vunpack.c.l.b16 %v3027
        %v3156 = vunpack.c.l.b16 %v3028
        %v3157 = vunpack.c.l.b16 %v3029
        %v3158 = vunpack.c.l.b16 %v3030
        %v3159 = vunpack.c.l.b16 %v3031
        %v3160 = vunpack.c.l.b16 %v3032
        %v3161 = vunpack.c.l.b16 %v3033
        %v3162 = vunpack.c.l.b16 %v3034
        %v3163 = vunpack.c.l.b16 %v3035
        %v3164 = vunpack.c.l.b16 %v3036
        %v3165 = vunpack.c.l.b16 %v3037
        %v3166 = vunpack.c.l.b16 %v3038
        %v3167 = vunpack.c.l.b16 %v3039
        %v3168 = vunpack.c.l.b16 %v3040
        %v3169 = vunpack.c.l.b16 %v3041
        %v3170 = vunpack.c.l.b16 %v3042
        %v3171 = vunpack.c.l.b16 %v3043
        %v3172 = vunpack.c.l.b16 %v3044
        %v3173 = vunpack.c.l.b16 %v3045
        %v3174 = vunpack.c.l.b16 %v3046
        %v3175 = vunpack.c.l.b16 %v3047
        %v3176 = vunpack.c.l.b16 %v3048
        %v3177 = vunpack.c.l.b16 %v3049
        %v3178 = vunpack.c.l.b16 %v3050
        %v3179 = vunpack.c.l.b16 %v3051
        %v3180 = vunpack.c.l.b16 %v3052
        %v3181 = vunpack.c.l.b16 %v3053
        %v3182 = vpack.c.b16 %v3119, %v3118
        %v3183 = vpack.c.b16 %v3121, %v3120
        %v3184 = vpack.c.b16 %v3123, %v3122
        %v3185 = vpack.c.b16 %v3125, %v3124
        %v3186 = vpack.c.b16 %v3127, %v3126
        %v3187 = vpack.c.b16 %v3129, %v3128
        %v3188 = vpack.c.b16 %v3131, %v3130
        %v3189 = vpack.c.b16 %v3133, %v3132
        %v3190 = vpack.c.b16 %v3135, %v3134
        %v3191 = vpack.c.b16 %v3137, %v3136
        %v3192 = vpack.c.b16 %v3139, %v3138
        %v3193 = vpack.c.b16 %v3141, %v3140
        %v3194 = vpack.c.b16 %v3143, %v3142
        %v3195 = vpack.c.b16 %v3145, %v3144
        %v3196 = vpack.c.b16 %v3147, %v3146
        %v3197 = vpack.c.b16 %v3149, %v3148
        %v3198 = vpack.c.b16 %v3151, %v3150
        %v3199 = vpack.c.b16 %v3153, %v3152
        %v3200 = vpack.c.b16 %v3155, %v3154
        %v3201 = vpack.c.b16 %v3157, %v3156
        %v3202 = vpack.c.b16 %v3159, %v3158
        %v3203 = vpack.c.b16 %v3161, %v3160
        %v3204 = vpack.c.b16 %v3163, %v3162
        %v3205 = vpack.c.b16 %v3165, %v3164
        %v3206 = vpack.c.b16 %v3167, %v3166
        %v3207 = vpack.c.b16 %v3169, %v3168
        %v3208 = vpack.c.b16 %v3171, %v3170
        %v3209 = vpack.c.b16 %v3173, %v3172
        %v3210 = vpack.c.b16 %v3175, %v3174
        %v3211 = vpack.c.b16 %v3177, %v3176
        %v3212 = vpack.c.b16 %v3179, %v3178
        %v3213 = vpack.c.b16 %v3181, %v3180
        %3246 = vmatpush.bf16.msra.mxu0 %v3189
        %3247 = vmatpush.bf16.msra.mxu0 %v3188
        %3248 = vmatpush.bf16.msra.mxu0 %v3187
        %3249 = vmatpush.bf16.msra.mxu0 %v3186
        %3250 = vmatpush.bf16.msra.mxu0 %v3185
        %3251 = vmatpush.bf16.msra.mxu0 %v3184
        %3252 = vmatpush.bf16.msra.mxu0 %v3183
        %3253 = vmatpush.bf16.msra.mxu0 %v3182
        %3254 = vmatmul.bf16.gmra.mxu0 %v2978
        %v3255 = vpop.f32.mrf.mxu0
        %v3256 = vadd.f32 0.0, %v3255
        %v3257 = vpop.f32.mrf.mxu0
        %v3258 = vadd.f32 0.0, %v3257
        %3259 = vmatmul.bf16.gmra.mxu0 %v2982
        %v3260 = vpop.f32.mrf.mxu0
        %v3261 = vadd.f32 0.0, %v3260
        %v3262 = vpop.f32.mrf.mxu0
        %v3263 = vadd.f32 0.0, %v3262
        %3264 = vmatmul.bf16.gmra.mxu0 %v2986
        %v3265 = vpop.f32.mrf.mxu0
        %v3266 = vadd.f32 0.0, %v3265
        %v3267 = vpop.f32.mrf.mxu0
        %v3268 = vadd.f32 0.0, %v3267
        %3269 = vdwg.mxu0
        %3270 = vmatpush.bf16.msra.mxu0 %v3197
        %3271 = vmatpush.bf16.msra.mxu0 %v3196
        %3272 = vmatpush.bf16.msra.mxu0 %v3195
        %3273 = vmatpush.bf16.msra.mxu0 %v3194
        %3274 = vmatpush.bf16.msra.mxu0 %v3193
        %3275 = vmatpush.bf16.msra.mxu0 %v3192
        %3276 = vmatpush.bf16.msra.mxu0 %v3191
        %3277 = vmatpush.bf16.msra.mxu0 %v3190
        %3278 = vmatmul.bf16.gmra.mxu0 %v2979
        %v3279 = vpop.f32.mrf.mxu0
        %v3280 = vadd.f32 %v3256, %v3279
        %v3281 = vpop.f32.mrf.mxu0
        %v3282 = vadd.f32 %v3258, %v3281
        %3283 = vmatmul.bf16.gmra.mxu0 %v2983
        %v3284 = vpop.f32.mrf.mxu0
        %v3285 = vadd.f32 %v3261, %v3284
        %v3286 = vpop.f32.mrf.mxu0
        %v3287 = vadd.f32 %v3263, %v3286
        %3288 = vmatmul.bf16.gmra.mxu0 %v2987
        %v3289 = vpop.f32.mrf.mxu0
        %v3290 = vadd.f32 %v3266, %v3289
        %v3291 = vpop.f32.mrf.mxu0
        %v3292 = vadd.f32 %v3268, %v3291
        %3293 = vdwg.mxu0
        %3294 = vmatpush.bf16.msra.mxu0 %v3205
        %3295 = vmatpush.bf16.msra.mxu0 %v3204
        %3296 = vmatpush.bf16.msra.mxu0 %v3203
        %3297 = vmatpush.bf16.msra.mxu0 %v3202
        %3298 = vmatpush.bf16.msra.mxu0 %v3201
        %3299 = vmatpush.bf16.msra.mxu0 %v3200
        %3300 = vmatpush.bf16.msra.mxu0 %v3199
        %3301 = vmatpush.bf16.msra.mxu0 %v3198
        %3302 = vmatmul.bf16.gmra.mxu0 %v2980
        %v3303 = vpop.f32.mrf.mxu0
        %v3304 = vadd.f32 %v3280, %v3303
        %v3305 = vpop.f32.mrf.mxu0
        %v3306 = vadd.f32 %v3282, %v3305
        %3307 = vmatmul.bf16.gmra.mxu0 %v2984
        %v3308 = vpop.f32.mrf.mxu0
        %v3309 = vadd.f32 %v3285, %v3308
        %v3310 = vpop.f32.mrf.mxu0
        %v3311 = vadd.f32 %v3287, %v3310
        %3312 = vmatmul.bf16.gmra.mxu0 %v2988
        %v3313 = vpop.f32.mrf.mxu0
        %v3314 = vadd.f32 %v3290, %v3313
        %v3315 = vpop.f32.mrf.mxu0
        %v3316 = vadd.f32 %v3292, %v3315
        %3317 = vdwg.mxu0
        %3318 = vmatpush.bf16.msra.mxu0 %v3213
        %3319 = vmatpush.bf16.msra.mxu0 %v3212
        %3320 = vmatpush.bf16.msra.mxu0 %v3211
        %3321 = vmatpush.bf16.msra.mxu0 %v3210
        %3322 = vmatpush.bf16.msra.mxu0 %v3209
        %3323 = vmatpush.bf16.msra.mxu0 %v3208
        %3324 = vmatpush.bf16.msra.mxu0 %v3207
        %3325 = vmatpush.bf16.msra.mxu0 %v3206
        %3326 = vmatmul.bf16.gmra.mxu0 %v2981
        %v3327 = vpop.f32.mrf.mxu0
        %v3328 = vadd.f32 %v3304, %v3327
        %v3329 = vpop.f32.mrf.mxu0
        %v3330 = vadd.f32 %v3306, %v3329
        %3331 = vmatmul.bf16.gmra.mxu0 %v2985
        %v3332 = vpop.f32.mrf.mxu0
        %v3333 = vadd.f32 %v3309, %v3332
        %v3334 = vpop.f32.mrf.mxu0
        %v3335 = vadd.f32 %v3311, %v3334
        %3336 = vmatmul.bf16.gmra.mxu0 %v2989
        %v3337 = vpop.f32.mrf.mxu0
        %v3338 = vadd.f32 %v3314, %v3337
        %v3339 = vpop.f32.mrf.mxu0
        %v3340 = vadd.f32 %v3316, %v3339
        %3341 = vdwg.mxu0
        %v3342 = vadd.f32 %v2321, %v3328
        %v3343 = vadd.f32 %v2322, %v3330
        %v3344 = vadd.f32 %v2323, %v3333
        %v3345 = vadd.f32 %v2324, %v3335
        %v3346 = vadd.f32 %v2325, %v3338
        %v3347 = vadd.f32 %v2326, %v3340
        %v3348 = vld [vmem:[%s661] sm:$0x1]
        %v3350 = vperm.slane %v3348, 0
        %v3352 = vadd.f32 %v3342, %v3350
        %v3353 = vadd.f32 %v3343, %v3350
        %v3354 = vadd.f32 %v3344, %v3350
        %v3355 = vadd.f32 %v3345, %v3350
        %v3356 = vadd.f32 %v3346, %v3350
        %v3357 = vadd.f32 %v3347, %v3350
        %3358 = vst [vmem:[#allocation2] sm:$0xff] %v3352
        %3359 = vst [vmem:[#allocation2 + $0x8] sm:$0xff] %v3353
        %3360 = vst [vmem:[#allocation2 + $0x10] sm:$0xff] %v3354
        %3361 = vst [vmem:[#allocation2 + $0x18] sm:$0xff] %v3355
        %3362 = vst [vmem:[#allocation2 + $0x20] sm:$0xff] %v3356
        %3363 = vst [vmem:[#allocation2 + $0x28] sm:$0xff] %v3357
        %p3364 = scmp.eq.s32.totalorder %s32, 1
        // Predicated region
        $region85: #{radio_featurizer_forward.1} parent=79 // pred_check
          %p3365 = pneg %p3364
        $region86: #{radio_featurizer_forward.1} parent=79 // pred_check_branch
          %3367 = sbr.rel (%p3365) target = $region88
        $region87: #{radio_featurizer_forward.1} parent=79 // pred_region
          %v3368 = vld [vmem:[#allocation2] sm:$0xff]
          %v3369 = vld [vmem:[#allocation2 + $0x8] sm:$0xff]
          %v3370 = vld [vmem:[#allocation2 + $0x18] sm:$0xff]
          %v3371 = vld [vmem:[#allocation2 + $0x20] sm:$0xff]
          %v3372 = vld [vmem:[%s5] sm:$0x1]
          %v3373 = vld [vmem:[%s5 + $0x1] sm:$0x1]
          %3374 = vadd.xlane.f32.xlu0 %v3368
          %v3375 = vpop.xlane.xlu0 %3374
          %3376 = vadd.xlane.f32.xlu0 %v3369
          %v3377 = vpop.xlane.xlu0 %3376
          %3378 = vadd.xlane.f32.xlu0 %v3370
          %v3379 = vpop.xlane.xlu0 %3378
          %3380 = vadd.xlane.f32.xlu0 %v3371
          %v3381 = vpop.xlane.xlu0 %3380
          %v3382 = vmul.f32 %v3375, %v1280
          %v3383 = vmul.f32 %v3377, %v1280
          %v3384 = vmul.f32 %v3379, %v1280
          %v3385 = vmul.f32 %v3381, %v1280
          %v3386 = vsub.f32 %v3368, %v3382
          %v3387 = vsub.f32 %v3369, %v3383
          %v3388 = vsub.f32 %v3370, %v3384
          %v3389 = vsub.f32 %v3371, %v3385
          %v3390 = vmul.f32 %v3386, %v3386
          %v3391 = vmul.f32 %v3387, %v3387
          %v3392 = vmul.f32 %v3388, %v3388
          %v3393 = vmul.f32 %v3389, %v3389
          %3394 = vadd.xlane.f32.xlu0 %v3390
          %v3395 = vpop.xlane.xlu0 %3394
          %3396 = vadd.xlane.f32.xlu0 %v3391
          %v3397 = vpop.xlane.xlu0 %3396
          %3398 = vadd.xlane.f32.xlu0 %v3392
          %v3399 = vpop.xlane.xlu0 %3398
          %3400 = vadd.xlane.f32.xlu0 %v3393
          %v3401 = vpop.xlane.xlu0 %3400
          %v3402 = vmul.f32 %v3395, %v1280
          %v3403 = vmul.f32 %v3397, %v1280
          %v3404 = vmul.f32 %v3399, %v1280
          %v3405 = vmul.f32 %v3401, %v1280
          %v3406 = vadd.f32 %v3402, 1e-06
          %v3407 = vadd.f32 %v3403, 1e-06
          %v3408 = vadd.f32 %v3404, 1e-06
          %v3409 = vadd.f32 %v3405, 1e-06
          %v3410 = vrsqrt.pop %v3406
          %v3411 = vmul.f32 %v3410, %v3406
          %v3412 = vmul.f32 %v3411, %v3410
          %v3413 = vmul.f32 0.5, %v3412
          %v3414 = vsub.f32 1.5, %v3413
          %v3415 = vmul.f32 %v3410, %v3414
          %vm3416 = vweird.f32 %v3406
          %vm3417 = vweird.f32 %v3410
          %vm3418 = vmor %vm3416, %vm3417
          %v3419 = vsel %vm3418, %v3410, %v3415
          %v3420 = vrsqrt.pop %v3407
          %v3421 = vmul.f32 %v3420, %v3407
          %v3422 = vmul.f32 %v3421, %v3420
          %v3423 = vmul.f32 0.5, %v3422
          %v3424 = vsub.f32 1.5, %v3423
          %v3425 = vmul.f32 %v3420, %v3424
          %vm3426 = vweird.f32 %v3407
          %vm3427 = vweird.f32 %v3420
          %vm3428 = vmor %vm3426, %vm3427
          %v3429 = vsel %vm3428, %v3420, %v3425
          %v3430 = vrsqrt.pop %v3408
          %v3431 = vmul.f32 %v3430, %v3408
          %v3432 = vmul.f32 %v3431, %v3430
          %v3433 = vmul.f32 0.5, %v3432
          %v3434 = vsub.f32 1.5, %v3433
          %v3435 = vmul.f32 %v3430, %v3434
          %vm3436 = vweird.f32 %v3408
          %vm3437 = vweird.f32 %v3430
          %vm3438 = vmor %vm3436, %vm3437
          %v3439 = vsel %vm3438, %v3430, %v3435
          %v3440 = vrsqrt.pop %v3409
          %v3441 = vmul.f32 %v3440, %v3409
          %v3442 = vmul.f32 %v3441, %v3440
          %v3443 = vmul.f32 0.5, %v3442
          %v3444 = vsub.f32 1.5, %v3443
          %v3445 = vmul.f32 %v3440, %v3444
          %vm3446 = vweird.f32 %v3409
          %vm3447 = vweird.f32 %v3440
          %vm3448 = vmor %vm3446, %vm3447
          %v3449 = vsel %vm3448, %v3440, %v3445
          %v3450 = vmul.f32 %v3386, %v3419
          %v3451 = vmul.f32 %v3387, %v3429
          %v3452 = vmul.f32 %v3388, %v3439
          %v3453 = vmul.f32 %v3389, %v3449
          %v3454 = vperm.slane %v3372, 0
          %v3455 = vmul.f32 %v3450, %v3454
          %v3456 = vmul.f32 %v3451, %v3454
          %v3457 = vmul.f32 %v3452, %v3454
          %v3458 = vmul.f32 %v3453, %v3454
          %v3459 = vperm.slane %v3373, 0
          %v3460 = vadd.f32 %v3455, %v3459
          %v3461 = vadd.f32 %v3456, %v3459
          %v3462 = vadd.f32 %v3457, %v3459
          %v3463 = vadd.f32 %v3458, %v3459
          %3464 = vst [vmem:[#allocation3] sm:$0xff] %v3460
          %3465 = vst [vmem:[#allocation3 + $0x8] sm:$0xff] %v3461
          %3466 = vst [vmem:[#allocation3 + $0x10] sm:$0xff] %v3462
          %3467 = vst [vmem:[#allocation3 + $0x18] sm:$0xff] %v3463
        $region88: #{radio_featurizer_forward.1} parent=79 // pred_fallthru
          _
        // Predicated region
        $region89: #{radio_featurizer_forward.1} parent=79 // pred_check
          %p3468 = pneg %p422
        $region90: #{radio_featurizer_forward.1} parent=79 // pred_check_branch
          %3470 = sbr.rel (%p3468) target = $region92
        $region91: #{radio_featurizer_forward.1} parent=79 // pred_region
          %s3471 = smul.u32 2, %s31
          %3473 = vsyncadd [#allocation4], 0
          %s3474 = smul.addr %s3471, 2
          %s3475 = smul.addr %s3474, 8
          %s3476 = scalar_lea.hbm %s15, %s3475
          %s3477 = sshll.u32 [#allocation3], 4
          %s3478 = int_to_ptr.vmem [resolvable:$true] %s3477
          %s3479 = sshll.u32 %s3476, 4
          %s3480 = int_to_ptr.hbm [resolvable:$true] %s3479
          %3485 = dma.vmem_to_hbm [thread:$0]  %s3478, 512, %s3480, [#allocation4], 128, 128, 8
        $region92: #{radio_featurizer_forward.1} parent=79 // pred_fallthru
          _
        // Predicated region
        $region93: #{radio_featurizer_forward.1} parent=79 // pred_check
          %p3486 = pneg %p422
        $region94: #{radio_featurizer_forward.1} parent=79 // pred_check_branch
          %3488 = sbr.rel (%p3486) target = $region96
        $region95: #{radio_featurizer_forward.1} parent=79 // pred_region
          %3490 = dma.done [#allocation4], 512
        $region96: #{radio_featurizer_forward.1} parent=79 // pred_fallthru
          _
      $region80: #{radio_featurizer_forward.1} parent=5 // pred_fallthru
        _
      %p3491 = scmp.le.s32.totalorder 2, %s22
      // Predicated region
      $region97: #{radio_featurizer_forward.1} parent=5 // pred_check
        %p3492 = pneg %p3491
      $region98: #{radio_featurizer_forward.1} parent=5 // pred_check_branch
        %3494 = sbr.rel (%p3492) target = $region100
      $region99: #{radio_featurizer_forward.1} parent=5 // pred_region
        %s3495 = ssub.s32 %s22, 2
      $region100: #{radio_featurizer_forward.1} parent=5 // pred_fallthru
        _
    $region6: #{radio_featurizer_forward.1} parent=1 // loop_footer
      %s26 = sadd.s32 1, %s22
    $region7: #{radio_featurizer_forward.1} parent=1 // loop_footer_branch
      %21 = sbr.rel target = $region3
    $region8: #{radio_featurizer_forward.1} parent=1 // loop_exit
      _
    %3496 = vsyncpa [#allocation4], 1
    %s3497 = scalar_lea.sflag [#allocation4], 1
    %3498 = vsyncpa %s3497, 1

</llo_original>
